<compile_context>
chip_gen: v7x
topology: tpu7x:2x2x1
jax: 0.10.0
libtpu: 0.0.40
codegen_flags: <defaults>
</compile_context>

<pallas_src>
import functools
import math

import jax
import jax.numpy as jnp
import numpy as np
from jax.experimental import pallas as pl
from jax.experimental.pallas import tpu as pltpu


# --------------------------------------------------------------------------------------
# VMEM limit (generation aware, with safe fallback)
# --------------------------------------------------------------------------------------
def _default_vmem_limit():
    try:
        cap = int(pltpu.get_tpu_info().vmem_capacity_bytes)
        return int(min(cap * 3 // 4, 96 * 1024 * 1024))
    except Exception:
        return 48 * 1024 * 1024      # safe on every generation (v7x has 64 MiB total)


_VMEM_LIMIT = _default_vmem_limit()


# --------------------------------------------------------------------------------------
# Kernel helpers
# --------------------------------------------------------------------------------------
def _gelu_tanh(x):
    # tanh-approx GELU (|diff| vs exact erf GELU <~3e-3): one EUP tanh instead of a
    # ~10-op VALU erf polynomial over the (TILE_M, 2048) FFN intermediate.
    c = 0.7978845608028654  # sqrt(2/pi)
    return 0.5 * x * (1.0 + jnp.tanh(c * (x + 0.044715 * x * x * x)))


def _layer_norm(y, g, b, eps):
    mu = jnp.mean(y, axis=-1, keepdims=True)
    var = jnp.mean((y - mu) ** 2, axis=-1, keepdims=True)
    return (y - mu) * jax.lax.rsqrt(var + eps) * g + b


# --------------------------------------------------------------------------------------
# Pallas kernels (bf16 MXU inputs, f32 accumulation / normalization)
# --------------------------------------------------------------------------------------
def _linear_silu_kernel(x_ref, w_ref, b_ref, o_ref):
    # conv1 as im2col matmul; BN(eval) scale + conv bias are pre-folded into w/b.
    y = jnp.dot(x_ref[...].astype(jnp.bfloat16), w_ref[...],
                preferred_element_type=jnp.float32) + b_ref[...]
    o_ref[...] = (y * jax.nn.sigmoid(y)).astype(o_ref.dtype)


def _linear_kernel(x_ref, w_ref, b_ref, o_ref):
    o_ref[...] = (jnp.dot(x_ref[...].astype(jnp.bfloat16), w_ref[...],
                          preferred_element_type=jnp.float32)
                  + b_ref[...]).astype(o_ref.dtype)


def _attention_kernel(qkv_ref, o_ref, *, nhead, hd):
    # One batch element per grid step; qkv_ref is (S, 3H) bf16 with 1/sqrt(hd) already
    # folded into the Q projection. Heads are split on static column slices in-kernel
    # and merged into one lane-dense (S, H) store.
    H = nhead * hd
    qkv = qkv_ref[...]
    outs = []
    for h in range(nhead):
        q = qkv[:, h * hd:(h + 1) * hd]
        k = qkv[:, H + h * hd:H + (h + 1) * hd]
        v = qkv[:, 2 * H + h * hd:2 * H + (h + 1) * hd]
        s = jax.lax.dot_general(q, k, (((1,), (1,)), ((), ())),
                                preferred_element_type=jnp.float32)        # (S, S)
        s = s - jnp.max(s, axis=-1, keepdims=True)
        p = jnp.exp(s)
        p = p * pl.reciprocal(jnp.sum(p, axis=-1, keepdims=True), approx=True)
        outs.append(jnp.dot(p.astype(qkv.dtype), v,
                            preferred_element_type=jnp.float32))           # (S, hd)
    o_ref[...] = jnp.concatenate(outs, axis=-1).astype(o_ref.dtype)


def _proj_residual_ln_kernel(x_ref, a_ref, w_ref, b_ref, g_ref, beta_ref, o_ref, *, eps):
    y = x_ref[...] + jnp.dot(a_ref[...], w_ref[...],
                             preferred_element_type=jnp.float32) + b_ref[...]
    o_ref[...] = _layer_norm(y, g_ref[...], beta_ref[...], eps).astype(o_ref.dtype)


def _ffn_residual_ln_kernel(x_ref, w1_ref, b1_ref, w2_ref, b2_ref,
                            g_ref, beta_ref, o_ref, *, eps):
    x = x_ref[...]
    h = jnp.dot(x.astype(jnp.bfloat16), w1_ref[...],
                preferred_element_type=jnp.float32) + b1_ref[...]
    h = _gelu_tanh(h)
    y = x + jnp.dot(h.astype(jnp.bfloat16), w2_ref[...],
                    preferred_element_type=jnp.float32) + b2_ref[...]
    o_ref[...] = _layer_norm(y, g_ref[...], beta_ref[...], eps).astype(o_ref.dtype)


def _ln_fc_kernel(x_ref, g_ref, b_ref, w_ref, bfc_ref, o_ref, *, eps):
    xn = _layer_norm(x_ref[...], g_ref[...], b_ref[...], eps)
    o_ref[...] = (jnp.dot(xn.astype(jnp.bfloat16), w_ref[...],
                          preferred_element_type=jnp.float32)
                  + bfc_ref[...]).astype(o_ref.dtype)


# --------------------------------------------------------------------------------------
# pallas_call wrappers
# --------------------------------------------------------------------------------------
def _row_call(kernel, row_args, resident_args, out_cols, out_dtype,
              tile_m=512, **static):
    """Row-tiled pallas_call: row_args/out are tiled over dim 0 and pipelined,
    resident_args (weights/biases) use a constant index map and stay in VMEM."""
    M = row_args[0].shape[0]
    tm = M if M <= tile_m else tile_m          # tile_m is a multiple of 8
    grid = (pl.cdiv(M, tm),)
    in_specs = [pl.BlockSpec((tm, a.shape[1]), lambda i: (i, 0)) for a in row_args]
    in_specs += [pl.BlockSpec(a.shape, lambda i, nd=a.ndim: (0,) * nd)
                 for a in resident_args]
    fn = functools.partial(kernel, **static) if static else kernel
    return pl.pallas_call(
        fn,
        grid=grid,
        in_specs=in_specs,
        out_specs=pl.BlockSpec((tm, out_cols), lambda i: (i, 0)),
        out_shape=jax.ShapeDtypeStruct((M, out_cols), out_dtype),
        compiler_params=pltpu.CompilerParams(
            dimension_semantics=("parallel",),
            vmem_limit_bytes=_VMEM_LIMIT),
    )(*row_args, *resident_args)


def _attention(qkv3, nhead, hd):
    # qkv3: (N, S, 3H) bf16 -> (N, S, H) bf16, one lane-dense block per batch element.
    N, S, threeH = qkv3.shape
    H = nhead * hd
    return pl.pallas_call(
        functools.partial(_attention_kernel, nhead=nhead, hd=hd),
        grid=(N,),
        in_specs=[pl.BlockSpec((None, S, threeH), lambda b: (b, 0, 0))],
        out_specs=pl.BlockSpec((None, S, H), lambda b: (b, 0, 0)),
        out_shape=jax.ShapeDtypeStruct((N, S, H), jnp.bfloat16),
        compiler_params=pltpu.CompilerParams(
            dimension_semantics=("parallel",),
            vmem_limit_bytes=_VMEM_LIMIT),
    )(qkv3)


# --------------------------------------------------------------------------------------
# Plain-JAX glue (im2col, pos-enc) and parameters
# --------------------------------------------------------------------------------------
def _im2col_1d(x_cl, K, stride):
    # x_cl: (N, L, C) channels-last -> (N*Lout, C*K) patches ordered (ci-major, k-minor).
    N, L, C = x_cl.shape
    Lout = (L - K) // stride + 1
    idx = jnp.arange(Lout)[:, None] * stride + jnp.arange(K)[None, :]
    patches = x_cl[:, idx, :]                                   # (N, Lout, K, C)
    patches = jnp.transpose(patches, (0, 1, 3, 2)).reshape(N * Lout, C * K)
    return patches, Lout


def positional_encoding(max_len, d_model):
    position = jnp.arange(max_len, dtype=jnp.float32)[:, None]
    div_term = jnp.exp(jnp.arange(0, d_model, 2, dtype=jnp.float32)
                       * (-math.log(10000.0) / d_model))
    pe = jnp.zeros((max_len, d_model), jnp.float32)
    pe = pe.at[:, 0::2].set(jnp.sin(position * div_term))
    pe = pe.at[:, 1::2].set(jnp.cos(position * div_term))
    return pe                                                   # (max_len, d_model)


def init_params(key, in_ch, n_cls, hidden, nlayers, dff=2048, max_len=100):
    C1 = hidden // 2
    keys = iter(jax.random.split(key, 64 + 32 * nlayers))

    def nrm(shape, std):
        return jax.random.normal(next(keys), shape, jnp.float32) * std

    P = {
        "conv1_w": nrm((C1, in_ch, 7), 0.2),
        "conv1_b": nrm((C1,), 0.1),
        "bn_g": 1.0 + nrm((C1,), 0.1),
        "bn_b": nrm((C1,), 0.1),
        "bn_mean": nrm((C1,), 0.1),
        "bn_var": jax.random.uniform(next(keys), (C1,), jnp.float32, 0.5, 1.5),
        "conv2_w": nrm((hidden, C1, 5), 0.1),
        "conv2_b": nrm((hidden,), 0.1),
        "cls": nrm((1, 1, hidden), 0.02),
        "pe": positional_encoding(max_len, hidden),
        "final_ln_g": 1.0 + nrm((hidden,), 0.05),
        "final_ln_b": nrm((hidden,), 0.05),
        "fc_w": nrm((hidden, n_cls), 0.1),                      # stored as (in, out)
        "fc_b": nrm((n_cls,), 0.05),
        "layers": [],
    }
    std_h = 1.0 / math.sqrt(hidden)
    for _ in range(nlayers):
        P["layers"].append({
            "wq": nrm((hidden, hidden), std_h), "bq": nrm((hidden,), 0.02),
            "wk": nrm((hidden, hidden), std_h), "bk": nrm((hidden,), 0.02),
            "wv": nrm((hidden, hidden), std_h), "bv": nrm((hidden,), 0.02),
            "wo": nrm((hidden, hidden), std_h), "bo": nrm((hidden,), 0.02),
            "w1": nrm((hidden, dff), std_h), "b1": nrm((dff,), 0.02),
            "w2": nrm((dff, hidden), 1.0 / math.sqrt(dff)), "b2": nrm((hidden,), 0.02),
            "ln1_g": 1.0 + nrm((hidden,), 0.05), "ln1_b": nrm((hidden,), 0.05),
            "ln2_g": 1.0 + nrm((hidden,), 0.05), "ln2_b": nrm((hidden,), 0.05),
        })
    return P


def prepare_params(P, nhead, eps=1e-5):
    """One-time parameter prep (hoisted out of the forward pass):
    fold BN / conv-bias / 1/sqrt(hd) scales, fuse QKV weights, flatten conv kernels,
    cast all matmul weights to bf16, pad the classifier to a lane-dense 128 columns."""
    H = P["cls"].shape[-1]
    C1 = P["conv1_b"].shape[0]
    Cin = P["conv1_w"].shape[1]
    hd = H // nhead
    bf16 = jnp.bfloat16

    ginv = P["bn_g"] / jnp.sqrt(P["bn_var"] + eps)                         # (C1,)
    conv1_w = (P["conv1_w"].reshape(C1, Cin * 7).T * ginv[None, :]).astype(bf16)
    conv1_shift = ((P["conv1_b"] - P["bn_mean"]) * ginv + P["bn_b"]).reshape(1, C1)

    conv2_w = P["conv2_w"].reshape(H, C1 * 5).T.astype(bf16)               # (C1*5, H)
    conv2_b = P["conv2_b"].reshape(1, H)

    n_cls = P["fc_b"].shape[0]
    n_pad = ((n_cls + 127) // 128) * 128
    fc_w = jnp.zeros((H, n_pad), jnp.float32).at[:, :n_cls].set(P["fc_w"]).astype(bf16)
    fc_b = jnp.zeros((1, n_pad), jnp.float32).at[:, :n_cls].set(P["fc_b"].reshape(1, -1))

    c = 1.0 / math.sqrt(hd)
    layers = []
    for lyr in P["layers"]:
        layers.append({
            "wqkv": jnp.concatenate([lyr["wq"] * c, lyr["wk"], lyr["wv"]],
                                    axis=1).astype(bf16),                  # (H, 3H)
            "bqkv": jnp.concatenate([lyr["bq"] * c, lyr["bk"],
                                     lyr["bv"]]).reshape(1, 3 * H),
            "wo": lyr["wo"].astype(bf16), "bo": lyr["bo"].reshape(1, H),
            "ln1_g": lyr["ln1_g"].reshape(1, H), "ln1_b": lyr["ln1_b"].reshape(1, H),
            "w1": lyr["w1"].astype(bf16), "b1": lyr["b1"].reshape(1, -1),
            "w2": lyr["w2"].astype(bf16), "b2": lyr["b2"].reshape(1, H),
            "ln2_g": lyr["ln2_g"].reshape(1, H), "ln2_b": lyr["ln2_b"].reshape(1, H),
        })

    return {
        "conv1_w": conv1_w, "conv1_shift": conv1_shift,
        "conv2_w": conv2_w, "conv2_b": conv2_b,
        "cls": P["cls"], "pe": P["pe"],
        "final_ln_g": P["final_ln_g"].reshape(1, H),
        "final_ln_b": P["final_ln_b"].reshape(1, H),
        "fc_w": fc_w, "fc_b": fc_b,
        "layers": layers,
    }


# --------------------------------------------------------------------------------------
# Full forward pass built from Pallas kernels
# --------------------------------------------------------------------------------------
def pallas_forward(src, Q, nhead, n_cls, eps=1e-5):
    # src: (N, in_ch, L)  -- PyTorch NCL convention
    N, Cin, Lin = src.shape
    H = Q["cls"].shape[-1]
    C1 = Q["conv1_shift"].shape[-1]
    hd = H // nhead

    # ---- CNNHead: Conv1d(k7,s2)+BN(eval)+SiLU then Conv1d(k5,s2), as im2col matmuls.
    # TODO(synk): im2col gather itself stays in plain JAX (data-dependent layout op).
    x_cl = jnp.transpose(src, (0, 2, 1))                        # (N, L, Cin)
    p1, L1 = _im2col_1d(x_cl, 7, 2)
    y1 = _row_call(_linear_silu_kernel, [p1], [Q["conv1_w"], Q["conv1_shift"]],
                   out_cols=C1, out_dtype=jnp.float32, tile_m=1024)

    p2, L2 = _im2col_1d(y1.reshape(N, L1, C1), 5, 2)
    y2 = _row_call(_linear_kernel, [p2], [Q["conv2_w"], Q["conv2_b"]],
                   out_cols=H, out_dtype=jnp.float32, tile_m=1024)

    # ---- cls token + sinusoidal positional encoding (dropout is eval-mode identity).
    tok = y2.reshape(N, L2, H)
    cls = jnp.broadcast_to(Q["cls"].reshape(1, 1, H), (N, 1, H))
    x = jnp.concatenate([cls, tok], axis=1)                     # (N, S, H)
    S = L2 + 1
    x = (x + Q["pe"][:S][None, :, :]).reshape(N * S, H)

    # ---- Transformer encoder layers (post-norm, GELU FFN).
    for lyr in Q["layers"]:
        qkv = _row_call(_linear_kernel, [x], [lyr["wqkv"], lyr["bqkv"]],
                        out_cols=3 * H, out_dtype=jnp.bfloat16, tile_m=1024)  # (N*S,3H)
        ao = _attention(qkv.reshape(N, S, 3 * H), nhead, hd)                  # (N,S,H)
        x = _row_call(_proj_residual_ln_kernel, [x, ao.reshape(N * S, H)],
                      [lyr["wo"], lyr["bo"], lyr["ln1_g"], lyr["ln1_b"]],
                      out_cols=H, out_dtype=jnp.float32, tile_m=1024, eps=eps)
        x = _row_call(_ffn_residual_ln_kernel, [x],
                      [lyr["w1"], lyr["b1"], lyr["w2"], lyr["b2"],
                       lyr["ln2_g"], lyr["ln2_b"]],
                      out_cols=H, out_dtype=jnp.float32, tile_m=512, eps=eps)

    # ---- final encoder LayerNorm (on cls token) + lane-padded classifier head.
    x_cls = x.reshape(N, S, H)[:, 0, :]
    logits = _row_call(_ln_fc_kernel, [x_cls],
                       [Q["final_ln_g"], Q["final_ln_b"], Q["fc_w"], Q["fc_b"]],
                       out_cols=Q["fc_w"].shape[1], out_dtype=jnp.float32, eps=eps)
    return logits[:, :n_cls]


# --------------------------------------------------------------------------------------
# Pure-JAX reference (mirrors the PyTorch eval-mode forward, seq-first like nn.Transformer)
# --------------------------------------------------------------------------------------
def reference_forward(src, P, nhead, eps=1e-5):
    def conv1d(x, w, b, stride):
        y = jax.lax.conv_general_dilated(
            x, w, window_strides=(stride,), padding="VALID",
            dimension_numbers=("NCH", "OIH", "NCH"))
        return y + b[None, :, None]

    x = conv1d(src, P["conv1_w"], P["conv1_b"], 2)              # (N, C1, L1)
    inv = P["bn_g"] / jnp.sqrt(P["bn_var"] + eps)
    x = (x - P["bn_mean"][None, :, None]) * inv[None, :, None] + P["bn_b"][None, :, None]
    x = x * jax.nn.sigmoid(x)                                   # SiLU
    x = conv1d(x, P["conv2_w"], P["conv2_b"], 2)                # (N, H, L2)
    x = jnp.transpose(x, (2, 0, 1))                             # (L2, N, H)

    Sm1, N, H = x.shape
    cls = jnp.broadcast_to(P["cls"].reshape(1, 1, H), (1, N, H))
    x = jnp.concatenate([cls, x], axis=0)                       # (S, N, H)
    S = Sm1 + 1
    x = x + P["pe"][:S][:, None, :]
    hd = H // nhead

    for lyr in P["layers"]:
        q = x @ lyr["wq"] + lyr["bq"]
        k = x @ lyr["wk"] + lyr["bk"]
        v = x @ lyr["wv"] + lyr["bv"]

        def split(t):
            return t.reshape(S, N, nhead, hd).transpose(1, 2, 0, 3)   # (N, nh, S, hd)

        qh, kh, vh = split(q), split(k), split(v)
        sc = jnp.einsum("bhqd,bhkd->bhqk", qh, kh) / math.sqrt(hd)
        p = jax.nn.softmax(sc, axis=-1)
        ao = jnp.einsum("bhqk,bhkd->bhqd", p, vh)
        ao = ao.transpose(2, 0, 1, 3).reshape(S, N, H)
        ao = ao @ lyr["wo"] + lyr["bo"]
        x = _layer_norm(x + ao, lyr["ln1_g"], lyr["ln1_b"], eps)
        ff = jax.nn.gelu(x @ lyr["w1"] + lyr["b1"], approximate=False)
        ff = ff @ lyr["w2"] + lyr["b2"]
        x = _layer_norm(x + ff, lyr["ln2_g"], lyr["ln2_b"], eps)

    x = _layer_norm(x, P["final_ln_g"], P["final_ln_b"], eps)
    out = jnp.transpose(x, (1, 0, 2))[:, 0, :] @ P["fc_w"] + P["fc_b"]
    return out


# --------------------------------------------------------------------------------------
if __name__ == "__main__":
    # Small, module-consistent config: in_ch=3, n_cls=2, hidden=128 (nhead=hidden//64=2),
    # nlayers=2, dim_feedforward=2048 (hard-coded in the PyTorch module's __init__).
    in_ch, n_cls, hidden, nlayers, dff = 3, 2, 128, 2, 2048
    nhead = hidden // 64
    N, Lin = 2, 72            # conv1(k7,s2)->33, conv2(k5,s2)->15, +cls token -> S=16

    root = jax.random.PRNGKey(0)
    pkey, xkey = jax.random.split(root)
    P = init_params(pkey, in_ch, n_cls, hidden, nlayers, dff)
    Q = prepare_params(P, nhead)          # one-time weight prep (bf16, fused scales)
    src = jax.random.normal(xkey, (N, in_ch, Lin), jnp.float32)

    fwd = jax.jit(functools.partial(pallas_forward, nhead=nhead, n_cls=n_cls))
    out = jax.block_until_ready(fwd(src, Q))
    assert out.shape == (N, n_cls)

    with jax.default_matmul_precision("highest"):
        ref = jax.block_until_ready(reference_forward(src, P, nhead))
    np.testing.assert_allclose(np.asarray(out), np.asarray(ref), rtol=2e-2, atol=2e-2)
    assert bool(jnp.all(jnp.isfinite(out)))
    print("KERNEL_OK")
</pallas_src>

<mosaic_0001>
module attributes {stable_mosaic.version = 11 : i64} {
  func.func @_linear_silu_kernel(%arg0: i32, %arg1: memref<66x21xf32, #tpu.memory_space<vmem>>, %arg2: memref<21x64xbf16, #tpu.memory_space<vmem>>, %arg3: memref<1x64xf32, #tpu.memory_space<vmem>>, %arg4: memref<66x64xf32, #tpu.memory_space<vmem>>) attributes {dimension_semantics = [#tpu.dimension_semantics<parallel>], iteration_bounds = array<i64: 1>, scalar_prefetch = 0 : i64, scratch_operands = 0 : i64, tpu.core_type = #tpu.core_type<tc>, window_params = [{transform_indices = @transform_0, window_bounds = array<i64: 66, 21>}, {pipeline_mode = #tpu.pipeline_mode<synchronous>, transform_indices = @transform_1, window_bounds = array<i64: 21, 64>}, {pipeline_mode = #tpu.pipeline_mode<synchronous>, transform_indices = @transform_2, window_bounds = array<i64: 1, 64>}, {transform_indices = @transform_3, window_bounds = array<i64: 66, 64>}]} {
    %c0 = arith.constant 0 : index
    %c0_0 = arith.constant 0 : index
    %0 = vector.load %arg1[%c0, %c0_0] : memref<66x21xf32, #tpu.memory_space<vmem>>, vector<66x21xf32>
    %1 = arith.truncf %0 : vector<66x21xf32> to vector<66x21xbf16>
    %c0_1 = arith.constant 0 : index
    %c0_2 = arith.constant 0 : index
    %2 = vector.load %arg2[%c0_1, %c0_2] : memref<21x64xbf16, #tpu.memory_space<vmem>>, vector<21x64xbf16>
    %cst = arith.constant dense<0.000000e+00> : vector<66x64xf32>
    %3 = tpu.matmul %1, %2, %cst {dimension_numbers = #tpu.dot_dimension_numbers<[1], [0], [0], [1], [0, 0, 1, 1], [], []>} : vector<66x21xbf16>, vector<21x64xbf16>, vector<66x64xf32> -> vector<66x64xf32>
    %c0_3 = arith.constant 0 : index
    %c0_4 = arith.constant 0 : index
    %4 = vector.load %arg3[%c0_3, %c0_4] : memref<1x64xf32, #tpu.memory_space<vmem>>, vector<1x64xf32>
    %5 = vector.broadcast %4 : vector<1x64xf32> to vector<66x64xf32>
    %6 = arith.addf %3, %5 : vector<66x64xf32>
    %7 = arith.negf %6 : vector<66x64xf32>
    %8 = math.exp %7 : vector<66x64xf32>
    %cst_5 = arith.constant 1.000000e+00 : f32
    %9 = vector.broadcast %cst_5 : f32 to vector<66x64xf32>
    %10 = arith.addf %9, %8 : vector<66x64xf32>
    %11 = arith.divf %9, %10 : vector<66x64xf32>
    %12 = arith.mulf %6, %11 : vector<66x64xf32>
    %c0_6 = arith.constant 0 : index
    %c0_7 = arith.constant 0 : index
    %13 = vector.load %arg4[%c0_6, %c0_7] : memref<66x64xf32, #tpu.memory_space<vmem>>, vector<66x64xf32>
    tpu.vector_store %arg4[%c0_6, %c0_7], %12 {strides = array<i32>} : memref<66x64xf32, #tpu.memory_space<vmem>>, vector<66x64xf32>,
    return
  }
  func.func @transform_0(%arg0: i32) -> (i32, i32) {
    %c0_i32 = arith.constant 0 : i32
    %c0_i32_0 = arith.constant 0 : i32
    return %arg0, %c0_i32 : i32, i32
  }
  func.func @transform_1(%arg0: i32) -> (i32, i32) {
    %c0_i32 = arith.constant 0 : i32
    %c0_i32_0 = arith.constant 0 : i32
    %c0_i32_1 = arith.constant 0 : i32
    return %c0_i32, %c0_i32_0 : i32, i32
  }
  func.func @transform_2(%arg0: i32) -> (i32, i32) {
    %c0_i32 = arith.constant 0 : i32
    %c0_i32_0 = arith.constant 0 : i32
    %c0_i32_1 = arith.constant 0 : i32
    return %c0_i32, %c0_i32_0 : i32, i32
  }
  func.func @transform_3(%arg0: i32) -> (i32, i32) {
    %c0_i32 = arith.constant 0 : i32
    %c0_i32_0 = arith.constant 0 : i32
    return %arg0, %c0_i32 : i32, i32
  }
}

module attributes {stable_mosaic.version = 11 : i64} {
  func.func @_linear_kernel(%arg0: i32, %arg1: memref<30x320xf32, #tpu.memory_space<vmem>>, %arg2: memref<320x128xbf16, #tpu.memory_space<vmem>>, %arg3: memref<1x128xf32, #tpu.memory_space<vmem>>, %arg4: memref<30x128xf32, #tpu.memory_space<vmem>>) attributes {dimension_semantics = [#tpu.dimension_semantics<parallel>], iteration_bounds = array<i64: 1>, scalar_prefetch = 0 : i64, scratch_operands = 0 : i64, tpu.core_type = #tpu.core_type<tc>, window_params = [{transform_indices = @transform_0, window_bounds = array<i64: 30, 320>}, {pipeline_mode = #tpu.pipeline_mode<synchronous>, transform_indices = @transform_1, window_bounds = array<i64: 320, 128>}, {pipeline_mode = #tpu.pipeline_mode<synchronous>, transform_indices = @transform_2, window_bounds = array<i64: 1, 128>}, {transform_indices = @transform_3, window_bounds = array<i64: 30, 128>}]} {
    %c0 = arith.constant 0 : index
    %c0_0 = arith.constant 0 : index
    %0 = vector.load %arg1[%c0, %c0_0] : memref<30x320xf32, #tpu.memory_space<vmem>>, vector<30x320xf32>
    %1 = arith.truncf %0 : vector<30x320xf32> to vector<30x320xbf16>
    %c0_1 = arith.constant 0 : index
    %c0_2 = arith.constant 0 : index
    %2 = vector.load %arg2[%c0_1, %c0_2] : memref<320x128xbf16, #tpu.memory_space<vmem>>, vector<320x128xbf16>
    %cst = arith.constant dense<0.000000e+00> : vector<30x128xf32>
    %3 = tpu.matmul %1, %2, %cst {dimension_numbers = #tpu.dot_dimension_numbers<[1], [0], [0], [1], [0, 0, 1, 1], [], []>} : vector<30x320xbf16>, vector<320x128xbf16>, vector<30x128xf32> -> vector<30x128xf32>
    %c0_3 = arith.constant 0 : index
    %c0_4 = arith.constant 0 : index
    %4 = vector.load %arg3[%c0_3, %c0_4] : memref<1x128xf32, #tpu.memory_space<vmem>>, vector<1x128xf32>
    %5 = vector.broadcast %4 : vector<1x128xf32> to vector<30x128xf32>
    %6 = arith.addf %3, %5 : vector<30x128xf32>
    %c0_5 = arith.constant 0 : index
    %c0_6 = arith.constant 0 : index
    %7 = vector.load %arg4[%c0_5, %c0_6] : memref<30x128xf32, #tpu.memory_space<vmem>>, vector<30x128xf32>
    tpu.vector_store %arg4[%c0_5, %c0_6], %6 {strides = array<i32>} : memref<30x128xf32, #tpu.memory_space<vmem>>, vector<30x128xf32>,
    return
  }
  func.func @transform_0(%arg0: i32) -> (i32, i32) {
    %c0_i32 = arith.constant 0 : i32
    %c0_i32_0 = arith.constant 0 : i32
    return %arg0, %c0_i32 : i32, i32
  }
  func.func @transform_1(%arg0: i32) -> (i32, i32) {
    %c0_i32 = arith.constant 0 : i32
    %c0_i32_0 = arith.constant 0 : i32
    %c0_i32_1 = arith.constant 0 : i32
    return %c0_i32, %c0_i32_0 : i32, i32
  }
  func.func @transform_2(%arg0: i32) -> (i32, i32) {
    %c0_i32 = arith.constant 0 : i32
    %c0_i32_0 = arith.constant 0 : i32
    %c0_i32_1 = arith.constant 0 : i32
    return %c0_i32, %c0_i32_0 : i32, i32
  }
  func.func @transform_3(%arg0: i32) -> (i32, i32) {
    %c0_i32 = arith.constant 0 : i32
    %c0_i32_0 = arith.constant 0 : i32
    return %arg0, %c0_i32 : i32, i32
  }
}

module attributes {stable_mosaic.version = 11 : i64} {
  func.func @_linear_kernel(%arg0: i32, %arg1: memref<32x128xf32, #tpu.memory_space<vmem>>, %arg2: memref<128x384xbf16, #tpu.memory_space<vmem>>, %arg3: memref<1x384xf32, #tpu.memory_space<vmem>>, %arg4: memref<32x384xbf16, #tpu.memory_space<vmem>>) attributes {dimension_semantics = [#tpu.dimension_semantics<parallel>], iteration_bounds = array<i64: 1>, scalar_prefetch = 0 : i64, scratch_operands = 0 : i64, tpu.core_type = #tpu.core_type<tc>, window_params = [{transform_indices = @transform_0, window_bounds = array<i64: 32, 128>}, {pipeline_mode = #tpu.pipeline_mode<synchronous>, transform_indices = @transform_1, window_bounds = array<i64: 128, 384>}, {pipeline_mode = #tpu.pipeline_mode<synchronous>, transform_indices = @transform_2, window_bounds = array<i64: 1, 384>}, {transform_indices = @transform_3, window_bounds = array<i64: 32, 384>}]} {
    %c0 = arith.constant 0 : index
    %c0_0 = arith.constant 0 : index
    %0 = vector.load %arg1[%c0, %c0_0] : memref<32x128xf32, #tpu.memory_space<vmem>>, vector<32x128xf32>
    %1 = arith.truncf %0 : vector<32x128xf32> to vector<32x128xbf16>
    %c0_1 = arith.constant 0 : index
    %c0_2 = arith.constant 0 : index
    %2 = vector.load %arg2[%c0_1, %c0_2] : memref<128x384xbf16, #tpu.memory_space<vmem>>, vector<128x384xbf16>
    %cst = arith.constant dense<0.000000e+00> : vector<32x384xf32>
    %3 = tpu.matmul %1, %2, %cst {dimension_numbers = #tpu.dot_dimension_numbers<[1], [0], [0], [1], [0, 0, 1, 1], [], []>} : vector<32x128xbf16>, vector<128x384xbf16>, vector<32x384xf32> -> vector<32x384xf32>
    %c0_3 = arith.constant 0 : index
    %c0_4 = arith.constant 0 : index
    %4 = vector.load %arg3[%c0_3, %c0_4] : memref<1x384xf32, #tpu.memory_space<vmem>>, vector<1x384xf32>
    %5 = vector.broadcast %4 : vector<1x384xf32> to vector<32x384xf32>
    %6 = arith.addf %3, %5 : vector<32x384xf32>
    %7 = arith.truncf %6 : vector<32x384xf32> to vector<32x384xbf16>
    %c0_5 = arith.constant 0 : index
    %c0_6 = arith.constant 0 : index
    %8 = vector.load %arg4[%c0_5, %c0_6] : memref<32x384xbf16, #tpu.memory_space<vmem>>, vector<32x384xbf16>
    tpu.vector_store %arg4[%c0_5, %c0_6], %7 {strides = array<i32>} : memref<32x384xbf16, #tpu.memory_space<vmem>>, vector<32x384xbf16>,
    return
  }
  func.func @transform_0(%arg0: i32) -> (i32, i32) {
    %c0_i32 = arith.constant 0 : i32
    %c0_i32_0 = arith.constant 0 : i32
    return %arg0, %c0_i32 : i32, i32
  }
  func.func @transform_1(%arg0: i32) -> (i32, i32) {
    %c0_i32 = arith.constant 0 : i32
    %c0_i32_0 = arith.constant 0 : i32
    %c0_i32_1 = arith.constant 0 : i32
    return %c0_i32, %c0_i32_0 : i32, i32
  }
  func.func @transform_2(%arg0: i32) -> (i32, i32) {
    %c0_i32 = arith.constant 0 : i32
    %c0_i32_0 = arith.constant 0 : i32
    %c0_i32_1 = arith.constant 0 : i32
    return %c0_i32, %c0_i32_0 : i32, i32
  }
  func.func @transform_3(%arg0: i32) -> (i32, i32) {
    %c0_i32 = arith.constant 0 : i32
    %c0_i32_0 = arith.constant 0 : i32
    return %arg0, %c0_i32 : i32, i32
  }
}

module attributes {stable_mosaic.version = 11 : i64} {
  func.func @_attention_kernel(%arg0: i32, %arg1: memref<1x16x384xbf16, #tpu.memory_space<vmem>>, %arg2: memref<1x16x128xbf16, #tpu.memory_space<vmem>>) attributes {dimension_semantics = [#tpu.dimension_semantics<parallel>], iteration_bounds = array<i64: 2>, scalar_prefetch = 0 : i64, scratch_operands = 0 : i64, tpu.core_type = #tpu.core_type<tc>, window_params = [{transform_indices = @transform_0, window_bounds = array<i64: 1, 16, 384>}, {transform_indices = @transform_1, window_bounds = array<i64: 1, 16, 128>}]} {
    %c0 = arith.constant 0 : index
    %c0_0 = arith.constant 0 : index
    %c0_1 = arith.constant 0 : index
    %0 = vector.load %arg1[%c0, %c0_0, %c0_1] : memref<1x16x384xbf16, #tpu.memory_space<vmem>>, vector<1x16x384xbf16>
    %1 = vector.shape_cast %0 : vector<1x16x384xbf16> to vector<16x384xbf16>
    %2 = vector.extract_strided_slice %1 {offsets = [0, 0], sizes = [16, 64], strides = [1, 1]} : vector<16x384xbf16> to vector<16x64xbf16>
    %3 = vector.extract_strided_slice %1 {offsets = [0, 128], sizes = [16, 64], strides = [1, 1]} : vector<16x384xbf16> to vector<16x64xbf16>
    %4 = vector.extract_strided_slice %1 {offsets = [0, 256], sizes = [16, 64], strides = [1, 1]} : vector<16x384xbf16> to vector<16x64xbf16>
    %cst = arith.constant dense<0.000000e+00> : vector<16x16xf32>
    %5 = tpu.matmul %2, %3, %cst {dimension_numbers = #tpu.dot_dimension_numbers<[1], [1], [0], [0], [0, 0, 1, 0], [], []>} : vector<16x64xbf16>, vector<16x64xbf16>, vector<16x16xf32> -> vector<16x16xf32>
    %cst_2 = arith.constant dense<0xFF800000> : vector<16xf32>
    %6 = vector.multi_reduction <maximumf>, %5, %cst_2 [1] : vector<16x16xf32> to vector<16xf32>
    %7 = vector.shape_cast %6 : vector<16xf32> to vector<16x1xf32>
    %8 = vector.broadcast %7 : vector<16x1xf32> to vector<16x16xf32>
    %9 = arith.subf %5, %8 : vector<16x16xf32>
    %10 = math.exp %9 : vector<16x16xf32>
    %cst_3 = arith.constant dense<0.000000e+00> : vector<16xf32>
    %11 = vector.multi_reduction <add>, %10, %cst_3 [1] : vector<16x16xf32> to vector<16xf32>
    %12 = vector.shape_cast %11 : vector<16xf32> to vector<16x1xf32>
    %13 = tpu.reciprocal %12 {approx = true} : vector<16x1xf32> -> vector<16x1xf32>
    %14 = vector.broadcast %13 : vector<16x1xf32> to vector<16x16xf32>
    %15 = arith.mulf %10, %14 : vector<16x16xf32>
    %16 = arith.truncf %15 : vector<16x16xf32> to vector<16x16xbf16>
    %cst_4 = arith.constant dense<0.000000e+00> : vector<16x64xf32>
    %17 = tpu.matmul %16, %4, %cst_4 {dimension_numbers = #tpu.dot_dimension_numbers<[1], [0], [0], [1], [0, 0, 1, 1], [], []>} : vector<16x16xbf16>, vector<16x64xbf16>, vector<16x64xf32> -> vector<16x64xf32>
    %18 = vector.extract_strided_slice %1 {offsets = [0, 64], sizes = [16, 64], strides = [1, 1]} : vector<16x384xbf16> to vector<16x64xbf16>
    %19 = vector.extract_strided_slice %1 {offsets = [0, 192], sizes = [16, 64], strides = [1, 1]} : vector<16x384xbf16> to vector<16x64xbf16>
    %20 = vector.extract_strided_slice %1 {offsets = [0, 320], sizes = [16, 64], strides = [1, 1]} : vector<16x384xbf16> to vector<16x64xbf16>
    %cst_5 = arith.constant dense<0.000000e+00> : vector<16x16xf32>
    %21 = tpu.matmul %18, %19, %cst_5 {dimension_numbers = #tpu.dot_dimension_numbers<[1], [1], [0], [0], [0, 0, 1, 0], [], []>} : vector<16x64xbf16>, vector<16x64xbf16>, vector<16x16xf32> -> vector<16x16xf32>
    %cst_6 = arith.constant dense<0xFF800000> : vector<16xf32>
    %22 = vector.multi_reduction <maximumf>, %21, %cst_6 [1] : vector<16x16xf32> to vector<16xf32>
    %23 = vector.shape_cast %22 : vector<16xf32> to vector<16x1xf32>
    %24 = vector.broadcast %23 : vector<16x1xf32> to vector<16x16xf32>
    %25 = arith.subf %21, %24 : vector<16x16xf32>
    %26 = math.exp %25 : vector<16x16xf32>
    %cst_7 = arith.constant dense<0.000000e+00> : vector<16xf32>
    %27 = vector.multi_reduction <add>, %26, %cst_7 [1] : vector<16x16xf32> to vector<16xf32>
    %28 = vector.shape_cast %27 : vector<16xf32> to vector<16x1xf32>
    %29 = tpu.reciprocal %28 {approx = true} : vector<16x1xf32> -> vector<16x1xf32>
    %30 = vector.broadcast %29 : vector<16x1xf32> to vector<16x16xf32>
    %31 = arith.mulf %26, %30 : vector<16x16xf32>
    %32 = arith.truncf %31 : vector<16x16xf32> to vector<16x16xbf16>
    %cst_8 = arith.constant dense<0.000000e+00> : vector<16x64xf32>
    %33 = tpu.matmul %32, %20, %cst_8 {dimension_numbers = #tpu.dot_dimension_numbers<[1], [0], [0], [1], [0, 0, 1, 1], [], []>} : vector<16x16xbf16>, vector<16x64xbf16>, vector<16x64xf32> -> vector<16x64xf32>
    %34 = tpu.concatenate %17, %33 in 1 : vector<16x64xf32>, vector<16x64xf32> -> vector<16x128xf32>
    %35 = arith.truncf %34 : vector<16x128xf32> to vector<16x128xbf16>
    %c0_9 = arith.constant 0 : index
    %c0_10 = arith.constant 0 : index
    %c0_11 = arith.constant 0 : index
    %36 = vector.load %arg2[%c0_9, %c0_10, %c0_11] : memref<1x16x128xbf16, #tpu.memory_space<vmem>>, vector<1x16x128xbf16>
    %37 = vector.shape_cast %36 : vector<1x16x128xbf16> to vector<16x128xbf16>
    %38 = vector.shape_cast %35 : vector<16x128xbf16> to vector<1x16x128xbf16>
    tpu.vector_store %arg2[%c0_9, %c0_10, %c0_11], %38 {strides = array<i32>} : memref<1x16x128xbf16, #tpu.memory_space<vmem>>, vector<1x16x128xbf16>,
    return
  }
  func.func @transform_0(%arg0: i32) -> (i32, i32, i32) {
    %c0_i32 = arith.constant 0 : i32
    %c0_i32_0 = arith.constant 0 : i32
    %c0_i32_1 = arith.constant 0 : i32
    return %arg0, %c0_i32, %c0_i32_0 : i32, i32, i32
  }
  func.func @transform_1(%arg0: i32) -> (i32, i32, i32) {
    %c0_i32 = arith.constant 0 : i32
    %c0_i32_0 = arith.constant 0 : i32
    %c0_i32_1 = arith.constant 0 : i32
    return %arg0, %c0_i32, %c0_i32_0 : i32, i32, i32
  }
}

module attributes {stable_mosaic.version = 11 : i64} {
  func.func @_ffn_residual_ln_kernel(%arg0: i32, %arg1: memref<32x128xf32, #tpu.memory_space<vmem>>, %arg2: memref<128x2048xbf16, #tpu.memory_space<vmem>>, %arg3: memref<1x2048xf32, #tpu.memory_space<vmem>>, %arg4: memref<2048x128xbf16, #tpu.memory_space<vmem>>, %arg5: memref<1x128xf32, #tpu.memory_space<vmem>>, %arg6: memref<1x128xf32, #tpu.memory_space<vmem>>, %arg7: memref<1x128xf32, #tpu.memory_space<vmem>>, %arg8: memref<32x128xf32, #tpu.memory_space<vmem>>) attributes {dimension_semantics = [#tpu.dimension_semantics<parallel>], iteration_bounds = array<i64: 1>, scalar_prefetch = 0 : i64, scratch_operands = 0 : i64, tpu.core_type = #tpu.core_type<tc>, window_params = [{transform_indices = @transform_0, window_bounds = array<i64: 32, 128>}, {pipeline_mode = #tpu.pipeline_mode<synchronous>, transform_indices = @transform_1, window_bounds = array<i64: 128, 2048>}, {pipeline_mode = #tpu.pipeline_mode<synchronous>, transform_indices = @transform_2, window_bounds = array<i64: 1, 2048>}, {pipeline_mode = #tpu.pipeline_mode<synchronous>, transform_indices = @transform_3, window_bounds = array<i64: 2048, 128>}, {pipeline_mode = #tpu.pipeline_mode<synchronous>, transform_indices = @transform_4, window_bounds = array<i64: 1, 128>}, {pipeline_mode = #tpu.pipeline_mode<synchronous>, transform_indices = @transform_5, window_bounds = array<i64: 1, 128>}, {pipeline_mode = #tpu.pipeline_mode<synchronous>, transform_indices = @transform_6, window_bounds = array<i64: 1, 128>}, {transform_indices = @transform_7, window_bounds = array<i64: 32, 128>}]} {
    %c0 = arith.constant 0 : index
    %c0_0 = arith.constant 0 : index
    %0 = vector.load %arg1[%c0, %c0_0] : memref<32x128xf32, #tpu.memory_space<vmem>>, vector<32x128xf32>
    %1 = arith.truncf %0 : vector<32x128xf32> to vector<32x128xbf16>
    %c0_1 = arith.constant 0 : index
    %c0_2 = arith.constant 0 : index
    %2 = vector.load %arg2[%c0_1, %c0_2] : memref<128x2048xbf16, #tpu.memory_space<vmem>>, vector<128x2048xbf16>
    %cst = arith.constant dense<0.000000e+00> : vector<32x2048xf32>
    %3 = tpu.matmul %1, %2, %cst {dimension_numbers = #tpu.dot_dimension_numbers<[1], [0], [0], [1], [0, 0, 1, 1], [], []>} : vector<32x128xbf16>, vector<128x2048xbf16>, vector<32x2048xf32> -> vector<32x2048xf32>
    %c0_3 = arith.constant 0 : index
    %c0_4 = arith.constant 0 : index
    %4 = vector.load %arg3[%c0_3, %c0_4] : memref<1x2048xf32, #tpu.memory_space<vmem>>, vector<1x2048xf32>
    %5 = vector.broadcast %4 : vector<1x2048xf32> to vector<32x2048xf32>
    %6 = arith.addf %3, %5 : vector<32x2048xf32>
    %cst_5 = arith.constant 5.000000e-01 : f32
    %7 = vector.broadcast %cst_5 : f32 to vector<32x2048xf32>
    %8 = arith.mulf %7, %6 : vector<32x2048xf32>
    %cst_6 = arith.constant 4.471500e-02 : f32
    %9 = vector.broadcast %cst_6 : f32 to vector<32x2048xf32>
    %10 = arith.mulf %9, %6 : vector<32x2048xf32>
    %11 = arith.mulf %10, %6 : vector<32x2048xf32>
    %12 = arith.mulf %11, %6 : vector<32x2048xf32>
    %13 = arith.addf %6, %12 : vector<32x2048xf32>
    %cst_7 = arith.constant 0.797884583 : f32
    %14 = vector.broadcast %cst_7 : f32 to vector<32x2048xf32>
    %15 = arith.mulf %14, %13 : vector<32x2048xf32>
    %16 = math.tanh %15 : vector<32x2048xf32>
    %cst_8 = arith.constant 1.000000e+00 : f32
    %17 = vector.broadcast %cst_8 : f32 to vector<32x2048xf32>
    %18 = arith.addf %17, %16 : vector<32x2048xf32>
    %19 = arith.mulf %8, %18 : vector<32x2048xf32>
    %20 = arith.truncf %19 : vector<32x2048xf32> to vector<32x2048xbf16>
    %c0_9 = arith.constant 0 : index
    %c0_10 = arith.constant 0 : index
    %21 = vector.load %arg4[%c0_9, %c0_10] : memref<2048x128xbf16, #tpu.memory_space<vmem>>, vector<2048x128xbf16>
    %cst_11 = arith.constant dense<0.000000e+00> : vector<32x128xf32>
    %22 = tpu.matmul %20, %21, %cst_11 {dimension_numbers = #tpu.dot_dimension_numbers<[1], [0], [0], [1], [0, 0, 1, 1], [], []>} : vector<32x2048xbf16>, vector<2048x128xbf16>, vector<32x128xf32> -> vector<32x128xf32>
    %23 = arith.addf %0, %22 : vector<32x128xf32>
    %c0_12 = arith.constant 0 : index
    %c0_13 = arith.constant 0 : index
    %24 = vector.load %arg5[%c0_12, %c0_13] : memref<1x128xf32, #tpu.memory_space<vmem>>, vector<1x128xf32>
    %25 = vector.broadcast %24 : vector<1x128xf32> to vector<32x128xf32>
    %26 = arith.addf %23, %25 : vector<32x128xf32>
    %c0_14 = arith.constant 0 : index
    %c0_15 = arith.constant 0 : index
    %27 = vector.load %arg6[%c0_14, %c0_15] : memref<1x128xf32, #tpu.memory_space<vmem>>, vector<1x128xf32>
    %c0_16 = arith.constant 0 : index
    %c0_17 = arith.constant 0 : index
    %28 = vector.load %arg7[%c0_16, %c0_17] : memref<1x128xf32, #tpu.memory_space<vmem>>, vector<1x128xf32>
    %cst_18 = arith.constant dense<0.000000e+00> : vector<32xf32>
    %29 = vector.multi_reduction <add>, %26, %cst_18 [1] : vector<32x128xf32> to vector<32xf32>
    %30 = vector.shape_cast %29 : vector<32xf32> to vector<32x1xf32>
    %cst_19 = arith.constant 1.280000e+02 : f32
    %31 = vector.broadcast %cst_19 : f32 to vector<32x1xf32>
    %32 = arith.divf %30, %31 : vector<32x1xf32>
    %33 = vector.broadcast %32 : vector<32x1xf32> to vector<32x128xf32>
    %34 = arith.subf %26, %33 : vector<32x128xf32>
    %35 = arith.mulf %34, %34 : vector<32x128xf32>
    %cst_20 = arith.constant dense<0.000000e+00> : vector<32xf32>
    %36 = vector.multi_reduction <add>, %35, %cst_20 [1] : vector<32x128xf32> to vector<32xf32>
    %37 = vector.shape_cast %36 : vector<32xf32> to vector<32x1xf32>
    %cst_21 = arith.constant 1.280000e+02 : f32
    %38 = vector.broadcast %cst_21 : f32 to vector<32x1xf32>
    %39 = arith.divf %37, %38 : vector<32x1xf32>
    %40 = vector.broadcast %32 : vector<32x1xf32> to vector<32x128xf32>
    %41 = arith.subf %26, %40 : vector<32x128xf32>
    %cst_22 = arith.constant 9.99999974E-6 : f32
    %42 = vector.broadcast %cst_22 : f32 to vector<32x1xf32>
    %43 = arith.addf %39, %42 : vector<32x1xf32>
    %44 = math.rsqrt %43 : vector<32x1xf32>
    %45 = vector.broadcast %44 : vector<32x1xf32> to vector<32x128xf32>
    %46 = arith.mulf %41, %45 : vector<32x128xf32>
    %47 = vector.broadcast %27 : vector<1x128xf32> to vector<32x128xf32>
    %48 = arith.mulf %46, %47 : vector<32x128xf32>
    %49 = vector.broadcast %28 : vector<1x128xf32> to vector<32x128xf32>
    %50 = arith.addf %48, %49 : vector<32x128xf32>
    %c0_23 = arith.constant 0 : index
    %c0_24 = arith.constant 0 : index
    %51 = vector.load %arg8[%c0_23, %c0_24] : memref<32x128xf32, #tpu.memory_space<vmem>>, vector<32x128xf32>
    tpu.vector_store %arg8[%c0_23, %c0_24], %50 {strides = array<i32>} : memref<32x128xf32, #tpu.memory_space<vmem>>, vector<32x128xf32>,
    return
  }
  func.func @transform_0(%arg0: i32) -> (i32, i32) {
    %c0_i32 = arith.constant 0 : i32
    %c0_i32_0 = arith.constant 0 : i32
    return %arg0, %c0_i32 : i32, i32
  }
  func.func @transform_1(%arg0: i32) -> (i32, i32) {
    %c0_i32 = arith.constant 0 : i32
    %c0_i32_0 = arith.constant 0 : i32
    %c0_i32_1 = arith.constant 0 : i32
    return %c0_i32, %c0_i32_0 : i32, i32
  }
  func.func @transform_2(%arg0: i32) -> (i32, i32) {
    %c0_i32 = arith.constant 0 : i32
    %c0_i32_0 = arith.constant 0 : i32
    %c0_i32_1 = arith.constant 0 : i32
    return %c0_i32, %c0_i32_0 : i32, i32
  }
  func.func @transform_3(%arg0: i32) -> (i32, i32) {
    %c0_i32 = arith.constant 0 : i32
    %c0_i32_0 = arith.constant 0 : i32
    %c0_i32_1 = arith.constant 0 : i32
    return %c0_i32, %c0_i32_0 : i32, i32
  }
  func.func @transform_4(%arg0: i32) -> (i32, i32) {
    %c0_i32 = arith.constant 0 : i32
    %c0_i32_0 = arith.constant 0 : i32
    %c0_i32_1 = arith.constant 0 : i32
    return %c0_i32, %c0_i32_0 : i32, i32
  }
  func.func @transform_5(%arg0: i32) -> (i32, i32) {
    %c0_i32 = arith.constant 0 : i32
    %c0_i32_0 = arith.constant 0 : i32
    %c0_i32_1 = arith.constant 0 : i32
    return %c0_i32, %c0_i32_0 : i32, i32
  }
  func.func @transform_6(%arg0: i32) -> (i32, i32) {
    %c0_i32 = arith.constant 0 : i32
    %c0_i32_0 = arith.constant 0 : i32
    %c0_i32_1 = arith.constant 0 : i32
    return %c0_i32, %c0_i32_0 : i32, i32
  }
  func.func @transform_7(%arg0: i32) -> (i32, i32) {
    %c0_i32 = arith.constant 0 : i32
    %c0_i32_0 = arith.constant 0 : i32
    return %arg0, %c0_i32 : i32, i32
  }
}

module attributes {stable_mosaic.version = 11 : i64} {
  func.func @_proj_residual_ln_kernel(%arg0: i32, %arg1: memref<32x128xf32, #tpu.memory_space<vmem>>, %arg2: memref<32x128xbf16, #tpu.memory_space<vmem>>, %arg3: memref<128x128xbf16, #tpu.memory_space<vmem>>, %arg4: memref<1x128xf32, #tpu.memory_space<vmem>>, %arg5: memref<1x128xf32, #tpu.memory_space<vmem>>, %arg6: memref<1x128xf32, #tpu.memory_space<vmem>>, %arg7: memref<32x128xf32, #tpu.memory_space<vmem>>) attributes {dimension_semantics = [#tpu.dimension_semantics<parallel>], iteration_bounds = array<i64: 1>, scalar_prefetch = 0 : i64, scratch_operands = 0 : i64, tpu.core_type = #tpu.core_type<tc>, window_params = [{transform_indices = @transform_0, window_bounds = array<i64: 32, 128>}, {transform_indices = @transform_1, window_bounds = array<i64: 32, 128>}, {pipeline_mode = #tpu.pipeline_mode<synchronous>, transform_indices = @transform_2, window_bounds = array<i64: 128, 128>}, {pipeline_mode = #tpu.pipeline_mode<synchronous>, transform_indices = @transform_3, window_bounds = array<i64: 1, 128>}, {pipeline_mode = #tpu.pipeline_mode<synchronous>, transform_indices = @transform_4, window_bounds = array<i64: 1, 128>}, {pipeline_mode = #tpu.pipeline_mode<synchronous>, transform_indices = @transform_5, window_bounds = array<i64: 1, 128>}, {transform_indices = @transform_6, window_bounds = array<i64: 32, 128>}]} {
    %c0 = arith.constant 0 : index
    %c0_0 = arith.constant 0 : index
    %0 = vector.load %arg1[%c0, %c0_0] : memref<32x128xf32, #tpu.memory_space<vmem>>, vector<32x128xf32>
    %c0_1 = arith.constant 0 : index
    %c0_2 = arith.constant 0 : index
    %1 = vector.load %arg2[%c0_1, %c0_2] : memref<32x128xbf16, #tpu.memory_space<vmem>>, vector<32x128xbf16>
    %c0_3 = arith.constant 0 : index
    %c0_4 = arith.constant 0 : index
    %2 = vector.load %arg3[%c0_3, %c0_4] : memref<128x128xbf16, #tpu.memory_space<vmem>>, vector<128x128xbf16>
    %cst = arith.constant dense<0.000000e+00> : vector<32x128xf32>
    %3 = tpu.matmul %1, %2, %cst {dimension_numbers = #tpu.dot_dimension_numbers<[1], [0], [0], [1], [0, 0, 1, 1], [], []>} : vector<32x128xbf16>, vector<128x128xbf16>, vector<32x128xf32> -> vector<32x128xf32>
    %4 = arith.addf %0, %3 : vector<32x128xf32>
    %c0_5 = arith.constant 0 : index
    %c0_6 = arith.constant 0 : index
    %5 = vector.load %arg4[%c0_5, %c0_6] : memref<1x128xf32, #tpu.memory_space<vmem>>, vector<1x128xf32>
    %6 = vector.broadcast %5 : vector<1x128xf32> to vector<32x128xf32>
    %7 = arith.addf %4, %6 : vector<32x128xf32>
    %c0_7 = arith.constant 0 : index
    %c0_8 = arith.constant 0 : index
    %8 = vector.load %arg5[%c0_7, %c0_8] : memref<1x128xf32, #tpu.memory_space<vmem>>, vector<1x128xf32>
    %c0_9 = arith.constant 0 : index
    %c0_10 = arith.constant 0 : index
    %9 = vector.load %arg6[%c0_9, %c0_10] : memref<1x128xf32, #tpu.memory_space<vmem>>, vector<1x128xf32>
    %cst_11 = arith.constant dense<0.000000e+00> : vector<32xf32>
    %10 = vector.multi_reduction <add>, %7, %cst_11 [1] : vector<32x128xf32> to vector<32xf32>
    %11 = vector.shape_cast %10 : vector<32xf32> to vector<32x1xf32>
    %cst_12 = arith.constant 1.280000e+02 : f32
    %12 = vector.broadcast %cst_12 : f32 to vector<32x1xf32>
    %13 = arith.divf %11, %12 : vector<32x1xf32>
    %14 = vector.broadcast %13 : vector<32x1xf32> to vector<32x128xf32>
    %15 = arith.subf %7, %14 : vector<32x128xf32>
    %16 = arith.mulf %15, %15 : vector<32x128xf32>
    %cst_13 = arith.constant dense<0.000000e+00> : vector<32xf32>
    %17 = vector.multi_reduction <add>, %16, %cst_13 [1] : vector<32x128xf32> to vector<32xf32>
    %18 = vector.shape_cast %17 : vector<32xf32> to vector<32x1xf32>
    %cst_14 = arith.constant 1.280000e+02 : f32
    %19 = vector.broadcast %cst_14 : f32 to vector<32x1xf32>
    %20 = arith.divf %18, %19 : vector<32x1xf32>
    %21 = vector.broadcast %13 : vector<32x1xf32> to vector<32x128xf32>
    %22 = arith.subf %7, %21 : vector<32x128xf32>
    %cst_15 = arith.constant 9.99999974E-6 : f32
    %23 = vector.broadcast %cst_15 : f32 to vector<32x1xf32>
    %24 = arith.addf %20, %23 : vector<32x1xf32>
    %25 = math.rsqrt %24 : vector<32x1xf32>
    %26 = vector.broadcast %25 : vector<32x1xf32> to vector<32x128xf32>
    %27 = arith.mulf %22, %26 : vector<32x128xf32>
    %28 = vector.broadcast %8 : vector<1x128xf32> to vector<32x128xf32>
    %29 = arith.mulf %27, %28 : vector<32x128xf32>
    %30 = vector.broadcast %9 : vector<1x128xf32> to vector<32x128xf32>
    %31 = arith.addf %29, %30 : vector<32x128xf32>
    %c0_16 = arith.constant 0 : index
    %c0_17 = arith.constant 0 : index
    %32 = vector.load %arg7[%c0_16, %c0_17] : memref<32x128xf32, #tpu.memory_space<vmem>>, vector<32x128xf32>
    tpu.vector_store %arg7[%c0_16, %c0_17], %31 {strides = array<i32>} : memref<32x128xf32, #tpu.memory_space<vmem>>, vector<32x128xf32>,
    return
  }
  func.func @transform_0(%arg0: i32) -> (i32, i32) {
    %c0_i32 = arith.constant 0 : i32
    %c0_i32_0 = arith.constant 0 : i32
    return %arg0, %c0_i32 : i32, i32
  }
  func.func @transform_1(%arg0: i32) -> (i32, i32) {
    %c0_i32 = arith.constant 0 : i32
    %c0_i32_0 = arith.constant 0 : i32
    return %arg0, %c0_i32 : i32, i32
  }
  func.func @transform_2(%arg0: i32) -> (i32, i32) {
    %c0_i32 = arith.constant 0 : i32
    %c0_i32_0 = arith.constant 0 : i32
    %c0_i32_1 = arith.constant 0 : i32
    return %c0_i32, %c0_i32_0 : i32, i32
  }
  func.func @transform_3(%arg0: i32) -> (i32, i32) {
    %c0_i32 = arith.constant 0 : i32
    %c0_i32_0 = arith.constant 0 : i32
    %c0_i32_1 = arith.constant 0 : i32
    return %c0_i32, %c0_i32_0 : i32, i32
  }
  func.func @transform_4(%arg0: i32) -> (i32, i32) {
    %c0_i32 = arith.constant 0 : i32
    %c0_i32_0 = arith.constant 0 : i32
    %c0_i32_1 = arith.constant 0 : i32
    return %c0_i32, %c0_i32_0 : i32, i32
  }
  func.func @transform_5(%arg0: i32) -> (i32, i32) {
    %c0_i32 = arith.constant 0 : i32
    %c0_i32_0 = arith.constant 0 : i32
    %c0_i32_1 = arith.constant 0 : i32
    return %c0_i32, %c0_i32_0 : i32, i32
  }
  func.func @transform_6(%arg0: i32) -> (i32, i32) {
    %c0_i32 = arith.constant 0 : i32
    %c0_i32_0 = arith.constant 0 : i32
    return %arg0, %c0_i32 : i32, i32
  }
}

module attributes {stable_mosaic.version = 11 : i64} {
  func.func @_ln_fc_kernel(%arg0: i32, %arg1: memref<2x128xf32, #tpu.memory_space<vmem>>, %arg2: memref<1x128xf32, #tpu.memory_space<vmem>>, %arg3: memref<1x128xf32, #tpu.memory_space<vmem>>, %arg4: memref<128x128xbf16, #tpu.memory_space<vmem>>, %arg5: memref<1x128xf32, #tpu.memory_space<vmem>>, %arg6: memref<2x128xf32, #tpu.memory_space<vmem>>) attributes {dimension_semantics = [#tpu.dimension_semantics<parallel>], iteration_bounds = array<i64: 1>, scalar_prefetch = 0 : i64, scratch_operands = 0 : i64, tpu.core_type = #tpu.core_type<tc>, window_params = [{transform_indices = @transform_0, window_bounds = array<i64: 2, 128>}, {pipeline_mode = #tpu.pipeline_mode<synchronous>, transform_indices = @transform_1, window_bounds = array<i64: 1, 128>}, {pipeline_mode = #tpu.pipeline_mode<synchronous>, transform_indices = @transform_2, window_bounds = array<i64: 1, 128>}, {pipeline_mode = #tpu.pipeline_mode<synchronous>, transform_indices = @transform_3, window_bounds = array<i64: 128, 128>}, {pipeline_mode = #tpu.pipeline_mode<synchronous>, transform_indices = @transform_4, window_bounds = array<i64: 1, 128>}, {transform_indices = @transform_5, window_bounds = array<i64: 2, 128>}]} {
    %c0 = arith.constant 0 : index
    %c0_0 = arith.constant 0 : index
    %0 = vector.load %arg1[%c0, %c0_0] : memref<2x128xf32, #tpu.memory_space<vmem>>, vector<2x128xf32>
    %c0_1 = arith.constant 0 : index
    %c0_2 = arith.constant 0 : index
    %1 = vector.load %arg2[%c0_1, %c0_2] : memref<1x128xf32, #tpu.memory_space<vmem>>, vector<1x128xf32>
    %c0_3 = arith.constant 0 : index
    %c0_4 = arith.constant 0 : index
    %2 = vector.load %arg3[%c0_3, %c0_4] : memref<1x128xf32, #tpu.memory_space<vmem>>, vector<1x128xf32>
    %cst = arith.constant dense<0.000000e+00> : vector<2xf32>
    %3 = vector.multi_reduction <add>, %0, %cst [1] : vector<2x128xf32> to vector<2xf32>
    %4 = vector.shape_cast %3 : vector<2xf32> to vector<2x1xf32>
    %cst_5 = arith.constant 1.280000e+02 : f32
    %5 = vector.broadcast %cst_5 : f32 to vector<2x1xf32>
    %6 = arith.divf %4, %5 : vector<2x1xf32>
    %7 = vector.broadcast %6 : vector<2x1xf32> to vector<2x128xf32>
    %8 = arith.subf %0, %7 : vector<2x128xf32>
    %9 = arith.mulf %8, %8 : vector<2x128xf32>
    %cst_6 = arith.constant dense<0.000000e+00> : vector<2xf32>
    %10 = vector.multi_reduction <add>, %9, %cst_6 [1] : vector<2x128xf32> to vector<2xf32>
    %11 = vector.shape_cast %10 : vector<2xf32> to vector<2x1xf32>
    %cst_7 = arith.constant 1.280000e+02 : f32
    %12 = vector.broadcast %cst_7 : f32 to vector<2x1xf32>
    %13 = arith.divf %11, %12 : vector<2x1xf32>
    %14 = vector.broadcast %6 : vector<2x1xf32> to vector<2x128xf32>
    %15 = arith.subf %0, %14 : vector<2x128xf32>
    %cst_8 = arith.constant 9.99999974E-6 : f32
    %16 = vector.broadcast %cst_8 : f32 to vector<2x1xf32>
    %17 = arith.addf %13, %16 : vector<2x1xf32>
    %18 = math.rsqrt %17 : vector<2x1xf32>
    %19 = vector.broadcast %18 : vector<2x1xf32> to vector<2x128xf32>
    %20 = arith.mulf %15, %19 : vector<2x128xf32>
    %21 = vector.broadcast %1 : vector<1x128xf32> to vector<2x128xf32>
    %22 = arith.mulf %20, %21 : vector<2x128xf32>
    %23 = vector.broadcast %2 : vector<1x128xf32> to vector<2x128xf32>
    %24 = arith.addf %22, %23 : vector<2x128xf32>
    %25 = arith.truncf %24 : vector<2x128xf32> to vector<2x128xbf16>
    %c0_9 = arith.constant 0 : index
    %c0_10 = arith.constant 0 : index
    %26 = vector.load %arg4[%c0_9, %c0_10] : memref<128x128xbf16, #tpu.memory_space<vmem>>, vector<128x128xbf16>
    %cst_11 = arith.constant dense<0.000000e+00> : vector<2x128xf32>
    %27 = tpu.matmul %25, %26, %cst_11 {dimension_numbers = #tpu.dot_dimension_numbers<[1], [0], [0], [1], [0, 0, 1, 1], [], []>} : vector<2x128xbf16>, vector<128x128xbf16>, vector<2x128xf32> -> vector<2x128xf32>
    %c0_12 = arith.constant 0 : index
    %c0_13 = arith.constant 0 : index
    %28 = vector.load %arg5[%c0_12, %c0_13] : memref<1x128xf32, #tpu.memory_space<vmem>>, vector<1x128xf32>
    %29 = vector.broadcast %28 : vector<1x128xf32> to vector<2x128xf32>
    %30 = arith.addf %27, %29 : vector<2x128xf32>
    %c0_14 = arith.constant 0 : index
    %c0_15 = arith.constant 0 : index
    %31 = vector.load %arg6[%c0_14, %c0_15] : memref<2x128xf32, #tpu.memory_space<vmem>>, vector<2x128xf32>
    tpu.vector_store %arg6[%c0_14, %c0_15], %30 {strides = array<i32>} : memref<2x128xf32, #tpu.memory_space<vmem>>, vector<2x128xf32>,
    return
  }
  func.func @transform_0(%arg0: i32) -> (i32, i32) {
    %c0_i32 = arith.constant 0 : i32
    %c0_i32_0 = arith.constant 0 : i32
    return %arg0, %c0_i32 : i32, i32
  }
  func.func @transform_1(%arg0: i32) -> (i32, i32) {
    %c0_i32 = arith.constant 0 : i32
    %c0_i32_0 = arith.constant 0 : i32
    %c0_i32_1 = arith.constant 0 : i32
    return %c0_i32, %c0_i32_0 : i32, i32
  }
  func.func @transform_2(%arg0: i32) -> (i32, i32) {
    %c0_i32 = arith.constant 0 : i32
    %c0_i32_0 = arith.constant 0 : i32
    %c0_i32_1 = arith.constant 0 : i32
    return %c0_i32, %c0_i32_0 : i32, i32
  }
  func.func @transform_3(%arg0: i32) -> (i32, i32) {
    %c0_i32 = arith.constant 0 : i32
    %c0_i32_0 = arith.constant 0 : i32
    %c0_i32_1 = arith.constant 0 : i32
    return %c0_i32, %c0_i32_0 : i32, i32
  }
  func.func @transform_4(%arg0: i32) -> (i32, i32) {
    %c0_i32 = arith.constant 0 : i32
    %c0_i32_0 = arith.constant 0 : i32
    %c0_i32_1 = arith.constant 0 : i32
    return %c0_i32, %c0_i32_0 : i32, i32
  }
  func.func @transform_5(%arg0: i32) -> (i32, i32) {
    %c0_i32 = arith.constant 0 : i32
    %c0_i32_0 = arith.constant 0 : i32
    return %arg0, %c0_i32 : i32, i32
  }
}

</mosaic_0001>

<llo_original>
// kernel: pallas_forward.11
$region0: #{pallas_forward.11}
  #allocation0 [shape = 'u32[]', space=smem, size = 0x4, offset = 0x4, fixed_abs, tag = 'smem constant byte address 0x4 - core index']
  #allocation1 [shape = 'u32[144,128]{1,0:T(1,128)}', space=vmem, size = 0x12000, scoped, tag = 'internal scratch']
  %s0 = inlined_call_operand.vmem [shape: f32[66,21], index: 0, kind: input, shape index: {}]
  %s1 = inlined_call_operand.vmem [shape: bf16[21,64], index: 1, kind: input, shape index: {}]
  %s2 = inlined_call_operand.vmem [shape: f32[1,64], index: 2, kind: input, shape index: {}]
  %s3 = inlined_call_operand.vmem [shape: f32[66,64], index: 3, kind: output, shape index: {}]
  %s4 = sld [smem:[#allocation0]]
  $region22: #{pallas_forward.11} parent=0
    _
  %s6 = ssub.s32 1, %s4
  %s7 = scalar_select 0, %s6, %s4
  // Predicated region
  $region2: #{pallas_forward.11} parent=0 // pred_check
    _
  $region3: #{pallas_forward.11} parent=0 // pred_check_branch
    %9 = sbr.rel (0) target = $region5
  $region4: #{pallas_forward.11} parent=0 // pred_region
    _
  $region5: #{pallas_forward.11} parent=0 // pred_fallthru
    _
  // Predicated region
  $region6: #{pallas_forward.11} parent=0 // pred_check
    _
  $region7: #{pallas_forward.11} parent=0 // pred_check_branch
    %11 = sbr.rel (0) target = $region9
  $region8: #{pallas_forward.11} parent=0 // pred_region
    _
  $region9: #{pallas_forward.11} parent=0 // pred_fallthru
    _
  // Predicated region
  $region10: #{pallas_forward.11} parent=0 // pred_check
    _
  $region11: #{pallas_forward.11} parent=0 // pred_check_branch
    %13 = sbr.rel (0) target = $region13
  $region12: #{pallas_forward.11} parent=0 // pred_region
    _
  $region13: #{pallas_forward.11} parent=0 // pred_fallthru
    _
  %v15 = vld [vmem:[%s0] sm:$0xff]
  %v16 = vld [vmem:[%s0 + $0x8] sm:$0xff]
  %v17 = vld [vmem:[%s0 + $0x10] sm:$0xff]
  %v18 = vld [vmem:[%s0 + $0x18] sm:$0xff]
  %v19 = vld [vmem:[%s0 + $0x20] sm:$0xff]
  %v20 = vld [vmem:[%s0 + $0x28] sm:$0xff]
  %v21 = vld [vmem:[%s0 + $0x30] sm:$0xff]
  %v22 = vld [vmem:[%s0 + $0x38] sm:$0xff]
  %v23 = vld [vmem:[%s0 + $0x40] sm:$0x3]
  %v24 = vpack.c.bf16 %v16, %v15
  %v25 = vpack.c.bf16 %v18, %v17
  %v26 = vpack.c.bf16 %v20, %v19
  %v27 = vpack.c.bf16 %v22, %v21
  %v28 = vpack.c.bf16 %v23, %v23
  %v29 = vld [vmem:[%s1] sm:$0xf]
  %v30 = vld [vmem:[%s1 + $0x4] sm:$0xf]
  %v31 = vld [vmem:[%s1 + $0x8] sm:$0x7]
  %v32 = vld [vmem:[%s2] sm:$0x1]
  %v34 = vlaneseq
  %v35 = vshrl.u32 %v34, 7
  %v36 = vsub.s32 0, %v35
  %v37 = vrot.slane %v32, %v36
  %v42 = vunpack.c.l.b16 %v29
  %v43 = vunpack.c.l.b16 %v30
  %v44 = vunpack.c.l.b16 %v31
  %v45 = vpack.c.b16 %v43, %v42
  %v46 = vpack.c.b16 %v44, %v44
  %vm48 = vcmask 171008
  %v50 = vsel %vm48, %v24, 0
  %v53 = vsel %vm48, %v25, 0
  %v56 = vsel %vm48, %v26, 0
  %v59 = vsel %vm48, %v27, 0
  %v62 = vsel %vm48, %v28, 0
  %vm64 = vcmask 1041408
  %vm65 = vcmask 1042432
  %v66 = vsel %vm64, 4294967295, 65535
  %v67 = vsel %vm65, %v66, 0
  %v69 = vand.u32 %v46, %v67
  %71 = vmatprep.subr.bf16.mxu0 0
  %72 = vmatpush1.bf16.msra.mxu0 %v45
  %73 = vmatprep.subr.bf16.mxu0 0
  %74 = vmatpush1.bf16.msra.mxu0 %v69
  %75 = vmatprep.subr.bf16.mxu0 0
  %76 = vmatpush1.bf16.msra.mxu0 0
  %77 = vmatprep.subr.bf16.mxu0 0
  %78 = vmatpush1.bf16.msra.mxu0 0
  %79 = vmatprep.subr.bf16.mxu0 0
  %80 = vmatpush1.bf16.msra.mxu0 0
  %81 = vmatprep.subr.bf16.mxu0 0
  %82 = vmatpush1.bf16.msra.mxu0 0
  %83 = vmatprep.subr.bf16.mxu0 0
  %84 = vmatpush1.bf16.msra.mxu0 0
  %85 = vmatprep.subr.bf16.mxu0 0
  %86 = vmatpush1.bf16.msra.mxu0 0
  %87 = vmatprep.subr.bf16.mxu0 0
  %88 = vmatpush1.bf16.msra.mxu0 0
  %89 = vmatprep.subr.bf16.mxu0 0
  %90 = vmatpush1.bf16.msra.mxu0 0
  %91 = vmatprep.subr.bf16.mxu0 0
  %92 = vmatpush1.bf16.msra.mxu0 0
  %93 = vmatprep.subr.bf16.mxu0 0
  %94 = vmatpush1.bf16.msra.mxu0 0
  %95 = vmatprep.subr.bf16.mxu0 0
  %96 = vmatpush1.bf16.msra.mxu0 0
  %97 = vmatprep.subr.bf16.mxu0 0
  %98 = vmatpush1.bf16.msra.mxu0 0
  %99 = vmatprep.subr.bf16.mxu0 0
  %100 = vmatpush1.bf16.msra.mxu0 0
  %101 = vmatprep.subr.bf16.mxu0 0
  %102 = vmatpush1.bf16.msra.mxu0 0
  %103 = vmatprep.mubr.bf16.mxu0 0
  %104 = vmatmul.mubr.bf16.gmra.mrb[0].mxu0 %v50
  %v105 = vpop.f32.mrb[0].mxu0
  %v106 = vadd.f32 %v37, %v105
  %v107 = vpop.f32.mrb[0].mxu0
  %v108 = vpop.f32.mrb[0].mxu0
  %v109 = vadd.f32 %v37, %v108
  %v110 = vpop.f32.mrb[0].mxu0
  %111 = vmatprep.mubr.bf16.mxu0 0
  %112 = vmatmul.mubr.bf16.gmra.mrb[0].mxu0 %v53
  %v113 = vpop.f32.mrb[0].mxu0
  %v114 = vadd.f32 %v37, %v113
  %v115 = vpop.f32.mrb[0].mxu0
  %v116 = vpop.f32.mrb[0].mxu0
  %v117 = vadd.f32 %v37, %v116
  %v118 = vpop.f32.mrb[0].mxu0
  %119 = vmatprep.mubr.bf16.mxu0 0
  %120 = vmatmul.mubr.bf16.gmra.mrb[0].mxu0 %v56
  %v121 = vpop.f32.mrb[0].mxu0
  %v122 = vadd.f32 %v37, %v121
  %v123 = vpop.f32.mrb[0].mxu0
  %v124 = vpop.f32.mrb[0].mxu0
  %v125 = vadd.f32 %v37, %v124
  %v126 = vpop.f32.mrb[0].mxu0
  %127 = vmatprep.mubr.bf16.mxu0 0
  %128 = vmatmul.mubr.bf16.gmra.mrb[0].mxu0 %v59
  %v129 = vpop.f32.mrb[0].mxu0
  %v130 = vadd.f32 %v37, %v129
  %v131 = vpop.f32.mrb[0].mxu0
  %v132 = vpop.f32.mrb[0].mxu0
  %v133 = vadd.f32 %v37, %v132
  %v134 = vpop.f32.mrb[0].mxu0
  %135 = vmatprep.mubr.bf16.mxu0 0
  %136 = vmatmul.mubr.bf16.gmra.mrb[0].mxu0 %v62
  %v137 = vpop.f32.mrb[0].mxu0
  %v138 = vadd.f32 %v37, %v137
  %v139 = vpop.f32.mrb[0].mxu0
  %v140 = vpop.f32.mrb[0].mxu0
  %v141 = vpop.f32.mrb[0].mxu0
  %142 = vdwg.mxu0
  %v143 = vxor.u32 %v106, 2147483648
  %v144 = vxor.u32 %v109, 2147483648
  %v145 = vxor.u32 %v114, 2147483648
  %v146 = vxor.u32 %v117, 2147483648
  %v147 = vxor.u32 %v122, 2147483648
  %v148 = vxor.u32 %v125, 2147483648
  %v149 = vxor.u32 %v130, 2147483648
  %v150 = vxor.u32 %v133, 2147483648
  %v151 = vxor.u32 %v138, 2147483648
  %v152 = vmul.f32 %v143, 1.442695
  %v153 = vpow.pop %v152
  %v154 = vmul.f32 %v144, 1.442695
  %v155 = vpow.pop %v154
  %v156 = vmul.f32 %v145, 1.442695
  %v157 = vpow.pop %v156
  %v158 = vmul.f32 %v146, 1.442695
  %v159 = vpow.pop %v158
  %v160 = vmul.f32 %v147, 1.442695
  %v161 = vpow.pop %v160
  %v162 = vmul.f32 %v148, 1.442695
  %v163 = vpow.pop %v162
  %v164 = vmul.f32 %v149, 1.442695
  %v165 = vpow.pop %v164
  %v166 = vmul.f32 %v150, 1.442695
  %v167 = vpow.pop %v166
  %v168 = vmul.f32 %v151, 1.442695
  %v169 = vpow.pop %v168
  %v170 = vadd.f32 %v153, 1.0
  %v171 = vadd.f32 %v155, 1.0
  %v172 = vadd.f32 %v157, 1.0
  %v173 = vadd.f32 %v159, 1.0
  %v174 = vadd.f32 %v161, 1.0
  %v175 = vadd.f32 %v163, 1.0
  %v176 = vadd.f32 %v165, 1.0
  %v177 = vadd.f32 %v167, 1.0
  %v178 = vadd.f32 %v169, 1.0
  %v179 = vrcp.pop %v170
  %v180 = vmul.f32 1.0, %v179
  %v181 = vrcp.pop %v171
  %v182 = vmul.f32 1.0, %v181
  %v183 = vrcp.pop %v172
  %v184 = vmul.f32 1.0, %v183
  %v185 = vrcp.pop %v173
  %v186 = vmul.f32 1.0, %v185
  %v187 = vrcp.pop %v174
  %v188 = vmul.f32 1.0, %v187
  %v189 = vrcp.pop %v175
  %v190 = vmul.f32 1.0, %v189
  %v191 = vrcp.pop %v176
  %v192 = vmul.f32 1.0, %v191
  %v193 = vrcp.pop %v177
  %v194 = vmul.f32 1.0, %v193
  %v195 = vrcp.pop %v178
  %v196 = vmul.f32 1.0, %v195
  %v197 = vmul.f32 %v106, %v180
  %v198 = vmul.f32 %v109, %v182
  %v199 = vmul.f32 %v114, %v184
  %v200 = vmul.f32 %v117, %v186
  %v201 = vmul.f32 %v122, %v188
  %v202 = vmul.f32 %v125, %v190
  %v203 = vmul.f32 %v130, %v192
  %v204 = vmul.f32 %v133, %v194
  %v205 = vmul.f32 %v138, %v196
  %vm206 = vcmask 523264
  %207 = vst.msk [vmem:[%s3] sm:$0xff] %vm206, %v197
  %208 = vst.msk [vmem:[%s3 + $0x8] sm:$0xff] %vm206, %v198
  %209 = vst.msk [vmem:[%s3 + $0x10] sm:$0xff] %vm206, %v199
  %210 = vst.msk [vmem:[%s3 + $0x18] sm:$0xff] %vm206, %v200
  %211 = vst.msk [vmem:[%s3 + $0x20] sm:$0xff] %vm206, %v201
  %212 = vst.msk [vmem:[%s3 + $0x28] sm:$0xff] %vm206, %v202
  %213 = vst.msk [vmem:[%s3 + $0x30] sm:$0xff] %vm206, %v203
  %214 = vst.msk [vmem:[%s3 + $0x38] sm:$0xff] %vm206, %v204
  %vm215 = vcmask 517120
  %216 = vst.msk [vmem:[%s3 + $0x40] sm:$0x3] %vm215, %v205
  // Predicated region
  $region14: #{pallas_forward.11} parent=0 // pred_check
    _
  $region15: #{pallas_forward.11} parent=0 // pred_check_branch
    %218 = sbr.rel (0) target = $region17
  $region16: #{pallas_forward.11} parent=0 // pred_region
    _
  $region17: #{pallas_forward.11} parent=0 // pred_fallthru
    _
  // Predicated region
  $region18: #{pallas_forward.11} parent=0 // pred_check
    _
  $region19: #{pallas_forward.11} parent=0 // pred_check_branch
    %220 = sbr.rel (0) target = $region21
  $region20: #{pallas_forward.11} parent=0 // pred_region
    _
  $region21: #{pallas_forward.11} parent=0 // pred_fallthru
    _

// kernel: pallas_forward.12
$region0: #{pallas_forward.12}
  #allocation0 [shape = 'u32[]', space=smem, size = 0x4, offset = 0x4, fixed_abs, tag = 'smem constant byte address 0x4 - core index']
  #allocation1 [shape = 'u32[144,128]{1,0:T(1,128)}', space=vmem, size = 0x12000, scoped, tag = 'internal scratch']
  %s0 = inlined_call_operand.vmem [shape: f32[30,320], index: 0, kind: input, shape index: {}]
  %s1 = inlined_call_operand.vmem [shape: bf16[320,128], index: 1, kind: input, shape index: {}]
  %s2 = inlined_call_operand.vmem [shape: f32[1,128], index: 2, kind: input, shape index: {}]
  %s3 = inlined_call_operand.vmem [shape: f32[30,128], index: 3, kind: output, shape index: {}]
  %s4 = sld [smem:[#allocation0]]
  $region22: #{pallas_forward.12} parent=0
    _
  %s6 = ssub.s32 1, %s4
  %s7 = scalar_select 0, %s6, %s4
  // Predicated region
  $region2: #{pallas_forward.12} parent=0 // pred_check
    _
  $region3: #{pallas_forward.12} parent=0 // pred_check_branch
    %9 = sbr.rel (0) target = $region5
  $region4: #{pallas_forward.12} parent=0 // pred_region
    _
  $region5: #{pallas_forward.12} parent=0 // pred_fallthru
    _
  // Predicated region
  $region6: #{pallas_forward.12} parent=0 // pred_check
    _
  $region7: #{pallas_forward.12} parent=0 // pred_check_branch
    %11 = sbr.rel (0) target = $region9
  $region8: #{pallas_forward.12} parent=0 // pred_region
    _
  $region9: #{pallas_forward.12} parent=0 // pred_fallthru
    _
  // Predicated region
  $region10: #{pallas_forward.12} parent=0 // pred_check
    _
  $region11: #{pallas_forward.12} parent=0 // pred_check_branch
    %13 = sbr.rel (0) target = $region13
  $region12: #{pallas_forward.12} parent=0 // pred_region
    _
  $region13: #{pallas_forward.12} parent=0 // pred_fallthru
    _
  %v15 = vld [vmem:[%s0] sm:$0xff]
  %v16 = vld [vmem:[%s0 + $0x8] sm:$0xff]
  %v17 = vld [vmem:[%s0 + $0x10] sm:$0xff]
  %v18 = vld [vmem:[%s0 + $0x18] sm:$0xff]
  %v19 = vld [vmem:[%s0 + $0x20] sm:$0xff]
  %v20 = vld [vmem:[%s0 + $0x28] sm:$0xff]
  %v21 = vld [vmem:[%s0 + $0x30] sm:$0xff]
  %v22 = vld [vmem:[%s0 + $0x38] sm:$0xff]
  %v23 = vld [vmem:[%s0 + $0x40] sm:$0xff]
  %v24 = vld [vmem:[%s0 + $0x48] sm:$0x3f]
  %v25 = vld [vmem:[%s0 + $0x50] sm:$0x3f]
  %v26 = vld [vmem:[%s0 + $0x58] sm:$0x3f]
  %v27 = vpack.c.bf16 %v18, %v15
  %v28 = vpack.c.bf16 %v19, %v16
  %v29 = vpack.c.bf16 %v20, %v17
  %v30 = vpack.c.bf16 %v24, %v21
  %v31 = vpack.c.bf16 %v25, %v22
  %v32 = vpack.c.bf16 %v26, %v23
  %v33 = vld [vmem:[%s1] sm:$0xf]
  %v34 = vld [vmem:[%s1 + $0x4] sm:$0xf]
  %v35 = vld [vmem:[%s1 + $0x8] sm:$0xf]
  %v36 = vld [vmem:[%s1 + $0xc] sm:$0xf]
  %v37 = vld [vmem:[%s1 + $0x10] sm:$0xf]
  %v38 = vld [vmem:[%s1 + $0x14] sm:$0xf]
  %v39 = vld [vmem:[%s1 + $0x18] sm:$0xf]
  %v40 = vld [vmem:[%s1 + $0x1c] sm:$0xf]
  %v41 = vld [vmem:[%s1 + $0x20] sm:$0xf]
  %v42 = vld [vmem:[%s1 + $0x24] sm:$0xf]
  %v43 = vld [vmem:[%s1 + $0x28] sm:$0xf]
  %v44 = vld [vmem:[%s1 + $0x2c] sm:$0xf]
  %v45 = vld [vmem:[%s1 + $0x30] sm:$0xf]
  %v46 = vld [vmem:[%s1 + $0x34] sm:$0xf]
  %v47 = vld [vmem:[%s1 + $0x38] sm:$0xf]
  %v48 = vld [vmem:[%s1 + $0x3c] sm:$0xf]
  %v49 = vld [vmem:[%s1 + $0x40] sm:$0xf]
  %v50 = vld [vmem:[%s1 + $0x44] sm:$0xf]
  %v51 = vld [vmem:[%s1 + $0x48] sm:$0xf]
  %v52 = vld [vmem:[%s1 + $0x4c] sm:$0xf]
  %v53 = vld [vmem:[%s1 + $0x50] sm:$0xf]
  %v54 = vld [vmem:[%s1 + $0x54] sm:$0xf]
  %v55 = vld [vmem:[%s1 + $0x58] sm:$0xf]
  %v56 = vld [vmem:[%s1 + $0x5c] sm:$0xf]
  %v57 = vld [vmem:[%s1 + $0x60] sm:$0xf]
  %v58 = vld [vmem:[%s1 + $0x64] sm:$0xf]
  %v59 = vld [vmem:[%s1 + $0x68] sm:$0xf]
  %v60 = vld [vmem:[%s1 + $0x6c] sm:$0xf]
  %v61 = vld [vmem:[%s1 + $0x70] sm:$0xf]
  %v62 = vld [vmem:[%s1 + $0x74] sm:$0xf]
  %v63 = vld [vmem:[%s1 + $0x78] sm:$0xf]
  %v64 = vld [vmem:[%s1 + $0x7c] sm:$0xf]
  %v65 = vld [vmem:[%s1 + $0x80] sm:$0xf]
  %v66 = vld [vmem:[%s1 + $0x84] sm:$0xf]
  %v67 = vld [vmem:[%s1 + $0x88] sm:$0xf]
  %v68 = vld [vmem:[%s1 + $0x8c] sm:$0xf]
  %v69 = vld [vmem:[%s1 + $0x90] sm:$0xf]
  %v70 = vld [vmem:[%s1 + $0x94] sm:$0xf]
  %v71 = vld [vmem:[%s1 + $0x98] sm:$0xf]
  %v72 = vld [vmem:[%s1 + $0x9c] sm:$0xf]
  %v73 = vld [vmem:[%s2] sm:$0x1]
  %v75 = vlaneseq
  %v76 = vshrl.u32 %v75, 7
  %v77 = vsub.s32 0, %v76
  %v78 = vrot.slane %v73, %v77
  %v120 = vunpack.c.l.b16 %v33
  %v121 = vunpack.c.l.b16 %v34
  %v122 = vunpack.c.l.b16 %v35
  %v123 = vunpack.c.l.b16 %v36
  %v124 = vunpack.c.l.b16 %v37
  %v125 = vunpack.c.l.b16 %v38
  %v126 = vunpack.c.l.b16 %v39
  %v127 = vunpack.c.l.b16 %v40
  %v128 = vunpack.c.l.b16 %v41
  %v129 = vunpack.c.l.b16 %v42
  %v130 = vunpack.c.l.b16 %v43
  %v131 = vunpack.c.l.b16 %v44
  %v132 = vunpack.c.l.b16 %v45
  %v133 = vunpack.c.l.b16 %v46
  %v134 = vunpack.c.l.b16 %v47
  %v135 = vunpack.c.l.b16 %v48
  %v136 = vunpack.c.l.b16 %v49
  %v137 = vunpack.c.l.b16 %v50
  %v138 = vunpack.c.l.b16 %v51
  %v139 = vunpack.c.l.b16 %v52
  %v140 = vunpack.c.l.b16 %v53
  %v141 = vunpack.c.l.b16 %v54
  %v142 = vunpack.c.l.b16 %v55
  %v143 = vunpack.c.l.b16 %v56
  %v144 = vunpack.c.l.b16 %v57
  %v145 = vunpack.c.l.b16 %v58
  %v146 = vunpack.c.l.b16 %v59
  %v147 = vunpack.c.l.b16 %v60
  %v148 = vunpack.c.l.b16 %v61
  %v149 = vunpack.c.l.b16 %v62
  %v150 = vunpack.c.l.b16 %v63
  %v151 = vunpack.c.l.b16 %v64
  %v152 = vunpack.c.l.b16 %v65
  %v153 = vunpack.c.l.b16 %v66
  %v154 = vunpack.c.l.b16 %v67
  %v155 = vunpack.c.l.b16 %v68
  %v156 = vunpack.c.l.b16 %v69
  %v157 = vunpack.c.l.b16 %v70
  %v158 = vunpack.c.l.b16 %v71
  %v159 = vunpack.c.l.b16 %v72
  %v160 = vpack.c.b16 %v121, %v120
  %v161 = vpack.c.b16 %v123, %v122
  %v162 = vpack.c.b16 %v125, %v124
  %v163 = vpack.c.b16 %v127, %v126
  %v164 = vpack.c.b16 %v129, %v128
  %v165 = vpack.c.b16 %v131, %v130
  %v166 = vpack.c.b16 %v133, %v132
  %v167 = vpack.c.b16 %v135, %v134
  %v168 = vpack.c.b16 %v137, %v136
  %v169 = vpack.c.b16 %v139, %v138
  %v170 = vpack.c.b16 %v141, %v140
  %v171 = vpack.c.b16 %v143, %v142
  %v172 = vpack.c.b16 %v145, %v144
  %v173 = vpack.c.b16 %v147, %v146
  %v174 = vpack.c.b16 %v149, %v148
  %v175 = vpack.c.b16 %v151, %v150
  %v176 = vpack.c.b16 %v153, %v152
  %v177 = vpack.c.b16 %v155, %v154
  %v178 = vpack.c.b16 %v157, %v156
  %v179 = vpack.c.b16 %v159, %v158
  %vm200 = vcmask 523264
  %v202 = vsel %vm200, %v29, 0
  %v205 = vsel %vm200, %v32, 0
  %207 = vmatprep.subr.bf16.mxu0 0
  %208 = vmatpush1.bf16.msra.mxu0 %v160
  %209 = vmatprep.subr.bf16.mxu0 0
  %210 = vmatpush1.bf16.msra.mxu0 %v161
  %211 = vmatprep.subr.bf16.mxu0 0
  %212 = vmatpush1.bf16.msra.mxu0 %v162
  %213 = vmatprep.subr.bf16.mxu0 0
  %214 = vmatpush1.bf16.msra.mxu0 %v163
  %215 = vmatprep.subr.bf16.mxu0 0
  %216 = vmatpush1.bf16.msra.mxu0 %v164
  %217 = vmatprep.subr.bf16.mxu0 0
  %218 = vmatpush1.bf16.msra.mxu0 %v165
  %219 = vmatprep.subr.bf16.mxu0 0
  %220 = vmatpush1.bf16.msra.mxu0 %v166
  %221 = vmatprep.subr.bf16.mxu0 0
  %222 = vmatpush1.bf16.msra.mxu0 %v167
  %223 = vmatprep.subr.bf16.mxu0 0
  %224 = vmatpush1.bf16.msra.mxu0 %v168
  %225 = vmatprep.subr.bf16.mxu0 0
  %226 = vmatpush1.bf16.msra.mxu0 %v169
  %227 = vmatprep.subr.bf16.mxu0 0
  %228 = vmatpush1.bf16.msra.mxu0 %v170
  %229 = vmatprep.subr.bf16.mxu0 0
  %230 = vmatpush1.bf16.msra.mxu0 %v171
  %231 = vmatprep.subr.bf16.mxu0 0
  %232 = vmatpush1.bf16.msra.mxu0 %v172
  %233 = vmatprep.subr.bf16.mxu0 0
  %234 = vmatpush1.bf16.msra.mxu0 %v173
  %235 = vmatprep.subr.bf16.mxu0 0
  %236 = vmatpush1.bf16.msra.mxu0 %v174
  %237 = vmatprep.subr.bf16.mxu0 0
  %238 = vmatpush1.bf16.msra.mxu0 %v175
  %239 = vmatprep.mubr.bf16.mxu0 %v28
  %240 = vmatmul.mubr.bf16.gmra.mrb[0].mxu0 %v27
  %v241 = vpop.f32.mrb[0].mxu0
  %v242 = vadd.f32 %v78, %v241
  %v243 = vpop.f32.mrb[0].mxu0
  %v244 = vpop.f32.mrb[0].mxu0
  %v245 = vadd.f32 %v78, %v244
  %v246 = vpop.f32.mrb[0].mxu0
  %247 = vmatprep.mubr.bf16.mxu0 %v31
  %248 = vmatmul.mubr.bf16.gmra.mrb[0].mxu0 %v30
  %v249 = vpop.f32.mrb[0].mxu0
  %v250 = vadd.f32 %v78, %v249
  %v251 = vpop.f32.mrb[0].mxu0
  %v252 = vpop.f32.mrb[0].mxu0
  %v253 = vadd.f32 %v78, %v252
  %v254 = vpop.f32.mrb[0].mxu0
  %255 = vdwg.mxu0
  %256 = vmatprep.subr.bf16.mxu0 0
  %257 = vmatpush1.bf16.msra.mxu0 %v176
  %258 = vmatprep.subr.bf16.mxu0 0
  %259 = vmatpush1.bf16.msra.mxu0 %v177
  %260 = vmatprep.subr.bf16.mxu0 0
  %261 = vmatpush1.bf16.msra.mxu0 %v178
  %262 = vmatprep.subr.bf16.mxu0 0
  %263 = vmatpush1.bf16.msra.mxu0 %v179
  %264 = vmatprep.subr.bf16.mxu0 0
  %265 = vmatpush1.bf16.msra.mxu0 0
  %266 = vmatprep.subr.bf16.mxu0 0
  %267 = vmatpush1.bf16.msra.mxu0 0
  %268 = vmatprep.subr.bf16.mxu0 0
  %269 = vmatpush1.bf16.msra.mxu0 0
  %270 = vmatprep.subr.bf16.mxu0 0
  %271 = vmatpush1.bf16.msra.mxu0 0
  %272 = vmatprep.subr.bf16.mxu0 0
  %273 = vmatpush1.bf16.msra.mxu0 0
  %274 = vmatprep.subr.bf16.mxu0 0
  %275 = vmatpush1.bf16.msra.mxu0 0
  %276 = vmatprep.subr.bf16.mxu0 0
  %277 = vmatpush1.bf16.msra.mxu0 0
  %278 = vmatprep.subr.bf16.mxu0 0
  %279 = vmatpush1.bf16.msra.mxu0 0
  %280 = vmatprep.subr.bf16.mxu0 0
  %281 = vmatpush1.bf16.msra.mxu0 0
  %282 = vmatprep.subr.bf16.mxu0 0
  %283 = vmatpush1.bf16.msra.mxu0 0
  %284 = vmatprep.subr.bf16.mxu0 0
  %285 = vmatpush1.bf16.msra.mxu0 0
  %286 = vmatprep.subr.bf16.mxu0 0
  %287 = vmatpush1.bf16.msra.mxu0 0
  %288 = vmatprep.mubr.bf16.mxu0 0
  %289 = vmatmul.mubr.bf16.gmra.mrb[0].mxu0 %v202
  %v290 = vpop.f32.mrb[0].mxu0
  %v291 = vadd.f32 %v242, %v290
  %v292 = vpop.f32.mrb[0].mxu0
  %v293 = vpop.f32.mrb[0].mxu0
  %v294 = vadd.f32 %v245, %v293
  %v295 = vpop.f32.mrb[0].mxu0
  %296 = vmatprep.mubr.bf16.mxu0 0
  %297 = vmatmul.mubr.bf16.gmra.mrb[0].mxu0 %v205
  %v298 = vpop.f32.mrb[0].mxu0
  %v299 = vadd.f32 %v250, %v298
  %v300 = vpop.f32.mrb[0].mxu0
  %v301 = vpop.f32.mrb[0].mxu0
  %v302 = vadd.f32 %v253, %v301
  %v303 = vpop.f32.mrb[0].mxu0
  %304 = vdwg.mxu0
  %305 = vst [vmem:[%s3] sm:$0xff] %v291
  %306 = vst [vmem:[%s3 + $0x8] sm:$0xff] %v294
  %307 = vst [vmem:[%s3 + $0x10] sm:$0xff] %v299
  %308 = vst [vmem:[%s3 + $0x18] sm:$0x3f] %v302
  // Predicated region
  $region14: #{pallas_forward.12} parent=0 // pred_check
    _
  $region15: #{pallas_forward.12} parent=0 // pred_check_branch
    %310 = sbr.rel (0) target = $region17
  $region16: #{pallas_forward.12} parent=0 // pred_region
    _
  $region17: #{pallas_forward.12} parent=0 // pred_fallthru
    _
  // Predicated region
  $region18: #{pallas_forward.12} parent=0 // pred_check
    _
  $region19: #{pallas_forward.12} parent=0 // pred_check_branch
    %312 = sbr.rel (0) target = $region21
  $region20: #{pallas_forward.12} parent=0 // pred_region
    _
  $region21: #{pallas_forward.12} parent=0 // pred_fallthru
    _

// kernel: pallas_forward.13
$region0: #{pallas_forward.13}
  #allocation0 [shape = 'u32[]', space=smem, size = 0x4, offset = 0x4, fixed_abs, tag = 'smem constant byte address 0x4 - core index']
  #allocation1 [shape = 'u32[144,128]{1,0:T(1,128)}', space=vmem, size = 0x12000, scoped, tag = 'internal scratch']
  %s0 = inlined_call_operand.vmem [shape: f32[32,128], index: 0, kind: input, shape index: {}]
  %s1 = inlined_call_operand.vmem [shape: bf16[128,384], index: 1, kind: input, shape index: {}]
  %s2 = inlined_call_operand.vmem [shape: f32[1,384], index: 2, kind: input, shape index: {}]
  %s3 = inlined_call_operand.vmem [shape: bf16[32,384], index: 3, kind: output, shape index: {}]
  %s4 = sld [smem:[#allocation0]]
  $region22: #{pallas_forward.13} parent=0
    _
  %s6 = ssub.s32 1, %s4
  %s7 = scalar_select 0, %s6, %s4
  // Predicated region
  $region2: #{pallas_forward.13} parent=0 // pred_check
    _
  $region3: #{pallas_forward.13} parent=0 // pred_check_branch
    %9 = sbr.rel (0) target = $region5
  $region4: #{pallas_forward.13} parent=0 // pred_region
    _
  $region5: #{pallas_forward.13} parent=0 // pred_fallthru
    _
  // Predicated region
  $region6: #{pallas_forward.13} parent=0 // pred_check
    _
  $region7: #{pallas_forward.13} parent=0 // pred_check_branch
    %11 = sbr.rel (0) target = $region9
  $region8: #{pallas_forward.13} parent=0 // pred_region
    _
  $region9: #{pallas_forward.13} parent=0 // pred_fallthru
    _
  // Predicated region
  $region10: #{pallas_forward.13} parent=0 // pred_check
    _
  $region11: #{pallas_forward.13} parent=0 // pred_check_branch
    %13 = sbr.rel (0) target = $region13
  $region12: #{pallas_forward.13} parent=0 // pred_region
    _
  $region13: #{pallas_forward.13} parent=0 // pred_fallthru
    _
  %v15 = vld [vmem:[%s0] sm:$0xff]
  %v16 = vld [vmem:[%s0 + $0x8] sm:$0xff]
  %v17 = vld [vmem:[%s0 + $0x10] sm:$0xff]
  %v18 = vld [vmem:[%s0 + $0x18] sm:$0xff]
  %v19 = vpack.c.bf16 %v16, %v15
  %v20 = vpack.c.bf16 %v18, %v17
  %v21 = vld [vmem:[%s1] sm:$0xff]
  %v22 = vld [vmem:[%s1 + $0x8] sm:$0xf]
  %v23 = vld [vmem:[%s1 + $0xc] sm:$0xff]
  %v24 = vld [vmem:[%s1 + $0x14] sm:$0xf]
  %v25 = vld [vmem:[%s1 + $0x18] sm:$0xff]
  %v26 = vld [vmem:[%s1 + $0x20] sm:$0xf]
  %v27 = vld [vmem:[%s1 + $0x24] sm:$0xff]
  %v28 = vld [vmem:[%s1 + $0x2c] sm:$0xf]
  %v29 = vld [vmem:[%s1 + $0x30] sm:$0xff]
  %v30 = vld [vmem:[%s1 + $0x38] sm:$0xf]
  %v31 = vld [vmem:[%s1 + $0x3c] sm:$0xff]
  %v32 = vld [vmem:[%s1 + $0x44] sm:$0xf]
  %v33 = vld [vmem:[%s1 + $0x48] sm:$0xff]
  %v34 = vld [vmem:[%s1 + $0x50] sm:$0xf]
  %v35 = vld [vmem:[%s1 + $0x54] sm:$0xff]
  %v36 = vld [vmem:[%s1 + $0x5c] sm:$0xf]
  %v37 = vld [vmem:[%s1 + $0x60] sm:$0xff]
  %v38 = vld [vmem:[%s1 + $0x68] sm:$0xf]
  %v39 = vld [vmem:[%s1 + $0x6c] sm:$0xff]
  %v40 = vld [vmem:[%s1 + $0x74] sm:$0xf]
  %v41 = vld [vmem:[%s1 + $0x78] sm:$0xff]
  %v42 = vld [vmem:[%s1 + $0x80] sm:$0xf]
  %v43 = vld [vmem:[%s1 + $0x84] sm:$0xff]
  %v44 = vld [vmem:[%s1 + $0x8c] sm:$0xf]
  %v45 = vld [vmem:[%s1 + $0x90] sm:$0xff]
  %v46 = vld [vmem:[%s1 + $0x98] sm:$0xf]
  %v47 = vld [vmem:[%s1 + $0x9c] sm:$0xff]
  %v48 = vld [vmem:[%s1 + $0xa4] sm:$0xf]
  %v49 = vld [vmem:[%s1 + $0xa8] sm:$0xff]
  %v50 = vld [vmem:[%s1 + $0xb0] sm:$0xf]
  %v51 = vld [vmem:[%s1 + $0xb4] sm:$0xff]
  %v52 = vld [vmem:[%s1 + $0xbc] sm:$0xf]
  %v53 = vld [vmem:[%s2] sm:$0x7]
  %v55 = vlaneseq
  %v56 = vshrl.u32 %v55, 7
  %v57 = vsub.s32 0, %v56
  %v58 = vrot.slane %v53, %v57
  %v59 = vlaneseq
  %v60 = vshrl.u32 %v59, 7
  %v61 = vsub.s32 1, %v60
  %v62 = vrot.slane %v53, %v61
  %v63 = vlaneseq
  %v64 = vshrl.u32 %v63, 7
  %v65 = vsub.s32 2, %v64
  %v66 = vrot.slane %v53, %v65
  %v102 = vunpack.c.l.b16 %v21
  %v103 = vunpack.c.h.b16 %v21
  %v104 = vunpack.c.l.b16 %v22
  %v105 = vunpack.c.l.b16 %v23
  %v106 = vunpack.c.h.b16 %v23
  %v107 = vunpack.c.l.b16 %v24
  %v108 = vunpack.c.l.b16 %v25
  %v109 = vunpack.c.h.b16 %v25
  %v110 = vunpack.c.l.b16 %v26
  %v111 = vunpack.c.l.b16 %v27
  %v112 = vunpack.c.h.b16 %v27
  %v113 = vunpack.c.l.b16 %v28
  %v114 = vunpack.c.l.b16 %v29
  %v115 = vunpack.c.h.b16 %v29
  %v116 = vunpack.c.l.b16 %v30
  %v117 = vunpack.c.l.b16 %v31
  %v118 = vunpack.c.h.b16 %v31
  %v119 = vunpack.c.l.b16 %v32
  %v120 = vunpack.c.l.b16 %v33
  %v121 = vunpack.c.h.b16 %v33
  %v122 = vunpack.c.l.b16 %v34
  %v123 = vunpack.c.l.b16 %v35
  %v124 = vunpack.c.h.b16 %v35
  %v125 = vunpack.c.l.b16 %v36
  %v126 = vunpack.c.l.b16 %v37
  %v127 = vunpack.c.h.b16 %v37
  %v128 = vunpack.c.l.b16 %v38
  %v129 = vunpack.c.l.b16 %v39
  %v130 = vunpack.c.h.b16 %v39
  %v131 = vunpack.c.l.b16 %v40
  %v132 = vunpack.c.l.b16 %v41
  %v133 = vunpack.c.h.b16 %v41
  %v134 = vunpack.c.l.b16 %v42
  %v135 = vunpack.c.l.b16 %v43
  %v136 = vunpack.c.h.b16 %v43
  %v137 = vunpack.c.l.b16 %v44
  %v138 = vunpack.c.l.b16 %v45
  %v139 = vunpack.c.h.b16 %v45
  %v140 = vunpack.c.l.b16 %v46
  %v141 = vunpack.c.l.b16 %v47
  %v142 = vunpack.c.h.b16 %v47
  %v143 = vunpack.c.l.b16 %v48
  %v144 = vunpack.c.l.b16 %v49
  %v145 = vunpack.c.h.b16 %v49
  %v146 = vunpack.c.l.b16 %v50
  %v147 = vunpack.c.l.b16 %v51
  %v148 = vunpack.c.h.b16 %v51
  %v149 = vunpack.c.l.b16 %v52
  %v150 = vpack.c.b16 %v105, %v102
  %v151 = vpack.c.b16 %v106, %v103
  %v152 = vpack.c.b16 %v107, %v104
  %v153 = vpack.c.b16 %v111, %v108
  %v154 = vpack.c.b16 %v112, %v109
  %v155 = vpack.c.b16 %v113, %v110
  %v156 = vpack.c.b16 %v117, %v114
  %v157 = vpack.c.b16 %v118, %v115
  %v158 = vpack.c.b16 %v119, %v116
  %v159 = vpack.c.b16 %v123, %v120
  %v160 = vpack.c.b16 %v124, %v121
  %v161 = vpack.c.b16 %v125, %v122
  %v162 = vpack.c.b16 %v129, %v126
  %v163 = vpack.c.b16 %v130, %v127
  %v164 = vpack.c.b16 %v131, %v128
  %v165 = vpack.c.b16 %v135, %v132
  %v166 = vpack.c.b16 %v136, %v133
  %v167 = vpack.c.b16 %v137, %v134
  %v168 = vpack.c.b16 %v141, %v138
  %v169 = vpack.c.b16 %v142, %v139
  %v170 = vpack.c.b16 %v143, %v140
  %v171 = vpack.c.b16 %v147, %v144
  %v172 = vpack.c.b16 %v148, %v145
  %v173 = vpack.c.b16 %v149, %v146
  %198 = vmatprep.subr.bf16.mxu0 %v151
  %199 = vmatpush1.bf16.msra.mxu0 %v150
  %200 = vmatprep.subr.bf16.mxu0 %v154
  %201 = vmatpush1.bf16.msra.mxu0 %v153
  %202 = vmatprep.subr.bf16.mxu0 %v157
  %203 = vmatpush1.bf16.msra.mxu0 %v156
  %204 = vmatprep.subr.bf16.mxu0 %v160
  %205 = vmatpush1.bf16.msra.mxu0 %v159
  %206 = vmatprep.subr.bf16.mxu0 %v163
  %207 = vmatpush1.bf16.msra.mxu0 %v162
  %208 = vmatprep.subr.bf16.mxu0 %v166
  %209 = vmatpush1.bf16.msra.mxu0 %v165
  %210 = vmatprep.subr.bf16.mxu0 %v169
  %211 = vmatpush1.bf16.msra.mxu0 %v168
  %212 = vmatprep.subr.bf16.mxu0 %v172
  %213 = vmatpush1.bf16.msra.mxu0 %v171
  %214 = vmatprep.subr.bf16.mxu0 0
  %215 = vmatpush1.bf16.msra.mxu0 0
  %216 = vmatprep.subr.bf16.mxu0 0
  %217 = vmatpush1.bf16.msra.mxu0 0
  %218 = vmatprep.subr.bf16.mxu0 0
  %219 = vmatpush1.bf16.msra.mxu0 0
  %220 = vmatprep.subr.bf16.mxu0 0
  %221 = vmatpush1.bf16.msra.mxu0 0
  %222 = vmatprep.subr.bf16.mxu0 0
  %223 = vmatpush1.bf16.msra.mxu0 0
  %224 = vmatprep.subr.bf16.mxu0 0
  %225 = vmatpush1.bf16.msra.mxu0 0
  %226 = vmatprep.subr.bf16.mxu0 0
  %227 = vmatpush1.bf16.msra.mxu0 0
  %228 = vmatprep.subr.bf16.mxu0 0
  %229 = vmatpush1.bf16.msra.mxu0 0
  %230 = vmatprep.mubr.bf16.mxu0 0
  %231 = vmatmul.mubr.bf16.gmra.mrb[0].mxu0 %v19
  %v232 = vpop.f32.mrb[0].mxu0
  %v233 = vadd.f32 %v58, %v232
  %v234 = vpop.f32.mrb[0].mxu0
  %v235 = vadd.f32 %v62, %v234
  %v236 = vpop.f32.mrb[0].mxu0
  %v237 = vadd.f32 %v58, %v236
  %v238 = vpop.f32.mrb[0].mxu0
  %v239 = vadd.f32 %v62, %v238
  %240 = vmatprep.mubr.bf16.mxu0 0
  %241 = vmatmul.mubr.bf16.gmra.mrb[0].mxu0 %v20
  %v242 = vpop.f32.mrb[0].mxu0
  %v243 = vadd.f32 %v58, %v242
  %v244 = vpop.f32.mrb[0].mxu0
  %v245 = vadd.f32 %v62, %v244
  %v246 = vpop.f32.mrb[0].mxu0
  %v247 = vadd.f32 %v58, %v246
  %v248 = vpop.f32.mrb[0].mxu0
  %v249 = vadd.f32 %v62, %v248
  %250 = vdwg.mxu0
  %251 = vmatprep.subr.bf16.mxu0 0
  %252 = vmatpush1.bf16.msra.mxu0 %v152
  %253 = vmatprep.subr.bf16.mxu0 0
  %254 = vmatpush1.bf16.msra.mxu0 %v155
  %255 = vmatprep.subr.bf16.mxu0 0
  %256 = vmatpush1.bf16.msra.mxu0 %v158
  %257 = vmatprep.subr.bf16.mxu0 0
  %258 = vmatpush1.bf16.msra.mxu0 %v161
  %259 = vmatprep.subr.bf16.mxu0 0
  %260 = vmatpush1.bf16.msra.mxu0 %v164
  %261 = vmatprep.subr.bf16.mxu0 0
  %262 = vmatpush1.bf16.msra.mxu0 %v167
  %263 = vmatprep.subr.bf16.mxu0 0
  %264 = vmatpush1.bf16.msra.mxu0 %v170
  %265 = vmatprep.subr.bf16.mxu0 0
  %266 = vmatpush1.bf16.msra.mxu0 %v173
  %267 = vmatprep.subr.bf16.mxu0 0
  %268 = vmatpush1.bf16.msra.mxu0 0
  %269 = vmatprep.subr.bf16.mxu0 0
  %270 = vmatpush1.bf16.msra.mxu0 0
  %271 = vmatprep.subr.bf16.mxu0 0
  %272 = vmatpush1.bf16.msra.mxu0 0
  %273 = vmatprep.subr.bf16.mxu0 0
  %274 = vmatpush1.bf16.msra.mxu0 0
  %275 = vmatprep.subr.bf16.mxu0 0
  %276 = vmatpush1.bf16.msra.mxu0 0
  %277 = vmatprep.subr.bf16.mxu0 0
  %278 = vmatpush1.bf16.msra.mxu0 0
  %279 = vmatprep.subr.bf16.mxu0 0
  %280 = vmatpush1.bf16.msra.mxu0 0
  %281 = vmatprep.subr.bf16.mxu0 0
  %282 = vmatpush1.bf16.msra.mxu0 0
  %283 = vmatprep.mubr.bf16.mxu0 0
  %284 = vmatmul.mubr.bf16.gmra.mrb[0].mxu0 %v19
  %v285 = vpop.f32.mrb[0].mxu0
  %v286 = vadd.f32 %v66, %v285
  %v287 = vpop.f32.mrb[0].mxu0
  %v288 = vpop.f32.mrb[0].mxu0
  %v289 = vadd.f32 %v66, %v288
  %v290 = vpop.f32.mrb[0].mxu0
  %291 = vmatprep.mubr.bf16.mxu0 0
  %292 = vmatmul.mubr.bf16.gmra.mrb[0].mxu0 %v20
  %v293 = vpop.f32.mrb[0].mxu0
  %v294 = vadd.f32 %v66, %v293
  %v295 = vpop.f32.mrb[0].mxu0
  %v296 = vpop.f32.mrb[0].mxu0
  %v297 = vadd.f32 %v66, %v296
  %v298 = vpop.f32.mrb[0].mxu0
  %299 = vdwg.mxu0
  %v300 = vpack.c.bf16 %v237, %v233
  %v301 = vpack.c.bf16 %v239, %v235
  %v302 = vpack.c.bf16 %v289, %v286
  %v303 = vpack.c.bf16 %v247, %v243
  %v304 = vpack.c.bf16 %v249, %v245
  %v305 = vpack.c.bf16 %v297, %v294
  %v312 = vunpack.c.l.b16 %v300
  %v313 = vunpack.c.l.b16 %v301
  %v314 = vunpack.c.l.b16 %v302
  %v315 = vunpack.c.h.b16 %v300
  %v316 = vunpack.c.h.b16 %v301
  %v317 = vunpack.c.h.b16 %v302
  %v318 = vunpack.c.l.b16 %v303
  %v319 = vunpack.c.l.b16 %v304
  %v320 = vunpack.c.l.b16 %v305
  %v321 = vunpack.c.h.b16 %v303
  %v322 = vunpack.c.h.b16 %v304
  %v323 = vunpack.c.h.b16 %v305
  %v324 = vpack.c.b16 %v313, %v312
  %v325 = vpack.c.b16 %v314, %v314
  %v326 = vpack.c.b16 %v316, %v315
  %v327 = vpack.c.b16 %v317, %v317
  %v328 = vpack.c.b16 %v319, %v318
  %v329 = vpack.c.b16 %v320, %v320
  %v330 = vpack.c.b16 %v322, %v321
  %v331 = vpack.c.b16 %v323, %v323
  %340 = vst [vmem:[%s3] sm:$0xff] %v324
  %341 = vst [vmem:[%s3 + $0x8] sm:$0xf] %v325
  %342 = vst [vmem:[%s3 + $0xc] sm:$0xff] %v326
  %343 = vst [vmem:[%s3 + $0x14] sm:$0xf] %v327
  %344 = vst [vmem:[%s3 + $0x18] sm:$0xff] %v328
  %345 = vst [vmem:[%s3 + $0x20] sm:$0xf] %v329
  %346 = vst [vmem:[%s3 + $0x24] sm:$0xff] %v330
  %347 = vst [vmem:[%s3 + $0x2c] sm:$0xf] %v331
  // Predicated region
  $region14: #{pallas_forward.13} parent=0 // pred_check
    _
  $region15: #{pallas_forward.13} parent=0 // pred_check_branch
    %349 = sbr.rel (0) target = $region17
  $region16: #{pallas_forward.13} parent=0 // pred_region
    _
  $region17: #{pallas_forward.13} parent=0 // pred_fallthru
    _
  // Predicated region
  $region18: #{pallas_forward.13} parent=0 // pred_check
    _
  $region19: #{pallas_forward.13} parent=0 // pred_check_branch
    %351 = sbr.rel (0) target = $region21
  $region20: #{pallas_forward.13} parent=0 // pred_region
    _
  $region21: #{pallas_forward.13} parent=0 // pred_fallthru
    _

// kernel: pallas_forward.14
$region0: #{pallas_forward.14}
  #allocation0 [shape = 'u32[]', space=smem, size = 0x4, offset = 0x4, fixed_abs, tag = 'smem constant byte address 0x4 - core index']
  #allocation1 [shape = 'u32[144,128]{1,0:T(1,128)}', space=vmem, size = 0x12000, scoped, tag = 'internal scratch']
  %s0 = inlined_call_operand.vmem [shape: bf16[2,16,384], index: 0, kind: input, shape index: {}]
  %s1 = inlined_call_operand.vmem [shape: bf16[2,16,128], index: 1, kind: output, shape index: {}]
  %s2 = sld [smem:[#allocation0]]
  $region37: #{pallas_forward.14} parent=0
    _
  %s4 = ssub.s32 1, %s2
  %s5 = scalar_select 0, %s4, %s2
  loop: start=0, step=1, limit=4
  $region2: #{pallas_forward.14} parent=0 // loop_pre_header
    _
  $region3: #{pallas_forward.14} parent=0 // loop_header
    %s7 = sphi 0, %s11
    %p8 = scmp.ge.s32.totalorder %s7, 4
    %s17 = sphi 0, %s19
    %s20 = sphi 0, %s17
    %s21 = sphi 0, %s20
    %s37 = sphi 0, %s21
    %s43 = sphi 0, %s45
    %s46 = sphi 0, %s43
    %s47 = sphi 0, %s46
    %s63 = sphi 0, %s47
  $region4: #{pallas_forward.14} parent=0 // loop_header_branch
    %10 = sbr.rel (%p8) target = $region8
  $region5: #{pallas_forward.14} parent=0 // loop_body
    %s12 = ssub.s32 %s7, 1
    %s13 = ssub.s32 %s7, 2
    %s14 = sadd.s32 %s7, 1
    %s15 = ssub.s32 %s7, %s14
    %p16 = scmp.eq.s32.totalorder %s15, 0
    %s18 = sadd.s32 %s17, 1
    %s19 = scalar_select %p16, %s17, %s18
    %p22 = pneg %p16
    %p23 = scmp.eq.s32.totalorder %s7, 1
    %p24 = por %p22, %p23
    %p25 = scmp.ne.s32.totalorder %s17, %s20
    %p26 = scmp.eq.s32.totalorder %s7, 0
    %p27 = por %p25, %p26
    %p28 = scmp.ne.s32.totalorder %s17, %s20
    %p29 = scmp.eq.s32.totalorder %s12, 1
    %p30 = por %p28, %p29
    %p31 = scmp.ne.s32.totalorder %s20, %s21
    %p32 = scmp.eq.s32.totalorder %s12, 0
    %p33 = por %p31, %p32
    %p34 = scmp.ne.s32.totalorder %s20, %s21
    %p35 = scmp.eq.s32.totalorder %s13, 1
    %p36 = por %p34, %p35
    %p38 = scmp.ne.s32.totalorder %s21, %s37
    %p39 = scmp.eq.s32.totalorder %s13, 0
    %p40 = por %p38, %p39
    %s41 = ssub.s32 %s7, %s14
    %p42 = scmp.eq.s32.totalorder %s41, 0
    %s44 = sadd.s32 %s43, 1
    %s45 = scalar_select %p42, %s43, %s44
    %p48 = pneg %p42
    %p49 = scmp.eq.s32.totalorder %s7, 1
    %p50 = por %p48, %p49
    %p51 = scmp.ne.s32.totalorder %s43, %s46
    %p52 = scmp.eq.s32.totalorder %s7, 0
    %p53 = por %p51, %p52
    %p54 = scmp.ne.s32.totalorder %s43, %s46
    %p55 = scmp.eq.s32.totalorder %s12, 1
    %p56 = por %p54, %p55
    %p57 = scmp.ne.s32.totalorder %s46, %s47
    %p58 = scmp.eq.s32.totalorder %s12, 0
    %p59 = por %p57, %p58
    %p60 = scmp.ne.s32.totalorder %s46, %s47
    %p61 = scmp.eq.s32.totalorder %s13, 1
    %p62 = por %p60, %p61
    %p64 = scmp.ne.s32.totalorder %s47, %s63
    %p65 = scmp.eq.s32.totalorder %s13, 0
    %p66 = por %p64, %p65
    %p67 = scmp.le.s32.totalorder 1, %s7
    %p68 = scmp.lt.s32.totalorder %s7, 3
    %p69 = pnand %p67, %p68
    %p70 = pneg %p69
    // Predicated region
    $region9: #{pallas_forward.14} parent=5 // pred_check
      _
    $region10: #{pallas_forward.14} parent=5 // pred_check_branch
      %72 = sbr.rel (%p69) target = $region12
    $region11: #{pallas_forward.14} parent=5 // pred_region
      %s73 = ssub.s32 %s7, 1
    $region12: #{pallas_forward.14} parent=5 // pred_fallthru
      _
    %p74 = scmp.lt.s32.totalorder %s7, 2
    // Predicated region
    $region13: #{pallas_forward.14} parent=5 // pred_check
      %p75 = pneg %p74
    $region14: #{pallas_forward.14} parent=5 // pred_check_branch
      %77 = sbr.rel (%p75) target = $region16
    $region15: #{pallas_forward.14} parent=5 // pred_region
      // Predicated region
      $region17: #{pallas_forward.14} parent=15 // pred_check
        %p78 = pneg %p27
      $region18: #{pallas_forward.14} parent=15 // pred_check_branch
        %80 = sbr.rel (%p78) target = $region20
      $region19: #{pallas_forward.14} parent=15 // pred_region
        %p81 = scmp.lt.s32.totalorder %s7, 1
        %s82 = scalar_select %p81, %s7, 1
        %s83 = smul.addr %s82, 6
        %s84 = smul.addr %s83, 4
        %s85 = scalar_lea.vmem %s0, %s84
      $region20: #{pallas_forward.14} parent=15 // pred_fallthru
        _
    $region16: #{pallas_forward.14} parent=5 // pred_fallthru
      _
    %p86 = scmp.le.s32.totalorder 1, %s7
    %p87 = scmp.lt.s32.totalorder %s7, 3
    %p88 = pnand %p86, %p87
    %p89 = pneg %p88
    // Predicated region
    $region21: #{pallas_forward.14} parent=5 // pred_check
      _
    $region22: #{pallas_forward.14} parent=5 // pred_check_branch
      %91 = sbr.rel (%p88) target = $region24
    $region23: #{pallas_forward.14} parent=5 // pred_region
      %s92 = ssub.s32 %s7, 1
      %p93 = scmp.lt.s32.totalorder %s12, 1
      %s94 = scalar_select %p93, %s12, 1
      %s95 = smul.addr %s94, 6
      %s96 = smul.addr %s95, 4
      %s97 = scalar_lea.vmem %s0, %s96
      %p98 = pneg %p33
      %p99 = pneg %p30
      %p100 = pneg %p59
      %p101 = pneg %p56
      %p102 = scmp.lt.s32.totalorder %s12, 1
      %s103 = scalar_select %p102, %s12, 1
      %s104 = smul.addr %s103, 2
      %s105 = smul.addr %s104, 4
      %s106 = scalar_lea.vmem %s1, %s105
      %p107 = scmp.lt.s32.totalorder %s12, 1
      %s108 = scalar_select %p107, %s12, 1
      %s109 = smul.addr %s108, 6
      %s110 = smul.addr %s109, 4
      %s111 = scalar_lea.vmem %s0, %s110
      %p112 = scmp.lt.s32.totalorder %s12, 1
      %s113 = scalar_select %p112, %s12, 1
      %s114 = smul.addr %s113, 2
      %s115 = smul.addr %s114, 4
      %s116 = scalar_lea.vmem %s1, %s115
      %v118 = vld [vmem:[%s111] sm:$0xff]
      %v119 = vld [vmem:[%s111 + $0x8] sm:$0xf]
      %v120 = vld [vmem:[%s111 + $0xc] sm:$0xff]
      %v121 = vld [vmem:[%s111 + $0x14] sm:$0xf]
      %v124 = vunpack.c.l.b16 %v118
      %v125 = vunpack.c.l.b16 %v120
      %v126 = vpack.c.b16 %v125, %v124
      %v127 = vunpack.c.h.b16 %v118
      %v128 = vunpack.c.h.b16 %v120
      %v129 = vpack.c.b16 %v128, %v127
      %vm130 = vcmask 523264
      %v132 = vsel %vm130, %v126, 0
      %v135 = vsel %vm130, %v129, 0
      %137 = vmatprep.subr.bf16.mxu0 0
      %138 = vmatpush1.bf16.xpose.msra.mxu0 %v135
      %139 = vmatprep.subr.bf16.mxu0 0
      %140 = vmatpush1.bf16.xpose.msra.mxu0 0
      %141 = vmatprep.subr.bf16.mxu0 0
      %142 = vmatpush1.bf16.xpose.msra.mxu0 0
      %143 = vmatprep.subr.bf16.mxu0 0
      %144 = vmatpush1.bf16.xpose.msra.mxu0 0
      %145 = vmatprep.subr.bf16.mxu0 0
      %146 = vmatpush1.bf16.xpose.msra.mxu0 0
      %147 = vmatprep.subr.bf16.mxu0 0
      %148 = vmatpush1.bf16.xpose.msra.mxu0 0
      %149 = vmatprep.subr.bf16.mxu0 0
      %150 = vmatpush1.bf16.xpose.msra.mxu0 0
      %151 = vmatprep.subr.bf16.mxu0 0
      %152 = vmatpush1.bf16.xpose.msra.mxu0 0
      %153 = vmatprep.subr.bf16.mxu0 0
      %154 = vmatpush1.bf16.xpose.msra.mxu0 0
      %155 = vmatprep.subr.bf16.mxu0 0
      %156 = vmatpush1.bf16.xpose.msra.mxu0 0
      %157 = vmatprep.subr.bf16.mxu0 0
      %158 = vmatpush1.bf16.xpose.msra.mxu0 0
      %159 = vmatprep.subr.bf16.mxu0 0
      %160 = vmatpush1.bf16.xpose.msra.mxu0 0
      %161 = vmatprep.subr.bf16.mxu0 0
      %162 = vmatpush1.bf16.xpose.msra.mxu0 0
      %163 = vmatprep.subr.bf16.mxu0 0
      %164 = vmatpush1.bf16.xpose.msra.mxu0 0
      %165 = vmatprep.subr.bf16.mxu0 0
      %166 = vmatpush1.bf16.xpose.msra.mxu0 0
      %167 = vmatprep.subr.bf16.mxu0 0
      %168 = vmatpush1.bf16.xpose.msra.mxu0 0
      %169 = vmatprep.mubr.bf16.mxu0 0
      %170 = vmatmul.mubr.bf16.gmra.mrb[0].mxu0 %v132
      %v171 = vpop.f32.mrb[0].mxu0
      %v172 = vadd.f32 0.0, %v171
      %v173 = vpop.f32.mrb[0].mxu0
      %v174 = vpop.f32.mrb[0].mxu0
      %v175 = vadd.f32 0.0, %v174
      %v176 = vpop.f32.mrb[0].mxu0
      %177 = vdwg.mxu0
      %vm178 = vcmask 130048
      %v179 = vsel %vm178, %v172, -inf
      %180 = vmax.xlane.f32.xlu0 %v179
      %v181 = vpop.xlane.xlu0 %180
      %v182 = vsel %vm178, %v175, -inf
      %183 = vmax.xlane.f32.xlu0 %v182
      %v184 = vpop.xlane.xlu0 %183
      %v185 = vsub.f32 %v172, %v181
      %v186 = vsub.f32 %v175, %v184
      %v187 = vmul.f32 %v185, 1.442695
      %v188 = vpow.pop %v187
      %v189 = vmul.f32 %v186, 1.442695
      %v190 = vpow.pop %v189
      %v191 = vsel %vm178, %v188, 0.0
      %192 = vadd.xlane.f32.xlu0 %v191
      %v193 = vpop.xlane.xlu0 %192
      %v194 = vsel %vm178, %v190, 0.0
      %195 = vadd.xlane.f32.xlu0 %v194
      %v196 = vpop.xlane.xlu0 %195
      %v197 = vrcp.pop %v193
      %v198 = vrcp.pop %v196
      %v199 = vmul.f32 %v188, %v197
      %v200 = vmul.f32 %v190, %v198
      %v201 = vpack.c.bf16 %v200, %v199
      %v204 = vunpack.c.l.b16 %v119
      %v205 = vunpack.c.l.b16 %v121
      %v206 = vpack.c.b16 %v205, %v204
      %v209 = vsel %vm178, %v201, 0
      %211 = vmatprep.subr.bf16.mxu0 0
      %212 = vmatpush1.bf16.msra.mxu0 %v206
      %213 = vmatprep.subr.bf16.mxu0 0
      %214 = vmatpush1.bf16.msra.mxu0 0
      %215 = vmatprep.subr.bf16.mxu0 0
      %216 = vmatpush1.bf16.msra.mxu0 0
      %217 = vmatprep.subr.bf16.mxu0 0
      %218 = vmatpush1.bf16.msra.mxu0 0
      %219 = vmatprep.subr.bf16.mxu0 0
      %220 = vmatpush1.bf16.msra.mxu0 0
      %221 = vmatprep.subr.bf16.mxu0 0
      %222 = vmatpush1.bf16.msra.mxu0 0
      %223 = vmatprep.subr.bf16.mxu0 0
      %224 = vmatpush1.bf16.msra.mxu0 0
      %225 = vmatprep.subr.bf16.mxu0 0
      %226 = vmatpush1.bf16.msra.mxu0 0
      %227 = vmatprep.subr.bf16.mxu0 0
      %228 = vmatpush1.bf16.msra.mxu0 0
      %229 = vmatprep.subr.bf16.mxu0 0
      %230 = vmatpush1.bf16.msra.mxu0 0
      %231 = vmatprep.subr.bf16.mxu0 0
      %232 = vmatpush1.bf16.msra.mxu0 0
      %233 = vmatprep.subr.bf16.mxu0 0
      %234 = vmatpush1.bf16.msra.mxu0 0
      %235 = vmatprep.subr.bf16.mxu0 0
      %236 = vmatpush1.bf16.msra.mxu0 0
      %237 = vmatprep.subr.bf16.mxu0 0
      %238 = vmatpush1.bf16.msra.mxu0 0
      %239 = vmatprep.subr.bf16.mxu0 0
      %240 = vmatpush1.bf16.msra.mxu0 0
      %241 = vmatprep.subr.bf16.mxu0 0
      %242 = vmatpush1.bf16.msra.mxu0 0
      %243 = vmatprep.mubr.bf16.mxu0 0
      %244 = vmatmul.mubr.bf16.gmra.mrb[0].mxu0 %v209
      %v245 = vpop.f32.mrb[0].mxu0
      %v246 = vadd.f32 0.0, %v245
      %v247 = vpop.f32.mrb[0].mxu0
      %v248 = vpop.f32.mrb[0].mxu0
      %v249 = vadd.f32 0.0, %v248
      %v250 = vpop.f32.mrb[0].mxu0
      %251 = vdwg.mxu0
      %252 = vrot.lane.b32.xlu0 %v126, 64
      %v253 = vpop.permute.xlu0 %252
      %254 = vrot.lane.b32.xlu0 %v129, 64
      %v255 = vpop.permute.xlu0 %254
      %v257 = vsel %vm130, %v253, 0
      %v260 = vsel %vm130, %v255, 0
      %262 = vmatprep.subr.bf16.mxu0 0
      %263 = vmatpush1.bf16.xpose.msra.mxu0 %v260
      %264 = vmatprep.subr.bf16.mxu0 0
      %265 = vmatpush1.bf16.xpose.msra.mxu0 0
      %266 = vmatprep.subr.bf16.mxu0 0
      %267 = vmatpush1.bf16.xpose.msra.mxu0 0
      %268 = vmatprep.subr.bf16.mxu0 0
      %269 = vmatpush1.bf16.xpose.msra.mxu0 0
      %270 = vmatprep.subr.bf16.mxu0 0
      %271 = vmatpush1.bf16.xpose.msra.mxu0 0
      %272 = vmatprep.subr.bf16.mxu0 0
      %273 = vmatpush1.bf16.xpose.msra.mxu0 0
      %274 = vmatprep.subr.bf16.mxu0 0
      %275 = vmatpush1.bf16.xpose.msra.mxu0 0
      %276 = vmatprep.subr.bf16.mxu0 0
      %277 = vmatpush1.bf16.xpose.msra.mxu0 0
      %278 = vmatprep.subr.bf16.mxu0 0
      %279 = vmatpush1.bf16.xpose.msra.mxu0 0
      %280 = vmatprep.subr.bf16.mxu0 0
      %281 = vmatpush1.bf16.xpose.msra.mxu0 0
      %282 = vmatprep.subr.bf16.mxu0 0
      %283 = vmatpush1.bf16.xpose.msra.mxu0 0
      %284 = vmatprep.subr.bf16.mxu0 0
      %285 = vmatpush1.bf16.xpose.msra.mxu0 0
      %286 = vmatprep.subr.bf16.mxu0 0
      %287 = vmatpush1.bf16.xpose.msra.mxu0 0
      %288 = vmatprep.subr.bf16.mxu0 0
      %289 = vmatpush1.bf16.xpose.msra.mxu0 0
      %290 = vmatprep.subr.bf16.mxu0 0
      %291 = vmatpush1.bf16.xpose.msra.mxu0 0
      %292 = vmatprep.subr.bf16.mxu0 0
      %293 = vmatpush1.bf16.xpose.msra.mxu0 0
      %294 = vmatprep.mubr.bf16.mxu0 0
      %295 = vmatmul.mubr.bf16.gmra.mrb[0].mxu0 %v257
      %v296 = vpop.f32.mrb[0].mxu0
      %v297 = vadd.f32 0.0, %v296
      %v298 = vpop.f32.mrb[0].mxu0
      %v299 = vpop.f32.mrb[0].mxu0
      %v300 = vadd.f32 0.0, %v299
      %v301 = vpop.f32.mrb[0].mxu0
      %302 = vdwg.mxu0
      %v303 = vsel %vm178, %v297, -inf
      %304 = vmax.xlane.f32.xlu0 %v303
      %v305 = vpop.xlane.xlu0 %304
      %v306 = vsel %vm178, %v300, -inf
      %307 = vmax.xlane.f32.xlu0 %v306
      %v308 = vpop.xlane.xlu0 %307
      %v309 = vsub.f32 %v297, %v305
      %v310 = vsub.f32 %v300, %v308
      %v311 = vmul.f32 %v309, 1.442695
      %v312 = vpow.pop %v311
      %v313 = vmul.f32 %v310, 1.442695
      %v314 = vpow.pop %v313
      %v315 = vsel %vm178, %v312, 0.0
      %316 = vadd.xlane.f32.xlu0 %v315
      %v317 = vpop.xlane.xlu0 %316
      %v318 = vsel %vm178, %v314, 0.0
      %319 = vadd.xlane.f32.xlu0 %v318
      %v320 = vpop.xlane.xlu0 %319
      %v321 = vrcp.pop %v317
      %v322 = vrcp.pop %v320
      %v323 = vmul.f32 %v312, %v321
      %v324 = vmul.f32 %v314, %v322
      %v325 = vpack.c.bf16 %v324, %v323
      %326 = vrot.lane.b32.xlu0 %v206, 64
      %v327 = vpop.permute.xlu0 %326
      %v330 = vsel %vm178, %v325, 0
      %332 = vmatprep.subr.bf16.mxu0 0
      %333 = vmatpush1.bf16.msra.mxu0 %v327
      %334 = vmatprep.subr.bf16.mxu0 0
      %335 = vmatpush1.bf16.msra.mxu0 0
      %336 = vmatprep.subr.bf16.mxu0 0
      %337 = vmatpush1.bf16.msra.mxu0 0
      %338 = vmatprep.subr.bf16.mxu0 0
      %339 = vmatpush1.bf16.msra.mxu0 0
      %340 = vmatprep.subr.bf16.mxu0 0
      %341 = vmatpush1.bf16.msra.mxu0 0
      %342 = vmatprep.subr.bf16.mxu0 0
      %343 = vmatpush1.bf16.msra.mxu0 0
      %344 = vmatprep.subr.bf16.mxu0 0
      %345 = vmatpush1.bf16.msra.mxu0 0
      %346 = vmatprep.subr.bf16.mxu0 0
      %347 = vmatpush1.bf16.msra.mxu0 0
      %348 = vmatprep.subr.bf16.mxu0 0
      %349 = vmatpush1.bf16.msra.mxu0 0
      %350 = vmatprep.subr.bf16.mxu0 0
      %351 = vmatpush1.bf16.msra.mxu0 0
      %352 = vmatprep.subr.bf16.mxu0 0
      %353 = vmatpush1.bf16.msra.mxu0 0
      %354 = vmatprep.subr.bf16.mxu0 0
      %355 = vmatpush1.bf16.msra.mxu0 0
      %356 = vmatprep.subr.bf16.mxu0 0
      %357 = vmatpush1.bf16.msra.mxu0 0
      %358 = vmatprep.subr.bf16.mxu0 0
      %359 = vmatpush1.bf16.msra.mxu0 0
      %360 = vmatprep.subr.bf16.mxu0 0
      %361 = vmatpush1.bf16.msra.mxu0 0
      %362 = vmatprep.subr.bf16.mxu0 0
      %363 = vmatpush1.bf16.msra.mxu0 0
      %364 = vmatprep.mubr.bf16.mxu0 0
      %365 = vmatmul.mubr.bf16.gmra.mrb[0].mxu0 %v330
      %v366 = vpop.f32.mrb[0].mxu0
      %v367 = vadd.f32 0.0, %v366
      %v368 = vpop.f32.mrb[0].mxu0
      %v369 = vpop.f32.mrb[0].mxu0
      %v370 = vadd.f32 0.0, %v369
      %v371 = vpop.f32.mrb[0].mxu0
      %372 = vdwg.mxu0
      %375 = vrot.lane.b32.xlu0 %v367, 64
      %v376 = vpop.permute.xlu0 %375
      %377 = vrot.lane.b32.xlu0 %v370, 64
      %v378 = vpop.permute.xlu0 %377
      %v381 = vsel %vm130, %v246, %v376
      %v382 = vsel %vm130, %v249, %v378
      %v383 = vpack.c.bf16 %v382, %v381
      %v385 = vunpack.c.l.b16 %v383
      %v386 = vunpack.c.h.b16 %v383
      %v387 = vpack.c.b16 %v385, %v385
      %v388 = vpack.c.b16 %v386, %v386
      %391 = vst [vmem:[%s116] sm:$0xf] %v387
      %392 = vst [vmem:[%s116 + $0x4] sm:$0xf] %v388
      %p393 = scmp.lt.s32.totalorder %s12, 1
      %s394 = scalar_select %p393, %s12, 1
      %s395 = smul.addr %s394, 2
      %s396 = smul.addr %s395, 4
      %s397 = scalar_lea.vmem %s1, %s396
      // Predicated region
      $region25: #{pallas_forward.14} parent=23 // pred_check
        %p398 = pneg %p56
      $region26: #{pallas_forward.14} parent=23 // pred_check_branch
        %400 = sbr.rel (%p398) target = $region28
      $region27: #{pallas_forward.14} parent=23 // pred_region
        _
      $region28: #{pallas_forward.14} parent=23 // pred_fallthru
        _
    $region24: #{pallas_forward.14} parent=5 // pred_fallthru
      _
    %p401 = scmp.le.s32.totalorder 2, %s7
    // Predicated region
    $region29: #{pallas_forward.14} parent=5 // pred_check
      %p402 = pneg %p401
    $region30: #{pallas_forward.14} parent=5 // pred_check_branch
      %404 = sbr.rel (%p402) target = $region32
    $region31: #{pallas_forward.14} parent=5 // pred_region
      %s405 = ssub.s32 %s7, 2
      // Predicated region
      $region33: #{pallas_forward.14} parent=31 // pred_check
        %p406 = pneg %p62
      $region34: #{pallas_forward.14} parent=31 // pred_check_branch
        %408 = sbr.rel (%p406) target = $region36
      $region35: #{pallas_forward.14} parent=31 // pred_region
        %p409 = scmp.lt.s32.totalorder %s13, 1
        %s410 = scalar_select %p409, %s13, 1
        %s411 = smul.addr %s410, 2
        %s412 = smul.addr %s411, 4
        %s413 = scalar_lea.vmem %s1, %s412
      $region36: #{pallas_forward.14} parent=31 // pred_fallthru
        _
    $region32: #{pallas_forward.14} parent=5 // pred_fallthru
      _
  $region6: #{pallas_forward.14} parent=0 // loop_footer
    %s11 = sadd.s32 1, %s7
  $region7: #{pallas_forward.14} parent=0 // loop_footer_branch
    %6 = sbr.rel target = $region3
  $region8: #{pallas_forward.14} parent=0 // loop_exit
    _

// kernel: pallas_forward.15
$region0: #{pallas_forward.15}
  #allocation0 [shape = 'u32[]', space=smem, size = 0x4, offset = 0x4, fixed_abs, tag = 'smem constant byte address 0x4 - core index']
  #allocation1 [shape = 'u32[144,128]{1,0:T(1,128)}', space=vmem, size = 0x12000, scoped, tag = 'internal scratch']
  %s0 = inlined_call_operand.vmem [shape: f32[32,128], index: 0, kind: input, shape index: {}]
  %s1 = inlined_call_operand.vmem [shape: bf16[32,128], index: 1, kind: input, shape index: {}]
  %s2 = inlined_call_operand.vmem [shape: bf16[128,128], index: 2, kind: input, shape index: {}]
  %s3 = inlined_call_operand.vmem [shape: f32[1,128], index: 3, kind: input, shape index: {}]
  %s4 = inlined_call_operand.vmem [shape: f32[1,128], index: 4, kind: input, shape index: {}]
  %s5 = inlined_call_operand.vmem [shape: f32[1,128], index: 5, kind: input, shape index: {}]
  %s6 = inlined_call_operand.vmem [shape: f32[32,128], index: 6, kind: output, shape index: {}]
  %s7 = sld [smem:[#allocation0]]
  $region34: #{pallas_forward.15} parent=0
    _
  %s9 = ssub.s32 1, %s7
  %s10 = scalar_select 0, %s9, %s7
  // Predicated region
  $region2: #{pallas_forward.15} parent=0 // pred_check
    _
  $region3: #{pallas_forward.15} parent=0 // pred_check_branch
    %12 = sbr.rel (0) target = $region5
  $region4: #{pallas_forward.15} parent=0 // pred_region
    _
  $region5: #{pallas_forward.15} parent=0 // pred_fallthru
    _
  // Predicated region
  $region6: #{pallas_forward.15} parent=0 // pred_check
    _
  $region7: #{pallas_forward.15} parent=0 // pred_check_branch
    %14 = sbr.rel (0) target = $region9
  $region8: #{pallas_forward.15} parent=0 // pred_region
    _
  $region9: #{pallas_forward.15} parent=0 // pred_fallthru
    _
  // Predicated region
  $region10: #{pallas_forward.15} parent=0 // pred_check
    _
  $region11: #{pallas_forward.15} parent=0 // pred_check_branch
    %16 = sbr.rel (0) target = $region13
  $region12: #{pallas_forward.15} parent=0 // pred_region
    _
  $region13: #{pallas_forward.15} parent=0 // pred_fallthru
    _
  // Predicated region
  $region14: #{pallas_forward.15} parent=0 // pred_check
    _
  $region15: #{pallas_forward.15} parent=0 // pred_check_branch
    %18 = sbr.rel (0) target = $region17
  $region16: #{pallas_forward.15} parent=0 // pred_region
    _
  $region17: #{pallas_forward.15} parent=0 // pred_fallthru
    _
  // Predicated region
  $region18: #{pallas_forward.15} parent=0 // pred_check
    _
  $region19: #{pallas_forward.15} parent=0 // pred_check_branch
    %20 = sbr.rel (0) target = $region21
  $region20: #{pallas_forward.15} parent=0 // pred_region
    _
  $region21: #{pallas_forward.15} parent=0 // pred_fallthru
    _
  // Predicated region
  $region22: #{pallas_forward.15} parent=0 // pred_check
    _
  $region23: #{pallas_forward.15} parent=0 // pred_check_branch
    %22 = sbr.rel (0) target = $region25
  $region24: #{pallas_forward.15} parent=0 // pred_region
    _
  $region25: #{pallas_forward.15} parent=0 // pred_fallthru
    _
  %v24 = vld [vmem:[%s0] sm:$0xff]
  %v25 = vld [vmem:[%s0 + $0x8] sm:$0xff]
  %v26 = vld [vmem:[%s0 + $0x10] sm:$0xff]
  %v27 = vld [vmem:[%s0 + $0x18] sm:$0xff]
  %v28 = vld [vmem:[%s1] sm:$0xf]
  %v29 = vld [vmem:[%s1 + $0x4] sm:$0xf]
  %v30 = vld [vmem:[%s1 + $0x8] sm:$0xf]
  %v31 = vld [vmem:[%s1 + $0xc] sm:$0xf]
  %v32 = vld [vmem:[%s2] sm:$0xf]
  %v33 = vld [vmem:[%s2 + $0x4] sm:$0xf]
  %v34 = vld [vmem:[%s2 + $0x8] sm:$0xf]
  %v35 = vld [vmem:[%s2 + $0xc] sm:$0xf]
  %v36 = vld [vmem:[%s2 + $0x10] sm:$0xf]
  %v37 = vld [vmem:[%s2 + $0x14] sm:$0xf]
  %v38 = vld [vmem:[%s2 + $0x18] sm:$0xf]
  %v39 = vld [vmem:[%s2 + $0x1c] sm:$0xf]
  %v40 = vld [vmem:[%s2 + $0x20] sm:$0xf]
  %v41 = vld [vmem:[%s2 + $0x24] sm:$0xf]
  %v42 = vld [vmem:[%s2 + $0x28] sm:$0xf]
  %v43 = vld [vmem:[%s2 + $0x2c] sm:$0xf]
  %v44 = vld [vmem:[%s2 + $0x30] sm:$0xf]
  %v45 = vld [vmem:[%s2 + $0x34] sm:$0xf]
  %v46 = vld [vmem:[%s2 + $0x38] sm:$0xf]
  %v47 = vld [vmem:[%s2 + $0x3c] sm:$0xf]
  %v52 = vunpack.c.l.b16 %v28
  %v53 = vunpack.c.l.b16 %v29
  %v54 = vunpack.c.l.b16 %v30
  %v55 = vunpack.c.l.b16 %v31
  %v56 = vpack.c.b16 %v53, %v52
  %v57 = vpack.c.b16 %v55, %v54
  %v76 = vunpack.c.l.b16 %v32
  %v77 = vunpack.c.l.b16 %v33
  %v78 = vunpack.c.l.b16 %v34
  %v79 = vunpack.c.l.b16 %v35
  %v80 = vunpack.c.l.b16 %v36
  %v81 = vunpack.c.l.b16 %v37
  %v82 = vunpack.c.l.b16 %v38
  %v83 = vunpack.c.l.b16 %v39
  %v84 = vunpack.c.l.b16 %v40
  %v85 = vunpack.c.l.b16 %v41
  %v86 = vunpack.c.l.b16 %v42
  %v87 = vunpack.c.l.b16 %v43
  %v88 = vunpack.c.l.b16 %v44
  %v89 = vunpack.c.l.b16 %v45
  %v90 = vunpack.c.l.b16 %v46
  %v91 = vunpack.c.l.b16 %v47
  %v92 = vpack.c.b16 %v77, %v76
  %v93 = vpack.c.b16 %v79, %v78
  %v94 = vpack.c.b16 %v81, %v80
  %v95 = vpack.c.b16 %v83, %v82
  %v96 = vpack.c.b16 %v85, %v84
  %v97 = vpack.c.b16 %v87, %v86
  %v98 = vpack.c.b16 %v89, %v88
  %v99 = vpack.c.b16 %v91, %v90
  %108 = vmatprep.subr.bf16.mxu0 0
  %109 = vmatpush1.bf16.msra.mxu0 %v92
  %110 = vmatprep.subr.bf16.mxu0 0
  %111 = vmatpush1.bf16.msra.mxu0 %v93
  %112 = vmatprep.subr.bf16.mxu0 0
  %113 = vmatpush1.bf16.msra.mxu0 %v94
  %114 = vmatprep.subr.bf16.mxu0 0
  %115 = vmatpush1.bf16.msra.mxu0 %v95
  %116 = vmatprep.subr.bf16.mxu0 0
  %117 = vmatpush1.bf16.msra.mxu0 %v96
  %118 = vmatprep.subr.bf16.mxu0 0
  %119 = vmatpush1.bf16.msra.mxu0 %v97
  %120 = vmatprep.subr.bf16.mxu0 0
  %121 = vmatpush1.bf16.msra.mxu0 %v98
  %122 = vmatprep.subr.bf16.mxu0 0
  %123 = vmatpush1.bf16.msra.mxu0 %v99
  %124 = vmatprep.subr.bf16.mxu0 0
  %125 = vmatpush1.bf16.msra.mxu0 0
  %126 = vmatprep.subr.bf16.mxu0 0
  %127 = vmatpush1.bf16.msra.mxu0 0
  %128 = vmatprep.subr.bf16.mxu0 0
  %129 = vmatpush1.bf16.msra.mxu0 0
  %130 = vmatprep.subr.bf16.mxu0 0
  %131 = vmatpush1.bf16.msra.mxu0 0
  %132 = vmatprep.subr.bf16.mxu0 0
  %133 = vmatpush1.bf16.msra.mxu0 0
  %134 = vmatprep.subr.bf16.mxu0 0
  %135 = vmatpush1.bf16.msra.mxu0 0
  %136 = vmatprep.subr.bf16.mxu0 0
  %137 = vmatpush1.bf16.msra.mxu0 0
  %138 = vmatprep.subr.bf16.mxu0 0
  %139 = vmatpush1.bf16.msra.mxu0 0
  %140 = vmatprep.mubr.bf16.mxu0 0
  %141 = vmatmul.mubr.bf16.gmra.mrb[0].mxu0 %v56
  %v142 = vpop.f32.mrb[0].mxu0
  %v143 = vadd.f32 0.0, %v142
  %v144 = vpop.f32.mrb[0].mxu0
  %v145 = vpop.f32.mrb[0].mxu0
  %v146 = vadd.f32 0.0, %v145
  %v147 = vpop.f32.mrb[0].mxu0
  %148 = vmatprep.mubr.bf16.mxu0 0
  %149 = vmatmul.mubr.bf16.gmra.mrb[0].mxu0 %v57
  %v150 = vpop.f32.mrb[0].mxu0
  %v151 = vadd.f32 0.0, %v150
  %v152 = vpop.f32.mrb[0].mxu0
  %v153 = vpop.f32.mrb[0].mxu0
  %v154 = vadd.f32 0.0, %v153
  %v155 = vpop.f32.mrb[0].mxu0
  %156 = vdwg.mxu0
  %v157 = vadd.f32 %v24, %v143
  %v158 = vadd.f32 %v25, %v146
  %v159 = vadd.f32 %v26, %v151
  %v160 = vadd.f32 %v27, %v154
  %v161 = vld [vmem:[%s3] sm:$0x1]
  %v163 = vlaneseq
  %v164 = vshrl.u32 %v163, 7
  %v165 = vsub.s32 0, %v164
  %v166 = vrot.slane %v161, %v165
  %v168 = vadd.f32 %v157, %v166
  %v169 = vadd.f32 %v158, %v166
  %v170 = vadd.f32 %v159, %v166
  %v171 = vadd.f32 %v160, %v166
  %v172 = vld [vmem:[%s4] sm:$0x1]
  %v173 = vld [vmem:[%s5] sm:$0x1]
  %174 = vadd.xlane.f32.xlu0 %v168
  %v175 = vpop.xlane.xlu0 %174
  %176 = vadd.xlane.f32.xlu0 %v169
  %v177 = vpop.xlane.xlu0 %176
  %178 = vadd.xlane.f32.xlu0 %v170
  %v179 = vpop.xlane.xlu0 %178
  %180 = vadd.xlane.f32.xlu0 %v171
  %v181 = vpop.xlane.xlu0 %180
  %v182 = vrcp.pop 128.0
  %v183 = vmul.f32 %v175, %v182
  %v184 = vmul.f32 %v177, %v182
  %v185 = vmul.f32 %v179, %v182
  %v186 = vmul.f32 %v181, %v182
  %v187 = vsub.f32 %v168, %v183
  %v188 = vsub.f32 %v169, %v184
  %v189 = vsub.f32 %v170, %v185
  %v190 = vsub.f32 %v171, %v186
  %v191 = vmul.f32 %v187, %v187
  %v192 = vmul.f32 %v188, %v188
  %v193 = vmul.f32 %v189, %v189
  %v194 = vmul.f32 %v190, %v190
  %195 = vadd.xlane.f32.xlu0 %v191
  %v196 = vpop.xlane.xlu0 %195
  %197 = vadd.xlane.f32.xlu0 %v192
  %v198 = vpop.xlane.xlu0 %197
  %199 = vadd.xlane.f32.xlu0 %v193
  %v200 = vpop.xlane.xlu0 %199
  %201 = vadd.xlane.f32.xlu0 %v194
  %v202 = vpop.xlane.xlu0 %201
  %v203 = vmul.f32 %v196, %v182
  %v204 = vmul.f32 %v198, %v182
  %v205 = vmul.f32 %v200, %v182
  %v206 = vmul.f32 %v202, %v182
  %v207 = vadd.f32 %v203, 1e-05
  %v208 = vadd.f32 %v204, 1e-05
  %v209 = vadd.f32 %v205, 1e-05
  %v210 = vadd.f32 %v206, 1e-05
  %v211 = vrsqrt.pop %v207
  %v212 = vrsqrt.pop %v208
  %v213 = vrsqrt.pop %v209
  %v214 = vrsqrt.pop %v210
  %v215 = vmul.f32 %v187, %v211
  %v216 = vmul.f32 %v188, %v212
  %v217 = vmul.f32 %v189, %v213
  %v218 = vmul.f32 %v190, %v214
  %v220 = vlaneseq
  %v221 = vshrl.u32 %v220, 7
  %v222 = vsub.s32 0, %v221
  %v223 = vrot.slane %v172, %v222
  %v225 = vmul.f32 %v215, %v223
  %v226 = vmul.f32 %v216, %v223
  %v227 = vmul.f32 %v217, %v223
  %v228 = vmul.f32 %v218, %v223
  %v230 = vlaneseq
  %v231 = vshrl.u32 %v230, 7
  %v232 = vsub.s32 0, %v231
  %v233 = vrot.slane %v173, %v232
  %v235 = vadd.f32 %v225, %v233
  %v236 = vadd.f32 %v226, %v233
  %v237 = vadd.f32 %v227, %v233
  %v238 = vadd.f32 %v228, %v233
  %239 = vst [vmem:[%s6] sm:$0xff] %v235
  %240 = vst [vmem:[%s6 + $0x8] sm:$0xff] %v236
  %241 = vst [vmem:[%s6 + $0x10] sm:$0xff] %v237
  %242 = vst [vmem:[%s6 + $0x18] sm:$0xff] %v238
  // Predicated region
  $region26: #{pallas_forward.15} parent=0 // pred_check
    _
  $region27: #{pallas_forward.15} parent=0 // pred_check_branch
    %244 = sbr.rel (0) target = $region29
  $region28: #{pallas_forward.15} parent=0 // pred_region
    _
  $region29: #{pallas_forward.15} parent=0 // pred_fallthru
    _
  // Predicated region
  $region30: #{pallas_forward.15} parent=0 // pred_check
    _
  $region31: #{pallas_forward.15} parent=0 // pred_check_branch
    %246 = sbr.rel (0) target = $region33
  $region32: #{pallas_forward.15} parent=0 // pred_region
    _
  $region33: #{pallas_forward.15} parent=0 // pred_fallthru
    _

// kernel: pallas_forward.21
$region0: #{pallas_forward.21}
  #allocation0 [shape = 'u32[]', space=smem, size = 0x4, offset = 0x4, fixed_abs, tag = 'smem constant byte address 0x4 - core index']
  #allocation1 [shape = 'u32[144,128]{1,0:T(1,128)}', space=vmem, size = 0x12000, scoped, tag = 'internal scratch']
  %s0 = inlined_call_operand.vmem [shape: f32[2,128], index: 0, kind: input, shape index: {}]
  %s1 = inlined_call_operand.vmem [shape: f32[1,128], index: 1, kind: input, shape index: {}]
  %s2 = inlined_call_operand.vmem [shape: f32[1,128], index: 2, kind: input, shape index: {}]
  %s3 = inlined_call_operand.vmem [shape: bf16[128,128], index: 3, kind: input, shape index: {}]
  %s4 = inlined_call_operand.vmem [shape: f32[1,128], index: 4, kind: input, shape index: {}]
  %s5 = inlined_call_operand.hbm [shape: f32[2,128], index: 5, kind: output, shape index: {}]
  %s6 = sld [smem:[#allocation0]]
  $region30: #{pallas_forward.21} parent=0
    _
  %s8 = ssub.s32 1, %s6
  %s9 = scalar_select 0, %s8, %s6
  $region1: #{pallas_forward.21} parent=0
    #allocation2 [shape = 'u8[1024]{0}', space=vmem, size = 0x400, scoped, tag = 'output window, operand 0, single buffered']
    #allocation3 [shape = 's32[1]{0}', space=sflag, size = 0x4, scoped, tag = 'scoped memory for pallas_forward.21']
    %10 = vsyncpa [#allocation3], 0
    // Predicated region
    $region2: #{pallas_forward.21} parent=1 // pred_check
      _
    $region3: #{pallas_forward.21} parent=1 // pred_check_branch
      %12 = sbr.rel (0) target = $region5
    $region4: #{pallas_forward.21} parent=1 // pred_region
      _
    $region5: #{pallas_forward.21} parent=1 // pred_fallthru
      _
    // Predicated region
    $region6: #{pallas_forward.21} parent=1 // pred_check
      _
    $region7: #{pallas_forward.21} parent=1 // pred_check_branch
      %14 = sbr.rel (0) target = $region9
    $region8: #{pallas_forward.21} parent=1 // pred_region
      _
    $region9: #{pallas_forward.21} parent=1 // pred_fallthru
      _
    // Predicated region
    $region10: #{pallas_forward.21} parent=1 // pred_check
      _
    $region11: #{pallas_forward.21} parent=1 // pred_check_branch
      %16 = sbr.rel (0) target = $region13
    $region12: #{pallas_forward.21} parent=1 // pred_region
      _
    $region13: #{pallas_forward.21} parent=1 // pred_fallthru
      _
    // Predicated region
    $region14: #{pallas_forward.21} parent=1 // pred_check
      _
    $region15: #{pallas_forward.21} parent=1 // pred_check_branch
      %18 = sbr.rel (0) target = $region17
    $region16: #{pallas_forward.21} parent=1 // pred_region
      _
    $region17: #{pallas_forward.21} parent=1 // pred_fallthru
      _
    // Predicated region
    $region18: #{pallas_forward.21} parent=1 // pred_check
      _
    $region19: #{pallas_forward.21} parent=1 // pred_check_branch
      %20 = sbr.rel (0) target = $region21
    $region20: #{pallas_forward.21} parent=1 // pred_region
      _
    $region21: #{pallas_forward.21} parent=1 // pred_fallthru
      _
    %v22 = vld [vmem:[%s0] sm:$0x3]
    %v23 = vld [vmem:[%s1] sm:$0x1]
    %v24 = vld [vmem:[%s2] sm:$0x1]
    %vm25 = vcmask 1041408
    %v26 = vsel %vm25, %v22, 0.0
    %27 = vadd.xlane.f32.xlu0 %v26
    %v28 = vpop.xlane.xlu0 %27
    %v29 = vrcp.pop 128.0
    %v30 = vmul.f32 %v28, %v29
    %v31 = vsub.f32 %v22, %v30
    %v32 = vmul.f32 %v31, %v31
    %v33 = vsel %vm25, %v32, 0.0
    %34 = vadd.xlane.f32.xlu0 %v33
    %v35 = vpop.xlane.xlu0 %34
    %v36 = vmul.f32 %v35, %v29
    %v37 = vadd.f32 %v36, 1e-05
    %v38 = vrsqrt.pop %v37
    %v39 = vmul.f32 %v31, %v38
    %v41 = vlaneseq
    %v42 = vshrl.u32 %v41, 7
    %v43 = vsub.s32 0, %v42
    %v44 = vrot.slane %v23, %v43
    %v46 = vmul.f32 %v39, %v44
    %v48 = vlaneseq
    %v49 = vshrl.u32 %v48, 7
    %v50 = vsub.s32 0, %v49
    %v51 = vrot.slane %v24, %v50
    %v53 = vadd.f32 %v46, %v51
    %v54 = vpack.c.bf16 %v53, %v53
    %v55 = vld [vmem:[%s3] sm:$0xf]
    %v56 = vld [vmem:[%s3 + $0x4] sm:$0xf]
    %v57 = vld [vmem:[%s3 + $0x8] sm:$0xf]
    %v58 = vld [vmem:[%s3 + $0xc] sm:$0xf]
    %v59 = vld [vmem:[%s3 + $0x10] sm:$0xf]
    %v60 = vld [vmem:[%s3 + $0x14] sm:$0xf]
    %v61 = vld [vmem:[%s3 + $0x18] sm:$0xf]
    %v62 = vld [vmem:[%s3 + $0x1c] sm:$0xf]
    %v63 = vld [vmem:[%s3 + $0x20] sm:$0xf]
    %v64 = vld [vmem:[%s3 + $0x24] sm:$0xf]
    %v65 = vld [vmem:[%s3 + $0x28] sm:$0xf]
    %v66 = vld [vmem:[%s3 + $0x2c] sm:$0xf]
    %v67 = vld [vmem:[%s3 + $0x30] sm:$0xf]
    %v68 = vld [vmem:[%s3 + $0x34] sm:$0xf]
    %v69 = vld [vmem:[%s3 + $0x38] sm:$0xf]
    %v70 = vld [vmem:[%s3 + $0x3c] sm:$0xf]
    %v71 = vld [vmem:[%s4] sm:$0x1]
    %v73 = vlaneseq
    %v74 = vshrl.u32 %v73, 7
    %v75 = vsub.s32 0, %v74
    %v76 = vrot.slane %v71, %v75
    %v94 = vunpack.c.l.b16 %v55
    %v95 = vunpack.c.l.b16 %v56
    %v96 = vunpack.c.l.b16 %v57
    %v97 = vunpack.c.l.b16 %v58
    %v98 = vunpack.c.l.b16 %v59
    %v99 = vunpack.c.l.b16 %v60
    %v100 = vunpack.c.l.b16 %v61
    %v101 = vunpack.c.l.b16 %v62
    %v102 = vunpack.c.l.b16 %v63
    %v103 = vunpack.c.l.b16 %v64
    %v104 = vunpack.c.l.b16 %v65
    %v105 = vunpack.c.l.b16 %v66
    %v106 = vunpack.c.l.b16 %v67
    %v107 = vunpack.c.l.b16 %v68
    %v108 = vunpack.c.l.b16 %v69
    %v109 = vunpack.c.l.b16 %v70
    %v110 = vpack.c.b16 %v95, %v94
    %v111 = vpack.c.b16 %v97, %v96
    %v112 = vpack.c.b16 %v99, %v98
    %v113 = vpack.c.b16 %v101, %v100
    %v114 = vpack.c.b16 %v103, %v102
    %v115 = vpack.c.b16 %v105, %v104
    %v116 = vpack.c.b16 %v107, %v106
    %v117 = vpack.c.b16 %v109, %v108
    %126 = vmatprep.subr.bf16.mxu0 0
    %127 = vmatpush1.bf16.msra.mxu0 %v110
    %128 = vmatprep.subr.bf16.mxu0 0
    %129 = vmatpush1.bf16.msra.mxu0 %v111
    %130 = vmatprep.subr.bf16.mxu0 0
    %131 = vmatpush1.bf16.msra.mxu0 %v112
    %132 = vmatprep.subr.bf16.mxu0 0
    %133 = vmatpush1.bf16.msra.mxu0 %v113
    %134 = vmatprep.subr.bf16.mxu0 0
    %135 = vmatpush1.bf16.msra.mxu0 %v114
    %136 = vmatprep.subr.bf16.mxu0 0
    %137 = vmatpush1.bf16.msra.mxu0 %v115
    %138 = vmatprep.subr.bf16.mxu0 0
    %139 = vmatpush1.bf16.msra.mxu0 %v116
    %140 = vmatprep.subr.bf16.mxu0 0
    %141 = vmatpush1.bf16.msra.mxu0 %v117
    %142 = vmatprep.subr.bf16.mxu0 0
    %143 = vmatpush1.bf16.msra.mxu0 0
    %144 = vmatprep.subr.bf16.mxu0 0
    %145 = vmatpush1.bf16.msra.mxu0 0
    %146 = vmatprep.subr.bf16.mxu0 0
    %147 = vmatpush1.bf16.msra.mxu0 0
    %148 = vmatprep.subr.bf16.mxu0 0
    %149 = vmatpush1.bf16.msra.mxu0 0
    %150 = vmatprep.subr.bf16.mxu0 0
    %151 = vmatpush1.bf16.msra.mxu0 0
    %152 = vmatprep.subr.bf16.mxu0 0
    %153 = vmatpush1.bf16.msra.mxu0 0
    %154 = vmatprep.subr.bf16.mxu0 0
    %155 = vmatpush1.bf16.msra.mxu0 0
    %156 = vmatprep.subr.bf16.mxu0 0
    %157 = vmatpush1.bf16.msra.mxu0 0
    %158 = vmatprep.mubr.bf16.mxu0 0
    %159 = vmatmul.mubr.bf16.gmra.mrb[0].mxu0 %v54
    %v160 = vpop.f32.mrb[0].mxu0
    %v161 = vadd.f32 %v76, %v160
    %v162 = vpop.f32.mrb[0].mxu0
    %v163 = vpop.f32.mrb[0].mxu0
    %v164 = vpop.f32.mrb[0].mxu0
    %165 = vdwg.mxu0
    %166 = vst [vmem:[#allocation2] sm:$0x3] %v161
    // Predicated region
    $region22: #{pallas_forward.21} parent=1 // pred_check
      _
    $region23: #{pallas_forward.21} parent=1 // pred_check_branch
      %168 = sbr.rel (0) target = $region25
    $region24: #{pallas_forward.21} parent=1 // pred_region
      %s170 = ssub.s32 32, 32
      %171 = vsyncadd [#allocation3], %s170
      %s173 = sshll.u32 [#allocation2], 4
      %s174 = int_to_ptr.vmem [resolvable:$true] %s173
      %176 = dma.vmem_to_hbm [thread:$0]  %s174, 32, %s5, [#allocation3]
    $region25: #{pallas_forward.21} parent=1 // pred_fallthru
      _
    // Predicated region
    $region26: #{pallas_forward.21} parent=1 // pred_check
      _
    $region27: #{pallas_forward.21} parent=1 // pred_check_branch
      %178 = sbr.rel (0) target = $region29
    $region28: #{pallas_forward.21} parent=1 // pred_region
      %179 = dma.done [#allocation3], 32
    $region29: #{pallas_forward.21} parent=1 // pred_fallthru
      _
    %180 = vsyncpa [#allocation3], 1

// kernel: pallas_forward.16
$region0: #{pallas_forward.16}
  #allocation0 [shape = 'u32[]', space=smem, size = 0x4, offset = 0x4, fixed_abs, tag = 'smem constant byte address 0x4 - core index']
  #allocation1 [shape = 'u32[144,128]{1,0:T(1,128)}', space=vmem, size = 0x12000, scoped, tag = 'internal scratch']
  %s0 = inlined_call_operand.vmem [shape: f32[32,128], index: 0, kind: input, shape index: {}]
  %s1 = inlined_call_operand.vmem [shape: bf16[128,2048], index: 1, kind: input, shape index: {}]
  %s2 = inlined_call_operand.vmem [shape: f32[1,2048], index: 2, kind: input, shape index: {}]
  %s3 = inlined_call_operand.vmem [shape: bf16[2048,128], index: 3, kind: input, shape index: {}]
  %s4 = inlined_call_operand.vmem [shape: f32[1,128], index: 4, kind: input, shape index: {}]
  %s5 = inlined_call_operand.vmem [shape: f32[1,128], index: 5, kind: input, shape index: {}]
  %s6 = inlined_call_operand.vmem [shape: f32[1,128], index: 6, kind: input, shape index: {}]
  %s7 = inlined_call_operand.vmem [shape: f32[32,128], index: 7, kind: output, shape index: {}]
  %s8 = sld [smem:[#allocation0]]
  $region38: #{pallas_forward.16} parent=0
    _
  %s10 = ssub.s32 1, %s8
  %s11 = scalar_select 0, %s10, %s8
  // Predicated region
  $region2: #{pallas_forward.16} parent=0 // pred_check
    _
  $region3: #{pallas_forward.16} parent=0 // pred_check_branch
    %13 = sbr.rel (0) target = $region5
  $region4: #{pallas_forward.16} parent=0 // pred_region
    _
  $region5: #{pallas_forward.16} parent=0 // pred_fallthru
    _
  // Predicated region
  $region6: #{pallas_forward.16} parent=0 // pred_check
    _
  $region7: #{pallas_forward.16} parent=0 // pred_check_branch
    %15 = sbr.rel (0) target = $region9
  $region8: #{pallas_forward.16} parent=0 // pred_region
    _
  $region9: #{pallas_forward.16} parent=0 // pred_fallthru
    _
  // Predicated region
  $region10: #{pallas_forward.16} parent=0 // pred_check
    _
  $region11: #{pallas_forward.16} parent=0 // pred_check_branch
    %17 = sbr.rel (0) target = $region13
  $region12: #{pallas_forward.16} parent=0 // pred_region
    _
  $region13: #{pallas_forward.16} parent=0 // pred_fallthru
    _
  // Predicated region
  $region14: #{pallas_forward.16} parent=0 // pred_check
    _
  $region15: #{pallas_forward.16} parent=0 // pred_check_branch
    %19 = sbr.rel (0) target = $region17
  $region16: #{pallas_forward.16} parent=0 // pred_region
    _
  $region17: #{pallas_forward.16} parent=0 // pred_fallthru
    _
  // Predicated region
  $region18: #{pallas_forward.16} parent=0 // pred_check
    _
  $region19: #{pallas_forward.16} parent=0 // pred_check_branch
    %21 = sbr.rel (0) target = $region21
  $region20: #{pallas_forward.16} parent=0 // pred_region
    _
  $region21: #{pallas_forward.16} parent=0 // pred_fallthru
    _
  // Predicated region
  $region22: #{pallas_forward.16} parent=0 // pred_check
    _
  $region23: #{pallas_forward.16} parent=0 // pred_check_branch
    %23 = sbr.rel (0) target = $region25
  $region24: #{pallas_forward.16} parent=0 // pred_region
    _
  $region25: #{pallas_forward.16} parent=0 // pred_fallthru
    _
  // Predicated region
  $region26: #{pallas_forward.16} parent=0 // pred_check
    _
  $region27: #{pallas_forward.16} parent=0 // pred_check_branch
    %25 = sbr.rel (0) target = $region29
  $region28: #{pallas_forward.16} parent=0 // pred_region
    _
  $region29: #{pallas_forward.16} parent=0 // pred_fallthru
    _
  %v27 = vld [vmem:[%s0] sm:$0xff]
  %v28 = vld [vmem:[%s0 + $0x8] sm:$0xff]
  %v29 = vld [vmem:[%s0 + $0x10] sm:$0xff]
  %v30 = vld [vmem:[%s0 + $0x18] sm:$0xff]
  %v31 = vpack.c.bf16 %v28, %v27
  %v32 = vpack.c.bf16 %v30, %v29
  %v33 = vld [vmem:[%s1] sm:$0xff]
  %v34 = vld [vmem:[%s1 + $0x8] sm:$0xff]
  %v35 = vld [vmem:[%s1 + $0x10] sm:$0xff]
  %v36 = vld [vmem:[%s1 + $0x18] sm:$0xff]
  %v37 = vld [vmem:[%s1 + $0x20] sm:$0xff]
  %v38 = vld [vmem:[%s1 + $0x28] sm:$0xff]
  %v39 = vld [vmem:[%s1 + $0x30] sm:$0xff]
  %v40 = vld [vmem:[%s1 + $0x38] sm:$0xff]
  %v41 = vld [vmem:[%s1 + $0x40] sm:$0xff]
  %v42 = vld [vmem:[%s1 + $0x48] sm:$0xff]
  %v43 = vld [vmem:[%s1 + $0x50] sm:$0xff]
  %v44 = vld [vmem:[%s1 + $0x58] sm:$0xff]
  %v45 = vld [vmem:[%s1 + $0x60] sm:$0xff]
  %v46 = vld [vmem:[%s1 + $0x68] sm:$0xff]
  %v47 = vld [vmem:[%s1 + $0x70] sm:$0xff]
  %v48 = vld [vmem:[%s1 + $0x78] sm:$0xff]
  %v49 = vld [vmem:[%s1 + $0x80] sm:$0xff]
  %v50 = vld [vmem:[%s1 + $0x88] sm:$0xff]
  %v51 = vld [vmem:[%s1 + $0x90] sm:$0xff]
  %v52 = vld [vmem:[%s1 + $0x98] sm:$0xff]
  %v53 = vld [vmem:[%s1 + $0xa0] sm:$0xff]
  %v54 = vld [vmem:[%s1 + $0xa8] sm:$0xff]
  %v55 = vld [vmem:[%s1 + $0xb0] sm:$0xff]
  %v56 = vld [vmem:[%s1 + $0xb8] sm:$0xff]
  %v57 = vld [vmem:[%s1 + $0xc0] sm:$0xff]
  %v58 = vld [vmem:[%s1 + $0xc8] sm:$0xff]
  %v59 = vld [vmem:[%s1 + $0xd0] sm:$0xff]
  %v60 = vld [vmem:[%s1 + $0xd8] sm:$0xff]
  %v61 = vld [vmem:[%s1 + $0xe0] sm:$0xff]
  %v62 = vld [vmem:[%s1 + $0xe8] sm:$0xff]
  %v63 = vld [vmem:[%s1 + $0xf0] sm:$0xff]
  %v64 = vld [vmem:[%s1 + $0xf8] sm:$0xff]
  %v65 = vld [vmem:[%s1 + $0x100] sm:$0xff]
  %v66 = vld [vmem:[%s1 + $0x108] sm:$0xff]
  %v67 = vld [vmem:[%s1 + $0x110] sm:$0xff]
  %v68 = vld [vmem:[%s1 + $0x118] sm:$0xff]
  %v69 = vld [vmem:[%s1 + $0x120] sm:$0xff]
  %v70 = vld [vmem:[%s1 + $0x128] sm:$0xff]
  %v71 = vld [vmem:[%s1 + $0x130] sm:$0xff]
  %v72 = vld [vmem:[%s1 + $0x138] sm:$0xff]
  %v73 = vld [vmem:[%s1 + $0x140] sm:$0xff]
  %v74 = vld [vmem:[%s1 + $0x148] sm:$0xff]
  %v75 = vld [vmem:[%s1 + $0x150] sm:$0xff]
  %v76 = vld [vmem:[%s1 + $0x158] sm:$0xff]
  %v77 = vld [vmem:[%s1 + $0x160] sm:$0xff]
  %v78 = vld [vmem:[%s1 + $0x168] sm:$0xff]
  %v79 = vld [vmem:[%s1 + $0x170] sm:$0xff]
  %v80 = vld [vmem:[%s1 + $0x178] sm:$0xff]
  %v81 = vld [vmem:[%s1 + $0x180] sm:$0xff]
  %v82 = vld [vmem:[%s1 + $0x188] sm:$0xff]
  %v83 = vld [vmem:[%s1 + $0x190] sm:$0xff]
  %v84 = vld [vmem:[%s1 + $0x198] sm:$0xff]
  %v85 = vld [vmem:[%s1 + $0x1a0] sm:$0xff]
  %v86 = vld [vmem:[%s1 + $0x1a8] sm:$0xff]
  %v87 = vld [vmem:[%s1 + $0x1b0] sm:$0xff]
  %v88 = vld [vmem:[%s1 + $0x1b8] sm:$0xff]
  %v89 = vld [vmem:[%s1 + $0x1c0] sm:$0xff]
  %v90 = vld [vmem:[%s1 + $0x1c8] sm:$0xff]
  %v91 = vld [vmem:[%s1 + $0x1d0] sm:$0xff]
  %v92 = vld [vmem:[%s1 + $0x1d8] sm:$0xff]
  %v93 = vld [vmem:[%s1 + $0x1e0] sm:$0xff]
  %v94 = vld [vmem:[%s1 + $0x1e8] sm:$0xff]
  %v95 = vld [vmem:[%s1 + $0x1f0] sm:$0xff]
  %v96 = vld [vmem:[%s1 + $0x1f8] sm:$0xff]
  %v97 = vld [vmem:[%s1 + $0x200] sm:$0xff]
  %v98 = vld [vmem:[%s1 + $0x208] sm:$0xff]
  %v99 = vld [vmem:[%s1 + $0x210] sm:$0xff]
  %v100 = vld [vmem:[%s1 + $0x218] sm:$0xff]
  %v101 = vld [vmem:[%s1 + $0x220] sm:$0xff]
  %v102 = vld [vmem:[%s1 + $0x228] sm:$0xff]
  %v103 = vld [vmem:[%s1 + $0x230] sm:$0xff]
  %v104 = vld [vmem:[%s1 + $0x238] sm:$0xff]
  %v105 = vld [vmem:[%s1 + $0x240] sm:$0xff]
  %v106 = vld [vmem:[%s1 + $0x248] sm:$0xff]
  %v107 = vld [vmem:[%s1 + $0x250] sm:$0xff]
  %v108 = vld [vmem:[%s1 + $0x258] sm:$0xff]
  %v109 = vld [vmem:[%s1 + $0x260] sm:$0xff]
  %v110 = vld [vmem:[%s1 + $0x268] sm:$0xff]
  %v111 = vld [vmem:[%s1 + $0x270] sm:$0xff]
  %v112 = vld [vmem:[%s1 + $0x278] sm:$0xff]
  %v113 = vld [vmem:[%s1 + $0x280] sm:$0xff]
  %v114 = vld [vmem:[%s1 + $0x288] sm:$0xff]
  %v115 = vld [vmem:[%s1 + $0x290] sm:$0xff]
  %v116 = vld [vmem:[%s1 + $0x298] sm:$0xff]
  %v117 = vld [vmem:[%s1 + $0x2a0] sm:$0xff]
  %v118 = vld [vmem:[%s1 + $0x2a8] sm:$0xff]
  %v119 = vld [vmem:[%s1 + $0x2b0] sm:$0xff]
  %v120 = vld [vmem:[%s1 + $0x2b8] sm:$0xff]
  %v121 = vld [vmem:[%s1 + $0x2c0] sm:$0xff]
  %v122 = vld [vmem:[%s1 + $0x2c8] sm:$0xff]
  %v123 = vld [vmem:[%s1 + $0x2d0] sm:$0xff]
  %v124 = vld [vmem:[%s1 + $0x2d8] sm:$0xff]
  %v125 = vld [vmem:[%s1 + $0x2e0] sm:$0xff]
  %v126 = vld [vmem:[%s1 + $0x2e8] sm:$0xff]
  %v127 = vld [vmem:[%s1 + $0x2f0] sm:$0xff]
  %v128 = vld [vmem:[%s1 + $0x2f8] sm:$0xff]
  %v129 = vld [vmem:[%s1 + $0x300] sm:$0xff]
  %v130 = vld [vmem:[%s1 + $0x308] sm:$0xff]
  %v131 = vld [vmem:[%s1 + $0x310] sm:$0xff]
  %v132 = vld [vmem:[%s1 + $0x318] sm:$0xff]
  %v133 = vld [vmem:[%s1 + $0x320] sm:$0xff]
  %v134 = vld [vmem:[%s1 + $0x328] sm:$0xff]
  %v135 = vld [vmem:[%s1 + $0x330] sm:$0xff]
  %v136 = vld [vmem:[%s1 + $0x338] sm:$0xff]
  %v137 = vld [vmem:[%s1 + $0x340] sm:$0xff]
  %v138 = vld [vmem:[%s1 + $0x348] sm:$0xff]
  %v139 = vld [vmem:[%s1 + $0x350] sm:$0xff]
  %v140 = vld [vmem:[%s1 + $0x358] sm:$0xff]
  %v141 = vld [vmem:[%s1 + $0x360] sm:$0xff]
  %v142 = vld [vmem:[%s1 + $0x368] sm:$0xff]
  %v143 = vld [vmem:[%s1 + $0x370] sm:$0xff]
  %v144 = vld [vmem:[%s1 + $0x378] sm:$0xff]
  %v145 = vld [vmem:[%s1 + $0x380] sm:$0xff]
  %v146 = vld [vmem:[%s1 + $0x388] sm:$0xff]
  %v147 = vld [vmem:[%s1 + $0x390] sm:$0xff]
  %v148 = vld [vmem:[%s1 + $0x398] sm:$0xff]
  %v149 = vld [vmem:[%s1 + $0x3a0] sm:$0xff]
  %v150 = vld [vmem:[%s1 + $0x3a8] sm:$0xff]
  %v151 = vld [vmem:[%s1 + $0x3b0] sm:$0xff]
  %v152 = vld [vmem:[%s1 + $0x3b8] sm:$0xff]
  %v153 = vld [vmem:[%s1 + $0x3c0] sm:$0xff]
  %v154 = vld [vmem:[%s1 + $0x3c8] sm:$0xff]
  %v155 = vld [vmem:[%s1 + $0x3d0] sm:$0xff]
  %v156 = vld [vmem:[%s1 + $0x3d8] sm:$0xff]
  %v157 = vld [vmem:[%s1 + $0x3e0] sm:$0xff]
  %v158 = vld [vmem:[%s1 + $0x3e8] sm:$0xff]
  %v159 = vld [vmem:[%s1 + $0x3f0] sm:$0xff]
  %v160 = vld [vmem:[%s1 + $0x3f8] sm:$0xff]
  %v161 = vld [vmem:[%s2] sm:$0xff]
  %v162 = vld [vmem:[%s2 + $0x8] sm:$0xff]
  %v165 = vlaneseq
  %v166 = vshrl.u32 %v165, 7
  %v167 = vsub.s32 0, %v166
  %v168 = vrot.slane %v161, %v167
  %v169 = vlaneseq
  %v170 = vshrl.u32 %v169, 7
  %v171 = vsub.s32 1, %v170
  %v172 = vrot.slane %v161, %v171
  %v173 = vlaneseq
  %v174 = vshrl.u32 %v173, 7
  %v175 = vsub.s32 2, %v174
  %v176 = vrot.slane %v161, %v175
  %v177 = vlaneseq
  %v178 = vshrl.u32 %v177, 7
  %v179 = vsub.s32 3, %v178
  %v180 = vrot.slane %v161, %v179
  %v181 = vlaneseq
  %v182 = vshrl.u32 %v181, 7
  %v183 = vsub.s32 4, %v182
  %v184 = vrot.slane %v161, %v183
  %v185 = vlaneseq
  %v186 = vshrl.u32 %v185, 7
  %v187 = vsub.s32 5, %v186
  %v188 = vrot.slane %v161, %v187
  %v189 = vlaneseq
  %v190 = vshrl.u32 %v189, 7
  %v191 = vsub.s32 6, %v190
  %v192 = vrot.slane %v161, %v191
  %v193 = vlaneseq
  %v194 = vshrl.u32 %v193, 7
  %v195 = vsub.s32 7, %v194
  %v196 = vrot.slane %v161, %v195
  %v197 = vlaneseq
  %v198 = vshrl.u32 %v197, 7
  %v199 = vsub.s32 0, %v198
  %v200 = vrot.slane %v162, %v199
  %v201 = vlaneseq
  %v202 = vshrl.u32 %v201, 7
  %v203 = vsub.s32 1, %v202
  %v204 = vrot.slane %v162, %v203
  %v205 = vlaneseq
  %v206 = vshrl.u32 %v205, 7
  %v207 = vsub.s32 2, %v206
  %v208 = vrot.slane %v162, %v207
  %v209 = vlaneseq
  %v210 = vshrl.u32 %v209, 7
  %v211 = vsub.s32 3, %v210
  %v212 = vrot.slane %v162, %v211
  %v213 = vlaneseq
  %v214 = vshrl.u32 %v213, 7
  %v215 = vsub.s32 4, %v214
  %v216 = vrot.slane %v162, %v215
  %v217 = vlaneseq
  %v218 = vshrl.u32 %v217, 7
  %v219 = vsub.s32 5, %v218
  %v220 = vrot.slane %v162, %v219
  %v221 = vlaneseq
  %v222 = vshrl.u32 %v221, 7
  %v223 = vsub.s32 6, %v222
  %v224 = vrot.slane %v162, %v223
  %v225 = vlaneseq
  %v226 = vshrl.u32 %v225, 7
  %v227 = vsub.s32 7, %v226
  %v228 = vrot.slane %v162, %v227
  %v373 = vunpack.c.l.b16 %v33
  %v374 = vunpack.c.h.b16 %v33
  %v375 = vunpack.c.l.b16 %v34
  %v376 = vunpack.c.h.b16 %v34
  %v377 = vunpack.c.l.b16 %v35
  %v378 = vunpack.c.h.b16 %v35
  %v379 = vunpack.c.l.b16 %v36
  %v380 = vunpack.c.h.b16 %v36
  %v381 = vunpack.c.l.b16 %v37
  %v382 = vunpack.c.h.b16 %v37
  %v383 = vunpack.c.l.b16 %v38
  %v384 = vunpack.c.h.b16 %v38
  %v385 = vunpack.c.l.b16 %v39
  %v386 = vunpack.c.h.b16 %v39
  %v387 = vunpack.c.l.b16 %v40
  %v388 = vunpack.c.h.b16 %v40
  %v389 = vunpack.c.l.b16 %v41
  %v390 = vunpack.c.h.b16 %v41
  %v391 = vunpack.c.l.b16 %v42
  %v392 = vunpack.c.h.b16 %v42
  %v393 = vunpack.c.l.b16 %v43
  %v394 = vunpack.c.h.b16 %v43
  %v395 = vunpack.c.l.b16 %v44
  %v396 = vunpack.c.h.b16 %v44
  %v397 = vunpack.c.l.b16 %v45
  %v398 = vunpack.c.h.b16 %v45
  %v399 = vunpack.c.l.b16 %v46
  %v400 = vunpack.c.h.b16 %v46
  %v401 = vunpack.c.l.b16 %v47
  %v402 = vunpack.c.h.b16 %v47
  %v403 = vunpack.c.l.b16 %v48
  %v404 = vunpack.c.h.b16 %v48
  %v405 = vunpack.c.l.b16 %v49
  %v406 = vunpack.c.h.b16 %v49
  %v407 = vunpack.c.l.b16 %v50
  %v408 = vunpack.c.h.b16 %v50
  %v409 = vunpack.c.l.b16 %v51
  %v410 = vunpack.c.h.b16 %v51
  %v411 = vunpack.c.l.b16 %v52
  %v412 = vunpack.c.h.b16 %v52
  %v413 = vunpack.c.l.b16 %v53
  %v414 = vunpack.c.h.b16 %v53
  %v415 = vunpack.c.l.b16 %v54
  %v416 = vunpack.c.h.b16 %v54
  %v417 = vunpack.c.l.b16 %v55
  %v418 = vunpack.c.h.b16 %v55
  %v419 = vunpack.c.l.b16 %v56
  %v420 = vunpack.c.h.b16 %v56
  %v421 = vunpack.c.l.b16 %v57
  %v422 = vunpack.c.h.b16 %v57
  %v423 = vunpack.c.l.b16 %v58
  %v424 = vunpack.c.h.b16 %v58
  %v425 = vunpack.c.l.b16 %v59
  %v426 = vunpack.c.h.b16 %v59
  %v427 = vunpack.c.l.b16 %v60
  %v428 = vunpack.c.h.b16 %v60
  %v429 = vunpack.c.l.b16 %v61
  %v430 = vunpack.c.h.b16 %v61
  %v431 = vunpack.c.l.b16 %v62
  %v432 = vunpack.c.h.b16 %v62
  %v433 = vunpack.c.l.b16 %v63
  %v434 = vunpack.c.h.b16 %v63
  %v435 = vunpack.c.l.b16 %v64
  %v436 = vunpack.c.h.b16 %v64
  %v437 = vunpack.c.l.b16 %v65
  %v438 = vunpack.c.h.b16 %v65
  %v439 = vunpack.c.l.b16 %v66
  %v440 = vunpack.c.h.b16 %v66
  %v441 = vunpack.c.l.b16 %v67
  %v442 = vunpack.c.h.b16 %v67
  %v443 = vunpack.c.l.b16 %v68
  %v444 = vunpack.c.h.b16 %v68
  %v445 = vunpack.c.l.b16 %v69
  %v446 = vunpack.c.h.b16 %v69
  %v447 = vunpack.c.l.b16 %v70
  %v448 = vunpack.c.h.b16 %v70
  %v449 = vunpack.c.l.b16 %v71
  %v450 = vunpack.c.h.b16 %v71
  %v451 = vunpack.c.l.b16 %v72
  %v452 = vunpack.c.h.b16 %v72
  %v453 = vunpack.c.l.b16 %v73
  %v454 = vunpack.c.h.b16 %v73
  %v455 = vunpack.c.l.b16 %v74
  %v456 = vunpack.c.h.b16 %v74
  %v457 = vunpack.c.l.b16 %v75
  %v458 = vunpack.c.h.b16 %v75
  %v459 = vunpack.c.l.b16 %v76
  %v460 = vunpack.c.h.b16 %v76
  %v461 = vunpack.c.l.b16 %v77
  %v462 = vunpack.c.h.b16 %v77
  %v463 = vunpack.c.l.b16 %v78
  %v464 = vunpack.c.h.b16 %v78
  %v465 = vunpack.c.l.b16 %v79
  %v466 = vunpack.c.h.b16 %v79
  %v467 = vunpack.c.l.b16 %v80
  %v468 = vunpack.c.h.b16 %v80
  %v469 = vunpack.c.l.b16 %v81
  %v470 = vunpack.c.h.b16 %v81
  %v471 = vunpack.c.l.b16 %v82
  %v472 = vunpack.c.h.b16 %v82
  %v473 = vunpack.c.l.b16 %v83
  %v474 = vunpack.c.h.b16 %v83
  %v475 = vunpack.c.l.b16 %v84
  %v476 = vunpack.c.h.b16 %v84
  %v477 = vunpack.c.l.b16 %v85
  %v478 = vunpack.c.h.b16 %v85
  %v479 = vunpack.c.l.b16 %v86
  %v480 = vunpack.c.h.b16 %v86
  %v481 = vunpack.c.l.b16 %v87
  %v482 = vunpack.c.h.b16 %v87
  %v483 = vunpack.c.l.b16 %v88
  %v484 = vunpack.c.h.b16 %v88
  %v485 = vunpack.c.l.b16 %v89
  %v486 = vunpack.c.h.b16 %v89
  %v487 = vunpack.c.l.b16 %v90
  %v488 = vunpack.c.h.b16 %v90
  %v489 = vunpack.c.l.b16 %v91
  %v490 = vunpack.c.h.b16 %v91
  %v491 = vunpack.c.l.b16 %v92
  %v492 = vunpack.c.h.b16 %v92
  %v493 = vunpack.c.l.b16 %v93
  %v494 = vunpack.c.h.b16 %v93
  %v495 = vunpack.c.l.b16 %v94
  %v496 = vunpack.c.h.b16 %v94
  %v497 = vunpack.c.l.b16 %v95
  %v498 = vunpack.c.h.b16 %v95
  %v499 = vunpack.c.l.b16 %v96
  %v500 = vunpack.c.h.b16 %v96
  %v501 = vunpack.c.l.b16 %v97
  %v502 = vunpack.c.h.b16 %v97
  %v503 = vunpack.c.l.b16 %v98
  %v504 = vunpack.c.h.b16 %v98
  %v505 = vunpack.c.l.b16 %v99
  %v506 = vunpack.c.h.b16 %v99
  %v507 = vunpack.c.l.b16 %v100
  %v508 = vunpack.c.h.b16 %v100
  %v509 = vunpack.c.l.b16 %v101
  %v510 = vunpack.c.h.b16 %v101
  %v511 = vunpack.c.l.b16 %v102
  %v512 = vunpack.c.h.b16 %v102
  %v513 = vunpack.c.l.b16 %v103
  %v514 = vunpack.c.h.b16 %v103
  %v515 = vunpack.c.l.b16 %v104
  %v516 = vunpack.c.h.b16 %v104
  %v517 = vunpack.c.l.b16 %v105
  %v518 = vunpack.c.h.b16 %v105
  %v519 = vunpack.c.l.b16 %v106
  %v520 = vunpack.c.h.b16 %v106
  %v521 = vunpack.c.l.b16 %v107
  %v522 = vunpack.c.h.b16 %v107
  %v523 = vunpack.c.l.b16 %v108
  %v524 = vunpack.c.h.b16 %v108
  %v525 = vunpack.c.l.b16 %v109
  %v526 = vunpack.c.h.b16 %v109
  %v527 = vunpack.c.l.b16 %v110
  %v528 = vunpack.c.h.b16 %v110
  %v529 = vunpack.c.l.b16 %v111
  %v530 = vunpack.c.h.b16 %v111
  %v531 = vunpack.c.l.b16 %v112
  %v532 = vunpack.c.h.b16 %v112
  %v533 = vunpack.c.l.b16 %v113
  %v534 = vunpack.c.h.b16 %v113
  %v535 = vunpack.c.l.b16 %v114
  %v536 = vunpack.c.h.b16 %v114
  %v537 = vunpack.c.l.b16 %v115
  %v538 = vunpack.c.h.b16 %v115
  %v539 = vunpack.c.l.b16 %v116
  %v540 = vunpack.c.h.b16 %v116
  %v541 = vunpack.c.l.b16 %v117
  %v542 = vunpack.c.h.b16 %v117
  %v543 = vunpack.c.l.b16 %v118
  %v544 = vunpack.c.h.b16 %v118
  %v545 = vunpack.c.l.b16 %v119
  %v546 = vunpack.c.h.b16 %v119
  %v547 = vunpack.c.l.b16 %v120
  %v548 = vunpack.c.h.b16 %v120
  %v549 = vunpack.c.l.b16 %v121
  %v550 = vunpack.c.h.b16 %v121
  %v551 = vunpack.c.l.b16 %v122
  %v552 = vunpack.c.h.b16 %v122
  %v553 = vunpack.c.l.b16 %v123
  %v554 = vunpack.c.h.b16 %v123
  %v555 = vunpack.c.l.b16 %v124
  %v556 = vunpack.c.h.b16 %v124
  %v557 = vunpack.c.l.b16 %v125
  %v558 = vunpack.c.h.b16 %v125
  %v559 = vunpack.c.l.b16 %v126
  %v560 = vunpack.c.h.b16 %v126
  %v561 = vunpack.c.l.b16 %v127
  %v562 = vunpack.c.h.b16 %v127
  %v563 = vunpack.c.l.b16 %v128
  %v564 = vunpack.c.h.b16 %v128
  %v565 = vunpack.c.l.b16 %v129
  %v566 = vunpack.c.h.b16 %v129
  %v567 = vunpack.c.l.b16 %v130
  %v568 = vunpack.c.h.b16 %v130
  %v569 = vunpack.c.l.b16 %v131
  %v570 = vunpack.c.h.b16 %v131
  %v571 = vunpack.c.l.b16 %v132
  %v572 = vunpack.c.h.b16 %v132
  %v573 = vunpack.c.l.b16 %v133
  %v574 = vunpack.c.h.b16 %v133
  %v575 = vunpack.c.l.b16 %v134
  %v576 = vunpack.c.h.b16 %v134
  %v577 = vunpack.c.l.b16 %v135
  %v578 = vunpack.c.h.b16 %v135
  %v579 = vunpack.c.l.b16 %v136
  %v580 = vunpack.c.h.b16 %v136
  %v581 = vunpack.c.l.b16 %v137
  %v582 = vunpack.c.h.b16 %v137
  %v583 = vunpack.c.l.b16 %v138
  %v584 = vunpack.c.h.b16 %v138
  %v585 = vunpack.c.l.b16 %v139
  %v586 = vunpack.c.h.b16 %v139
  %v587 = vunpack.c.l.b16 %v140
  %v588 = vunpack.c.h.b16 %v140
  %v589 = vunpack.c.l.b16 %v141
  %v590 = vunpack.c.h.b16 %v141
  %v591 = vunpack.c.l.b16 %v142
  %v592 = vunpack.c.h.b16 %v142
  %v593 = vunpack.c.l.b16 %v143
  %v594 = vunpack.c.h.b16 %v143
  %v595 = vunpack.c.l.b16 %v144
  %v596 = vunpack.c.h.b16 %v144
  %v597 = vunpack.c.l.b16 %v145
  %v598 = vunpack.c.h.b16 %v145
  %v599 = vunpack.c.l.b16 %v146
  %v600 = vunpack.c.h.b16 %v146
  %v601 = vunpack.c.l.b16 %v147
  %v602 = vunpack.c.h.b16 %v147
  %v603 = vunpack.c.l.b16 %v148
  %v604 = vunpack.c.h.b16 %v148
  %v605 = vunpack.c.l.b16 %v149
  %v606 = vunpack.c.h.b16 %v149
  %v607 = vunpack.c.l.b16 %v150
  %v608 = vunpack.c.h.b16 %v150
  %v609 = vunpack.c.l.b16 %v151
  %v610 = vunpack.c.h.b16 %v151
  %v611 = vunpack.c.l.b16 %v152
  %v612 = vunpack.c.h.b16 %v152
  %v613 = vunpack.c.l.b16 %v153
  %v614 = vunpack.c.h.b16 %v153
  %v615 = vunpack.c.l.b16 %v154
  %v616 = vunpack.c.h.b16 %v154
  %v617 = vunpack.c.l.b16 %v155
  %v618 = vunpack.c.h.b16 %v155
  %v619 = vunpack.c.l.b16 %v156
  %v620 = vunpack.c.h.b16 %v156
  %v621 = vunpack.c.l.b16 %v157
  %v622 = vunpack.c.h.b16 %v157
  %v623 = vunpack.c.l.b16 %v158
  %v624 = vunpack.c.h.b16 %v158
  %v625 = vunpack.c.l.b16 %v159
  %v626 = vunpack.c.h.b16 %v159
  %v627 = vunpack.c.l.b16 %v160
  %v628 = vunpack.c.h.b16 %v160
  %v629 = vpack.c.b16 %v389, %v373
  %v630 = vpack.c.b16 %v390, %v374
  %v631 = vpack.c.b16 %v391, %v375
  %v632 = vpack.c.b16 %v392, %v376
  %v633 = vpack.c.b16 %v393, %v377
  %v634 = vpack.c.b16 %v394, %v378
  %v635 = vpack.c.b16 %v395, %v379
  %v636 = vpack.c.b16 %v396, %v380
  %v637 = vpack.c.b16 %v397, %v381
  %v638 = vpack.c.b16 %v398, %v382
  %v639 = vpack.c.b16 %v399, %v383
  %v640 = vpack.c.b16 %v400, %v384
  %v641 = vpack.c.b16 %v401, %v385
  %v642 = vpack.c.b16 %v402, %v386
  %v643 = vpack.c.b16 %v403, %v387
  %v644 = vpack.c.b16 %v404, %v388
  %v645 = vpack.c.b16 %v421, %v405
  %v646 = vpack.c.b16 %v422, %v406
  %v647 = vpack.c.b16 %v423, %v407
  %v648 = vpack.c.b16 %v424, %v408
  %v649 = vpack.c.b16 %v425, %v409
  %v650 = vpack.c.b16 %v426, %v410
  %v651 = vpack.c.b16 %v427, %v411
  %v652 = vpack.c.b16 %v428, %v412
  %v653 = vpack.c.b16 %v429, %v413
  %v654 = vpack.c.b16 %v430, %v414
  %v655 = vpack.c.b16 %v431, %v415
  %v656 = vpack.c.b16 %v432, %v416
  %v657 = vpack.c.b16 %v433, %v417
  %v658 = vpack.c.b16 %v434, %v418
  %v659 = vpack.c.b16 %v435, %v419
  %v660 = vpack.c.b16 %v436, %v420
  %v661 = vpack.c.b16 %v453, %v437
  %v662 = vpack.c.b16 %v454, %v438
  %v663 = vpack.c.b16 %v455, %v439
  %v664 = vpack.c.b16 %v456, %v440
  %v665 = vpack.c.b16 %v457, %v441
  %v666 = vpack.c.b16 %v458, %v442
  %v667 = vpack.c.b16 %v459, %v443
  %v668 = vpack.c.b16 %v460, %v444
  %v669 = vpack.c.b16 %v461, %v445
  %v670 = vpack.c.b16 %v462, %v446
  %v671 = vpack.c.b16 %v463, %v447
  %v672 = vpack.c.b16 %v464, %v448
  %v673 = vpack.c.b16 %v465, %v449
  %v674 = vpack.c.b16 %v466, %v450
  %v675 = vpack.c.b16 %v467, %v451
  %v676 = vpack.c.b16 %v468, %v452
  %v677 = vpack.c.b16 %v485, %v469
  %v678 = vpack.c.b16 %v486, %v470
  %v679 = vpack.c.b16 %v487, %v471
  %v680 = vpack.c.b16 %v488, %v472
  %v681 = vpack.c.b16 %v489, %v473
  %v682 = vpack.c.b16 %v490, %v474
  %v683 = vpack.c.b16 %v491, %v475
  %v684 = vpack.c.b16 %v492, %v476
  %v685 = vpack.c.b16 %v493, %v477
  %v686 = vpack.c.b16 %v494, %v478
  %v687 = vpack.c.b16 %v495, %v479
  %v688 = vpack.c.b16 %v496, %v480
  %v689 = vpack.c.b16 %v497, %v481
  %v690 = vpack.c.b16 %v498, %v482
  %v691 = vpack.c.b16 %v499, %v483
  %v692 = vpack.c.b16 %v500, %v484
  %v693 = vpack.c.b16 %v517, %v501
  %v694 = vpack.c.b16 %v518, %v502
  %v695 = vpack.c.b16 %v519, %v503
  %v696 = vpack.c.b16 %v520, %v504
  %v697 = vpack.c.b16 %v521, %v505
  %v698 = vpack.c.b16 %v522, %v506
  %v699 = vpack.c.b16 %v523, %v507
  %v700 = vpack.c.b16 %v524, %v508
  %v701 = vpack.c.b16 %v525, %v509
  %v702 = vpack.c.b16 %v526, %v510
  %v703 = vpack.c.b16 %v527, %v511
  %v704 = vpack.c.b16 %v528, %v512
  %v705 = vpack.c.b16 %v529, %v513
  %v706 = vpack.c.b16 %v530, %v514
  %v707 = vpack.c.b16 %v531, %v515
  %v708 = vpack.c.b16 %v532, %v516
  %v709 = vpack.c.b16 %v549, %v533
  %v710 = vpack.c.b16 %v550, %v534
  %v711 = vpack.c.b16 %v551, %v535
  %v712 = vpack.c.b16 %v552, %v536
  %v713 = vpack.c.b16 %v553, %v537
  %v714 = vpack.c.b16 %v554, %v538
  %v715 = vpack.c.b16 %v555, %v539
  %v716 = vpack.c.b16 %v556, %v540
  %v717 = vpack.c.b16 %v557, %v541
  %v718 = vpack.c.b16 %v558, %v542
  %v719 = vpack.c.b16 %v559, %v543
  %v720 = vpack.c.b16 %v560, %v544
  %v721 = vpack.c.b16 %v561, %v545
  %v722 = vpack.c.b16 %v562, %v546
  %v723 = vpack.c.b16 %v563, %v547
  %v724 = vpack.c.b16 %v564, %v548
  %v725 = vpack.c.b16 %v581, %v565
  %v726 = vpack.c.b16 %v582, %v566
  %v727 = vpack.c.b16 %v583, %v567
  %v728 = vpack.c.b16 %v584, %v568
  %v729 = vpack.c.b16 %v585, %v569
  %v730 = vpack.c.b16 %v586, %v570
  %v731 = vpack.c.b16 %v587, %v571
  %v732 = vpack.c.b16 %v588, %v572
  %v733 = vpack.c.b16 %v589, %v573
  %v734 = vpack.c.b16 %v590, %v574
  %v735 = vpack.c.b16 %v591, %v575
  %v736 = vpack.c.b16 %v592, %v576
  %v737 = vpack.c.b16 %v593, %v577
  %v738 = vpack.c.b16 %v594, %v578
  %v739 = vpack.c.b16 %v595, %v579
  %v740 = vpack.c.b16 %v596, %v580
  %v741 = vpack.c.b16 %v613, %v597
  %v742 = vpack.c.b16 %v614, %v598
  %v743 = vpack.c.b16 %v615, %v599
  %v744 = vpack.c.b16 %v616, %v600
  %v745 = vpack.c.b16 %v617, %v601
  %v746 = vpack.c.b16 %v618, %v602
  %v747 = vpack.c.b16 %v619, %v603
  %v748 = vpack.c.b16 %v620, %v604
  %v749 = vpack.c.b16 %v621, %v605
  %v750 = vpack.c.b16 %v622, %v606
  %v751 = vpack.c.b16 %v623, %v607
  %v752 = vpack.c.b16 %v624, %v608
  %v753 = vpack.c.b16 %v625, %v609
  %v754 = vpack.c.b16 %v626, %v610
  %v755 = vpack.c.b16 %v627, %v611
  %v756 = vpack.c.b16 %v628, %v612
  %885 = vmatprep.subr.bf16.mxu0 %v630
  %886 = vmatpush1.bf16.msra.mxu0 %v629
  %887 = vmatprep.subr.bf16.mxu0 %v646
  %888 = vmatpush1.bf16.msra.mxu0 %v645
  %889 = vmatprep.subr.bf16.mxu0 %v662
  %890 = vmatpush1.bf16.msra.mxu0 %v661
  %891 = vmatprep.subr.bf16.mxu0 %v678
  %892 = vmatpush1.bf16.msra.mxu0 %v677
  %893 = vmatprep.subr.bf16.mxu0 %v694
  %894 = vmatpush1.bf16.msra.mxu0 %v693
  %895 = vmatprep.subr.bf16.mxu0 %v710
  %896 = vmatpush1.bf16.msra.mxu0 %v709
  %897 = vmatprep.subr.bf16.mxu0 %v726
  %898 = vmatpush1.bf16.msra.mxu0 %v725
  %899 = vmatprep.subr.bf16.mxu0 %v742
  %900 = vmatpush1.bf16.msra.mxu0 %v741
  %901 = vmatprep.subr.bf16.mxu0 0
  %902 = vmatpush1.bf16.msra.mxu0 0
  %903 = vmatprep.subr.bf16.mxu0 0
  %904 = vmatpush1.bf16.msra.mxu0 0
  %905 = vmatprep.subr.bf16.mxu0 0
  %906 = vmatpush1.bf16.msra.mxu0 0
  %907 = vmatprep.subr.bf16.mxu0 0
  %908 = vmatpush1.bf16.msra.mxu0 0
  %909 = vmatprep.subr.bf16.mxu0 0
  %910 = vmatpush1.bf16.msra.mxu0 0
  %911 = vmatprep.subr.bf16.mxu0 0
  %912 = vmatpush1.bf16.msra.mxu0 0
  %913 = vmatprep.subr.bf16.mxu0 0
  %914 = vmatpush1.bf16.msra.mxu0 0
  %915 = vmatprep.subr.bf16.mxu0 0
  %916 = vmatpush1.bf16.msra.mxu0 0
  %917 = vmatprep.mubr.bf16.mxu0 0
  %918 = vmatmul.mubr.bf16.gmra.mrb[0].mxu0 %v31
  %v919 = vpop.f32.mrb[0].mxu0
  %v920 = vadd.f32 %v168, %v919
  %v921 = vpop.f32.mrb[0].mxu0
  %v922 = vadd.f32 %v172, %v921
  %v923 = vpop.f32.mrb[0].mxu0
  %v924 = vadd.f32 %v168, %v923
  %v925 = vpop.f32.mrb[0].mxu0
  %v926 = vadd.f32 %v172, %v925
  %927 = vmatprep.mubr.bf16.mxu0 0
  %928 = vmatmul.mubr.bf16.gmra.mrb[0].mxu0 %v32
  %v929 = vpop.f32.mrb[0].mxu0
  %v930 = vadd.f32 %v168, %v929
  %v931 = vpop.f32.mrb[0].mxu0
  %v932 = vadd.f32 %v172, %v931
  %v933 = vpop.f32.mrb[0].mxu0
  %v934 = vadd.f32 %v168, %v933
  %v935 = vpop.f32.mrb[0].mxu0
  %v936 = vadd.f32 %v172, %v935
  %937 = vdwg.mxu0
  %938 = vmatprep.subr.bf16.mxu0 %v632
  %939 = vmatpush1.bf16.msra.mxu0 %v631
  %940 = vmatprep.subr.bf16.mxu0 %v648
  %941 = vmatpush1.bf16.msra.mxu0 %v647
  %942 = vmatprep.subr.bf16.mxu0 %v664
  %943 = vmatpush1.bf16.msra.mxu0 %v663
  %944 = vmatprep.subr.bf16.mxu0 %v680
  %945 = vmatpush1.bf16.msra.mxu0 %v679
  %946 = vmatprep.subr.bf16.mxu0 %v696
  %947 = vmatpush1.bf16.msra.mxu0 %v695
  %948 = vmatprep.subr.bf16.mxu0 %v712
  %949 = vmatpush1.bf16.msra.mxu0 %v711
  %950 = vmatprep.subr.bf16.mxu0 %v728
  %951 = vmatpush1.bf16.msra.mxu0 %v727
  %952 = vmatprep.subr.bf16.mxu0 %v744
  %953 = vmatpush1.bf16.msra.mxu0 %v743
  %954 = vmatprep.subr.bf16.mxu0 0
  %955 = vmatpush1.bf16.msra.mxu0 0
  %956 = vmatprep.subr.bf16.mxu0 0
  %957 = vmatpush1.bf16.msra.mxu0 0
  %958 = vmatprep.subr.bf16.mxu0 0
  %959 = vmatpush1.bf16.msra.mxu0 0
  %960 = vmatprep.subr.bf16.mxu0 0
  %961 = vmatpush1.bf16.msra.mxu0 0
  %962 = vmatprep.subr.bf16.mxu0 0
  %963 = vmatpush1.bf16.msra.mxu0 0
  %964 = vmatprep.subr.bf16.mxu0 0
  %965 = vmatpush1.bf16.msra.mxu0 0
  %966 = vmatprep.subr.bf16.mxu0 0
  %967 = vmatpush1.bf16.msra.mxu0 0
  %968 = vmatprep.subr.bf16.mxu0 0
  %969 = vmatpush1.bf16.msra.mxu0 0
  %970 = vmatprep.mubr.bf16.mxu0 0
  %971 = vmatmul.mubr.bf16.gmra.mrb[0].mxu0 %v31
  %v972 = vpop.f32.mrb[0].mxu0
  %v973 = vadd.f32 %v176, %v972
  %v974 = vpop.f32.mrb[0].mxu0
  %v975 = vadd.f32 %v180, %v974
  %v976 = vpop.f32.mrb[0].mxu0
  %v977 = vadd.f32 %v176, %v976
  %v978 = vpop.f32.mrb[0].mxu0
  %v979 = vadd.f32 %v180, %v978
  %980 = vmatprep.mubr.bf16.mxu0 0
  %981 = vmatmul.mubr.bf16.gmra.mrb[0].mxu0 %v32
  %v982 = vpop.f32.mrb[0].mxu0
  %v983 = vadd.f32 %v176, %v982
  %v984 = vpop.f32.mrb[0].mxu0
  %v985 = vadd.f32 %v180, %v984
  %v986 = vpop.f32.mrb[0].mxu0
  %v987 = vadd.f32 %v176, %v986
  %v988 = vpop.f32.mrb[0].mxu0
  %v989 = vadd.f32 %v180, %v988
  %990 = vdwg.mxu0
  %991 = vmatprep.subr.bf16.mxu0 %v634
  %992 = vmatpush1.bf16.msra.mxu0 %v633
  %993 = vmatprep.subr.bf16.mxu0 %v650
  %994 = vmatpush1.bf16.msra.mxu0 %v649
  %995 = vmatprep.subr.bf16.mxu0 %v666
  %996 = vmatpush1.bf16.msra.mxu0 %v665
  %997 = vmatprep.subr.bf16.mxu0 %v682
  %998 = vmatpush1.bf16.msra.mxu0 %v681
  %999 = vmatprep.subr.bf16.mxu0 %v698
  %1000 = vmatpush1.bf16.msra.mxu0 %v697
  %1001 = vmatprep.subr.bf16.mxu0 %v714
  %1002 = vmatpush1.bf16.msra.mxu0 %v713
  %1003 = vmatprep.subr.bf16.mxu0 %v730
  %1004 = vmatpush1.bf16.msra.mxu0 %v729
  %1005 = vmatprep.subr.bf16.mxu0 %v746
  %1006 = vmatpush1.bf16.msra.mxu0 %v745
  %1007 = vmatprep.subr.bf16.mxu0 0
  %1008 = vmatpush1.bf16.msra.mxu0 0
  %1009 = vmatprep.subr.bf16.mxu0 0
  %1010 = vmatpush1.bf16.msra.mxu0 0
  %1011 = vmatprep.subr.bf16.mxu0 0
  %1012 = vmatpush1.bf16.msra.mxu0 0
  %1013 = vmatprep.subr.bf16.mxu0 0
  %1014 = vmatpush1.bf16.msra.mxu0 0
  %1015 = vmatprep.subr.bf16.mxu0 0
  %1016 = vmatpush1.bf16.msra.mxu0 0
  %1017 = vmatprep.subr.bf16.mxu0 0
  %1018 = vmatpush1.bf16.msra.mxu0 0
  %1019 = vmatprep.subr.bf16.mxu0 0
  %1020 = vmatpush1.bf16.msra.mxu0 0
  %1021 = vmatprep.subr.bf16.mxu0 0
  %1022 = vmatpush1.bf16.msra.mxu0 0
  %1023 = vmatprep.mubr.bf16.mxu0 0
  %1024 = vmatmul.mubr.bf16.gmra.mrb[0].mxu0 %v31
  %v1025 = vpop.f32.mrb[0].mxu0
  %v1026 = vadd.f32 %v184, %v1025
  %v1027 = vpop.f32.mrb[0].mxu0
  %v1028 = vadd.f32 %v188, %v1027
  %v1029 = vpop.f32.mrb[0].mxu0
  %v1030 = vadd.f32 %v184, %v1029
  %v1031 = vpop.f32.mrb[0].mxu0
  %v1032 = vadd.f32 %v188, %v1031
  %1033 = vmatprep.mubr.bf16.mxu0 0
  %1034 = vmatmul.mubr.bf16.gmra.mrb[0].mxu0 %v32
  %v1035 = vpop.f32.mrb[0].mxu0
  %v1036 = vadd.f32 %v184, %v1035
  %v1037 = vpop.f32.mrb[0].mxu0
  %v1038 = vadd.f32 %v188, %v1037
  %v1039 = vpop.f32.mrb[0].mxu0
  %v1040 = vadd.f32 %v184, %v1039
  %v1041 = vpop.f32.mrb[0].mxu0
  %v1042 = vadd.f32 %v188, %v1041
  %1043 = vdwg.mxu0
  %1044 = vmatprep.subr.bf16.mxu0 %v636
  %1045 = vmatpush1.bf16.msra.mxu0 %v635
  %1046 = vmatprep.subr.bf16.mxu0 %v652
  %1047 = vmatpush1.bf16.msra.mxu0 %v651
  %1048 = vmatprep.subr.bf16.mxu0 %v668
  %1049 = vmatpush1.bf16.msra.mxu0 %v667
  %1050 = vmatprep.subr.bf16.mxu0 %v684
  %1051 = vmatpush1.bf16.msra.mxu0 %v683
  %1052 = vmatprep.subr.bf16.mxu0 %v700
  %1053 = vmatpush1.bf16.msra.mxu0 %v699
  %1054 = vmatprep.subr.bf16.mxu0 %v716
  %1055 = vmatpush1.bf16.msra.mxu0 %v715
  %1056 = vmatprep.subr.bf16.mxu0 %v732
  %1057 = vmatpush1.bf16.msra.mxu0 %v731
  %1058 = vmatprep.subr.bf16.mxu0 %v748
  %1059 = vmatpush1.bf16.msra.mxu0 %v747
  %1060 = vmatprep.subr.bf16.mxu0 0
  %1061 = vmatpush1.bf16.msra.mxu0 0
  %1062 = vmatprep.subr.bf16.mxu0 0
  %1063 = vmatpush1.bf16.msra.mxu0 0
  %1064 = vmatprep.subr.bf16.mxu0 0
  %1065 = vmatpush1.bf16.msra.mxu0 0
  %1066 = vmatprep.subr.bf16.mxu0 0
  %1067 = vmatpush1.bf16.msra.mxu0 0
  %1068 = vmatprep.subr.bf16.mxu0 0
  %1069 = vmatpush1.bf16.msra.mxu0 0
  %1070 = vmatprep.subr.bf16.mxu0 0
  %1071 = vmatpush1.bf16.msra.mxu0 0
  %1072 = vmatprep.subr.bf16.mxu0 0
  %1073 = vmatpush1.bf16.msra.mxu0 0
  %1074 = vmatprep.subr.bf16.mxu0 0
  %1075 = vmatpush1.bf16.msra.mxu0 0
  %1076 = vmatprep.mubr.bf16.mxu0 0
  %1077 = vmatmul.mubr.bf16.gmra.mrb[0].mxu0 %v31
  %v1078 = vpop.f32.mrb[0].mxu0
  %v1079 = vadd.f32 %v192, %v1078
  %v1080 = vpop.f32.mrb[0].mxu0
  %v1081 = vadd.f32 %v196, %v1080
  %v1082 = vpop.f32.mrb[0].mxu0
  %v1083 = vadd.f32 %v192, %v1082
  %v1084 = vpop.f32.mrb[0].mxu0
  %v1085 = vadd.f32 %v196, %v1084
  %1086 = vmatprep.mubr.bf16.mxu0 0
  %1087 = vmatmul.mubr.bf16.gmra.mrb[0].mxu0 %v32
  %v1088 = vpop.f32.mrb[0].mxu0
  %v1089 = vadd.f32 %v192, %v1088
  %v1090 = vpop.f32.mrb[0].mxu0
  %v1091 = vadd.f32 %v196, %v1090
  %v1092 = vpop.f32.mrb[0].mxu0
  %v1093 = vadd.f32 %v192, %v1092
  %v1094 = vpop.f32.mrb[0].mxu0
  %v1095 = vadd.f32 %v196, %v1094
  %1096 = vdwg.mxu0
  %1097 = vmatprep.subr.bf16.mxu0 %v638
  %1098 = vmatpush1.bf16.msra.mxu0 %v637
  %1099 = vmatprep.subr.bf16.mxu0 %v654
  %1100 = vmatpush1.bf16.msra.mxu0 %v653
  %1101 = vmatprep.subr.bf16.mxu0 %v670
  %1102 = vmatpush1.bf16.msra.mxu0 %v669
  %1103 = vmatprep.subr.bf16.mxu0 %v686
  %1104 = vmatpush1.bf16.msra.mxu0 %v685
  %1105 = vmatprep.subr.bf16.mxu0 %v702
  %1106 = vmatpush1.bf16.msra.mxu0 %v701
  %1107 = vmatprep.subr.bf16.mxu0 %v718
  %1108 = vmatpush1.bf16.msra.mxu0 %v717
  %1109 = vmatprep.subr.bf16.mxu0 %v734
  %1110 = vmatpush1.bf16.msra.mxu0 %v733
  %1111 = vmatprep.subr.bf16.mxu0 %v750
  %1112 = vmatpush1.bf16.msra.mxu0 %v749
  %1113 = vmatprep.subr.bf16.mxu0 0
  %1114 = vmatpush1.bf16.msra.mxu0 0
  %1115 = vmatprep.subr.bf16.mxu0 0
  %1116 = vmatpush1.bf16.msra.mxu0 0
  %1117 = vmatprep.subr.bf16.mxu0 0
  %1118 = vmatpush1.bf16.msra.mxu0 0
  %1119 = vmatprep.subr.bf16.mxu0 0
  %1120 = vmatpush1.bf16.msra.mxu0 0
  %1121 = vmatprep.subr.bf16.mxu0 0
  %1122 = vmatpush1.bf16.msra.mxu0 0
  %1123 = vmatprep.subr.bf16.mxu0 0
  %1124 = vmatpush1.bf16.msra.mxu0 0
  %1125 = vmatprep.subr.bf16.mxu0 0
  %1126 = vmatpush1.bf16.msra.mxu0 0
  %1127 = vmatprep.subr.bf16.mxu0 0
  %1128 = vmatpush1.bf16.msra.mxu0 0
  %1129 = vmatprep.mubr.bf16.mxu0 0
  %1130 = vmatmul.mubr.bf16.gmra.mrb[0].mxu0 %v31
  %v1131 = vpop.f32.mrb[0].mxu0
  %v1132 = vadd.f32 %v200, %v1131
  %v1133 = vpop.f32.mrb[0].mxu0
  %v1134 = vadd.f32 %v204, %v1133
  %v1135 = vpop.f32.mrb[0].mxu0
  %v1136 = vadd.f32 %v200, %v1135
  %v1137 = vpop.f32.mrb[0].mxu0
  %v1138 = vadd.f32 %v204, %v1137
  %1139 = vmatprep.mubr.bf16.mxu0 0
  %1140 = vmatmul.mubr.bf16.gmra.mrb[0].mxu0 %v32
  %v1141 = vpop.f32.mrb[0].mxu0
  %v1142 = vadd.f32 %v200, %v1141
  %v1143 = vpop.f32.mrb[0].mxu0
  %v1144 = vadd.f32 %v204, %v1143
  %v1145 = vpop.f32.mrb[0].mxu0
  %v1146 = vadd.f32 %v200, %v1145
  %v1147 = vpop.f32.mrb[0].mxu0
  %v1148 = vadd.f32 %v204, %v1147
  %1149 = vdwg.mxu0
  %1150 = vmatprep.subr.bf16.mxu0 %v640
  %1151 = vmatpush1.bf16.msra.mxu0 %v639
  %1152 = vmatprep.subr.bf16.mxu0 %v656
  %1153 = vmatpush1.bf16.msra.mxu0 %v655
  %1154 = vmatprep.subr.bf16.mxu0 %v672
  %1155 = vmatpush1.bf16.msra.mxu0 %v671
  %1156 = vmatprep.subr.bf16.mxu0 %v688
  %1157 = vmatpush1.bf16.msra.mxu0 %v687
  %1158 = vmatprep.subr.bf16.mxu0 %v704
  %1159 = vmatpush1.bf16.msra.mxu0 %v703
  %1160 = vmatprep.subr.bf16.mxu0 %v720
  %1161 = vmatpush1.bf16.msra.mxu0 %v719
  %1162 = vmatprep.subr.bf16.mxu0 %v736
  %1163 = vmatpush1.bf16.msra.mxu0 %v735
  %1164 = vmatprep.subr.bf16.mxu0 %v752
  %1165 = vmatpush1.bf16.msra.mxu0 %v751
  %1166 = vmatprep.subr.bf16.mxu0 0
  %1167 = vmatpush1.bf16.msra.mxu0 0
  %1168 = vmatprep.subr.bf16.mxu0 0
  %1169 = vmatpush1.bf16.msra.mxu0 0
  %1170 = vmatprep.subr.bf16.mxu0 0
  %1171 = vmatpush1.bf16.msra.mxu0 0
  %1172 = vmatprep.subr.bf16.mxu0 0
  %1173 = vmatpush1.bf16.msra.mxu0 0
  %1174 = vmatprep.subr.bf16.mxu0 0
  %1175 = vmatpush1.bf16.msra.mxu0 0
  %1176 = vmatprep.subr.bf16.mxu0 0
  %1177 = vmatpush1.bf16.msra.mxu0 0
  %1178 = vmatprep.subr.bf16.mxu0 0
  %1179 = vmatpush1.bf16.msra.mxu0 0
  %1180 = vmatprep.subr.bf16.mxu0 0
  %1181 = vmatpush1.bf16.msra.mxu0 0
  %1182 = vmatprep.mubr.bf16.mxu0 0
  %1183 = vmatmul.mubr.bf16.gmra.mrb[0].mxu0 %v31
  %v1184 = vpop.f32.mrb[0].mxu0
  %v1185 = vadd.f32 %v208, %v1184
  %v1186 = vpop.f32.mrb[0].mxu0
  %v1187 = vadd.f32 %v212, %v1186
  %v1188 = vpop.f32.mrb[0].mxu0
  %v1189 = vadd.f32 %v208, %v1188
  %v1190 = vpop.f32.mrb[0].mxu0
  %v1191 = vadd.f32 %v212, %v1190
  %1192 = vmatprep.mubr.bf16.mxu0 0
  %1193 = vmatmul.mubr.bf16.gmra.mrb[0].mxu0 %v32
  %v1194 = vpop.f32.mrb[0].mxu0
  %v1195 = vadd.f32 %v208, %v1194
  %v1196 = vpop.f32.mrb[0].mxu0
  %v1197 = vadd.f32 %v212, %v1196
  %v1198 = vpop.f32.mrb[0].mxu0
  %v1199 = vadd.f32 %v208, %v1198
  %v1200 = vpop.f32.mrb[0].mxu0
  %v1201 = vadd.f32 %v212, %v1200
  %1202 = vdwg.mxu0
  %1203 = vmatprep.subr.bf16.mxu0 %v642
  %1204 = vmatpush1.bf16.msra.mxu0 %v641
  %1205 = vmatprep.subr.bf16.mxu0 %v658
  %1206 = vmatpush1.bf16.msra.mxu0 %v657
  %1207 = vmatprep.subr.bf16.mxu0 %v674
  %1208 = vmatpush1.bf16.msra.mxu0 %v673
  %1209 = vmatprep.subr.bf16.mxu0 %v690
  %1210 = vmatpush1.bf16.msra.mxu0 %v689
  %1211 = vmatprep.subr.bf16.mxu0 %v706
  %1212 = vmatpush1.bf16.msra.mxu0 %v705
  %1213 = vmatprep.subr.bf16.mxu0 %v722
  %1214 = vmatpush1.bf16.msra.mxu0 %v721
  %1215 = vmatprep.subr.bf16.mxu0 %v738
  %1216 = vmatpush1.bf16.msra.mxu0 %v737
  %1217 = vmatprep.subr.bf16.mxu0 %v754
  %1218 = vmatpush1.bf16.msra.mxu0 %v753
  %1219 = vmatprep.subr.bf16.mxu0 0
  %1220 = vmatpush1.bf16.msra.mxu0 0
  %1221 = vmatprep.subr.bf16.mxu0 0
  %1222 = vmatpush1.bf16.msra.mxu0 0
  %1223 = vmatprep.subr.bf16.mxu0 0
  %1224 = vmatpush1.bf16.msra.mxu0 0
  %1225 = vmatprep.subr.bf16.mxu0 0
  %1226 = vmatpush1.bf16.msra.mxu0 0
  %1227 = vmatprep.subr.bf16.mxu0 0
  %1228 = vmatpush1.bf16.msra.mxu0 0
  %1229 = vmatprep.subr.bf16.mxu0 0
  %1230 = vmatpush1.bf16.msra.mxu0 0
  %1231 = vmatprep.subr.bf16.mxu0 0
  %1232 = vmatpush1.bf16.msra.mxu0 0
  %1233 = vmatprep.subr.bf16.mxu0 0
  %1234 = vmatpush1.bf16.msra.mxu0 0
  %1235 = vmatprep.mubr.bf16.mxu0 0
  %1236 = vmatmul.mubr.bf16.gmra.mrb[0].mxu0 %v31
  %v1237 = vpop.f32.mrb[0].mxu0
  %v1238 = vadd.f32 %v216, %v1237
  %v1239 = vpop.f32.mrb[0].mxu0
  %v1240 = vadd.f32 %v220, %v1239
  %v1241 = vpop.f32.mrb[0].mxu0
  %v1242 = vadd.f32 %v216, %v1241
  %v1243 = vpop.f32.mrb[0].mxu0
  %v1244 = vadd.f32 %v220, %v1243
  %1245 = vmatprep.mubr.bf16.mxu0 0
  %1246 = vmatmul.mubr.bf16.gmra.mrb[0].mxu0 %v32
  %v1247 = vpop.f32.mrb[0].mxu0
  %v1248 = vadd.f32 %v216, %v1247
  %v1249 = vpop.f32.mrb[0].mxu0
  %v1250 = vadd.f32 %v220, %v1249
  %v1251 = vpop.f32.mrb[0].mxu0
  %v1252 = vadd.f32 %v216, %v1251
  %v1253 = vpop.f32.mrb[0].mxu0
  %v1254 = vadd.f32 %v220, %v1253
  %1255 = vdwg.mxu0
  %1256 = vmatprep.subr.bf16.mxu0 %v644
  %1257 = vmatpush1.bf16.msra.mxu0 %v643
  %1258 = vmatprep.subr.bf16.mxu0 %v660
  %1259 = vmatpush1.bf16.msra.mxu0 %v659
  %1260 = vmatprep.subr.bf16.mxu0 %v676
  %1261 = vmatpush1.bf16.msra.mxu0 %v675
  %1262 = vmatprep.subr.bf16.mxu0 %v692
  %1263 = vmatpush1.bf16.msra.mxu0 %v691
  %1264 = vmatprep.subr.bf16.mxu0 %v708
  %1265 = vmatpush1.bf16.msra.mxu0 %v707
  %1266 = vmatprep.subr.bf16.mxu0 %v724
  %1267 = vmatpush1.bf16.msra.mxu0 %v723
  %1268 = vmatprep.subr.bf16.mxu0 %v740
  %1269 = vmatpush1.bf16.msra.mxu0 %v739
  %1270 = vmatprep.subr.bf16.mxu0 %v756
  %1271 = vmatpush1.bf16.msra.mxu0 %v755
  %1272 = vmatprep.subr.bf16.mxu0 0
  %1273 = vmatpush1.bf16.msra.mxu0 0
  %1274 = vmatprep.subr.bf16.mxu0 0
  %1275 = vmatpush1.bf16.msra.mxu0 0
  %1276 = vmatprep.subr.bf16.mxu0 0
  %1277 = vmatpush1.bf16.msra.mxu0 0
  %1278 = vmatprep.subr.bf16.mxu0 0
  %1279 = vmatpush1.bf16.msra.mxu0 0
  %1280 = vmatprep.subr.bf16.mxu0 0
  %1281 = vmatpush1.bf16.msra.mxu0 0
  %1282 = vmatprep.subr.bf16.mxu0 0
  %1283 = vmatpush1.bf16.msra.mxu0 0
  %1284 = vmatprep.subr.bf16.mxu0 0
  %1285 = vmatpush1.bf16.msra.mxu0 0
  %1286 = vmatprep.subr.bf16.mxu0 0
  %1287 = vmatpush1.bf16.msra.mxu0 0
  %1288 = vmatprep.mubr.bf16.mxu0 0
  %1289 = vmatmul.mubr.bf16.gmra.mrb[0].mxu0 %v31
  %v1290 = vpop.f32.mrb[0].mxu0
  %v1291 = vadd.f32 %v224, %v1290
  %v1292 = vpop.f32.mrb[0].mxu0
  %v1293 = vadd.f32 %v228, %v1292
  %v1294 = vpop.f32.mrb[0].mxu0
  %v1295 = vadd.f32 %v224, %v1294
  %v1296 = vpop.f32.mrb[0].mxu0
  %v1297 = vadd.f32 %v228, %v1296
  %1298 = vmatprep.mubr.bf16.mxu0 0
  %1299 = vmatmul.mubr.bf16.gmra.mrb[0].mxu0 %v32
  %v1300 = vpop.f32.mrb[0].mxu0
  %v1301 = vadd.f32 %v224, %v1300
  %v1302 = vpop.f32.mrb[0].mxu0
  %v1303 = vadd.f32 %v228, %v1302
  %v1304 = vpop.f32.mrb[0].mxu0
  %v1305 = vadd.f32 %v224, %v1304
  %v1306 = vpop.f32.mrb[0].mxu0
  %v1307 = vadd.f32 %v228, %v1306
  %1308 = vdwg.mxu0
  %v1309 = vmul.f32 %v920, 0.5
  %v1310 = vmul.f32 %v922, 0.5
  %v1311 = vmul.f32 %v973, 0.5
  %v1312 = vmul.f32 %v975, 0.5
  %v1313 = vmul.f32 %v1026, 0.5
  %v1314 = vmul.f32 %v1028, 0.5
  %v1315 = vmul.f32 %v1079, 0.5
  %v1316 = vmul.f32 %v1081, 0.5
  %v1317 = vmul.f32 %v1132, 0.5
  %v1318 = vmul.f32 %v1134, 0.5
  %v1319 = vmul.f32 %v1185, 0.5
  %v1320 = vmul.f32 %v1187, 0.5
  %v1321 = vmul.f32 %v1238, 0.5
  %v1322 = vmul.f32 %v1240, 0.5
  %v1323 = vmul.f32 %v1291, 0.5
  %v1324 = vmul.f32 %v1293, 0.5
  %v1325 = vmul.f32 %v924, 0.5
  %v1326 = vmul.f32 %v926, 0.5
  %v1327 = vmul.f32 %v977, 0.5
  %v1328 = vmul.f32 %v979, 0.5
  %v1329 = vmul.f32 %v1030, 0.5
  %v1330 = vmul.f32 %v1032, 0.5
  %v1331 = vmul.f32 %v1083, 0.5
  %v1332 = vmul.f32 %v1085, 0.5
  %v1333 = vmul.f32 %v1136, 0.5
  %v1334 = vmul.f32 %v1138, 0.5
  %v1335 = vmul.f32 %v1189, 0.5
  %v1336 = vmul.f32 %v1191, 0.5
  %v1337 = vmul.f32 %v1242, 0.5
  %v1338 = vmul.f32 %v1244, 0.5
  %v1339 = vmul.f32 %v1295, 0.5
  %v1340 = vmul.f32 %v1297, 0.5
  %v1341 = vmul.f32 %v930, 0.5
  %v1342 = vmul.f32 %v932, 0.5
  %v1343 = vmul.f32 %v983, 0.5
  %v1344 = vmul.f32 %v985, 0.5
  %v1345 = vmul.f32 %v1036, 0.5
  %v1346 = vmul.f32 %v1038, 0.5
  %v1347 = vmul.f32 %v1089, 0.5
  %v1348 = vmul.f32 %v1091, 0.5
  %v1349 = vmul.f32 %v1142, 0.5
  %v1350 = vmul.f32 %v1144, 0.5
  %v1351 = vmul.f32 %v1195, 0.5
  %v1352 = vmul.f32 %v1197, 0.5
  %v1353 = vmul.f32 %v1248, 0.5
  %v1354 = vmul.f32 %v1250, 0.5
  %v1355 = vmul.f32 %v1301, 0.5
  %v1356 = vmul.f32 %v1303, 0.5
  %v1357 = vmul.f32 %v934, 0.5
  %v1358 = vmul.f32 %v936, 0.5
  %v1359 = vmul.f32 %v987, 0.5
  %v1360 = vmul.f32 %v989, 0.5
  %v1361 = vmul.f32 %v1040, 0.5
  %v1362 = vmul.f32 %v1042, 0.5
  %v1363 = vmul.f32 %v1093, 0.5
  %v1364 = vmul.f32 %v1095, 0.5
  %v1365 = vmul.f32 %v1146, 0.5
  %v1366 = vmul.f32 %v1148, 0.5
  %v1367 = vmul.f32 %v1199, 0.5
  %v1368 = vmul.f32 %v1201, 0.5
  %v1369 = vmul.f32 %v1252, 0.5
  %v1370 = vmul.f32 %v1254, 0.5
  %v1371 = vmul.f32 %v1305, 0.5
  %v1372 = vmul.f32 %v1307, 0.5
  %v1373 = vmul.f32 %v920, 0.044715
  %v1374 = vmul.f32 %v922, 0.044715
  %v1375 = vmul.f32 %v973, 0.044715
  %v1376 = vmul.f32 %v975, 0.044715
  %v1377 = vmul.f32 %v1026, 0.044715
  %v1378 = vmul.f32 %v1028, 0.044715
  %v1379 = vmul.f32 %v1079, 0.044715
  %v1380 = vmul.f32 %v1081, 0.044715
  %v1381 = vmul.f32 %v1132, 0.044715
  %v1382 = vmul.f32 %v1134, 0.044715
  %v1383 = vmul.f32 %v1185, 0.044715
  %v1384 = vmul.f32 %v1187, 0.044715
  %v1385 = vmul.f32 %v1238, 0.044715
  %v1386 = vmul.f32 %v1240, 0.044715
  %v1387 = vmul.f32 %v1291, 0.044715
  %v1388 = vmul.f32 %v1293, 0.044715
  %v1389 = vmul.f32 %v924, 0.044715
  %v1390 = vmul.f32 %v926, 0.044715
  %v1391 = vmul.f32 %v977, 0.044715
  %v1392 = vmul.f32 %v979, 0.044715
  %v1393 = vmul.f32 %v1030, 0.044715
  %v1394 = vmul.f32 %v1032, 0.044715
  %v1395 = vmul.f32 %v1083, 0.044715
  %v1396 = vmul.f32 %v1085, 0.044715
  %v1397 = vmul.f32 %v1136, 0.044715
  %v1398 = vmul.f32 %v1138, 0.044715
  %v1399 = vmul.f32 %v1189, 0.044715
  %v1400 = vmul.f32 %v1191, 0.044715
  %v1401 = vmul.f32 %v1242, 0.044715
  %v1402 = vmul.f32 %v1244, 0.044715
  %v1403 = vmul.f32 %v1295, 0.044715
  %v1404 = vmul.f32 %v1297, 0.044715
  %v1405 = vmul.f32 %v930, 0.044715
  %v1406 = vmul.f32 %v932, 0.044715
  %v1407 = vmul.f32 %v983, 0.044715
  %v1408 = vmul.f32 %v985, 0.044715
  %v1409 = vmul.f32 %v1036, 0.044715
  %v1410 = vmul.f32 %v1038, 0.044715
  %v1411 = vmul.f32 %v1089, 0.044715
  %v1412 = vmul.f32 %v1091, 0.044715
  %v1413 = vmul.f32 %v1142, 0.044715
  %v1414 = vmul.f32 %v1144, 0.044715
  %v1415 = vmul.f32 %v1195, 0.044715
  %v1416 = vmul.f32 %v1197, 0.044715
  %v1417 = vmul.f32 %v1248, 0.044715
  %v1418 = vmul.f32 %v1250, 0.044715
  %v1419 = vmul.f32 %v1301, 0.044715
  %v1420 = vmul.f32 %v1303, 0.044715
  %v1421 = vmul.f32 %v934, 0.044715
  %v1422 = vmul.f32 %v936, 0.044715
  %v1423 = vmul.f32 %v987, 0.044715
  %v1424 = vmul.f32 %v989, 0.044715
  %v1425 = vmul.f32 %v1040, 0.044715
  %v1426 = vmul.f32 %v1042, 0.044715
  %v1427 = vmul.f32 %v1093, 0.044715
  %v1428 = vmul.f32 %v1095, 0.044715
  %v1429 = vmul.f32 %v1146, 0.044715
  %v1430 = vmul.f32 %v1148, 0.044715
  %v1431 = vmul.f32 %v1199, 0.044715
  %v1432 = vmul.f32 %v1201, 0.044715
  %v1433 = vmul.f32 %v1252, 0.044715
  %v1434 = vmul.f32 %v1254, 0.044715
  %v1435 = vmul.f32 %v1305, 0.044715
  %v1436 = vmul.f32 %v1307, 0.044715
  %v1437 = vmul.f32 %v1373, %v920
  %v1438 = vmul.f32 %v1374, %v922
  %v1439 = vmul.f32 %v1375, %v973
  %v1440 = vmul.f32 %v1376, %v975
  %v1441 = vmul.f32 %v1377, %v1026
  %v1442 = vmul.f32 %v1378, %v1028
  %v1443 = vmul.f32 %v1379, %v1079
  %v1444 = vmul.f32 %v1380, %v1081
  %v1445 = vmul.f32 %v1381, %v1132
  %v1446 = vmul.f32 %v1382, %v1134
  %v1447 = vmul.f32 %v1383, %v1185
  %v1448 = vmul.f32 %v1384, %v1187
  %v1449 = vmul.f32 %v1385, %v1238
  %v1450 = vmul.f32 %v1386, %v1240
  %v1451 = vmul.f32 %v1387, %v1291
  %v1452 = vmul.f32 %v1388, %v1293
  %v1453 = vmul.f32 %v1389, %v924
  %v1454 = vmul.f32 %v1390, %v926
  %v1455 = vmul.f32 %v1391, %v977
  %v1456 = vmul.f32 %v1392, %v979
  %v1457 = vmul.f32 %v1393, %v1030
  %v1458 = vmul.f32 %v1394, %v1032
  %v1459 = vmul.f32 %v1395, %v1083
  %v1460 = vmul.f32 %v1396, %v1085
  %v1461 = vmul.f32 %v1397, %v1136
  %v1462 = vmul.f32 %v1398, %v1138
  %v1463 = vmul.f32 %v1399, %v1189
  %v1464 = vmul.f32 %v1400, %v1191
  %v1465 = vmul.f32 %v1401, %v1242
  %v1466 = vmul.f32 %v1402, %v1244
  %v1467 = vmul.f32 %v1403, %v1295
  %v1468 = vmul.f32 %v1404, %v1297
  %v1469 = vmul.f32 %v1405, %v930
  %v1470 = vmul.f32 %v1406, %v932
  %v1471 = vmul.f32 %v1407, %v983
  %v1472 = vmul.f32 %v1408, %v985
  %v1473 = vmul.f32 %v1409, %v1036
  %v1474 = vmul.f32 %v1410, %v1038
  %v1475 = vmul.f32 %v1411, %v1089
  %v1476 = vmul.f32 %v1412, %v1091
  %v1477 = vmul.f32 %v1413, %v1142
  %v1478 = vmul.f32 %v1414, %v1144
  %v1479 = vmul.f32 %v1415, %v1195
  %v1480 = vmul.f32 %v1416, %v1197
  %v1481 = vmul.f32 %v1417, %v1248
  %v1482 = vmul.f32 %v1418, %v1250
  %v1483 = vmul.f32 %v1419, %v1301
  %v1484 = vmul.f32 %v1420, %v1303
  %v1485 = vmul.f32 %v1421, %v934
  %v1486 = vmul.f32 %v1422, %v936
  %v1487 = vmul.f32 %v1423, %v987
  %v1488 = vmul.f32 %v1424, %v989
  %v1489 = vmul.f32 %v1425, %v1040
  %v1490 = vmul.f32 %v1426, %v1042
  %v1491 = vmul.f32 %v1427, %v1093
  %v1492 = vmul.f32 %v1428, %v1095
  %v1493 = vmul.f32 %v1429, %v1146
  %v1494 = vmul.f32 %v1430, %v1148
  %v1495 = vmul.f32 %v1431, %v1199
  %v1496 = vmul.f32 %v1432, %v1201
  %v1497 = vmul.f32 %v1433, %v1252
  %v1498 = vmul.f32 %v1434, %v1254
  %v1499 = vmul.f32 %v1435, %v1305
  %v1500 = vmul.f32 %v1436, %v1307
  %v1501 = vmul.f32 %v1437, %v920
  %v1502 = vmul.f32 %v1438, %v922
  %v1503 = vmul.f32 %v1439, %v973
  %v1504 = vmul.f32 %v1440, %v975
  %v1505 = vmul.f32 %v1441, %v1026
  %v1506 = vmul.f32 %v1442, %v1028
  %v1507 = vmul.f32 %v1443, %v1079
  %v1508 = vmul.f32 %v1444, %v1081
  %v1509 = vmul.f32 %v1445, %v1132
  %v1510 = vmul.f32 %v1446, %v1134
  %v1511 = vmul.f32 %v1447, %v1185
  %v1512 = vmul.f32 %v1448, %v1187
  %v1513 = vmul.f32 %v1449, %v1238
  %v1514 = vmul.f32 %v1450, %v1240
  %v1515 = vmul.f32 %v1451, %v1291
  %v1516 = vmul.f32 %v1452, %v1293
  %v1517 = vmul.f32 %v1453, %v924
  %v1518 = vmul.f32 %v1454, %v926
  %v1519 = vmul.f32 %v1455, %v977
  %v1520 = vmul.f32 %v1456, %v979
  %v1521 = vmul.f32 %v1457, %v1030
  %v1522 = vmul.f32 %v1458, %v1032
  %v1523 = vmul.f32 %v1459, %v1083
  %v1524 = vmul.f32 %v1460, %v1085
  %v1525 = vmul.f32 %v1461, %v1136
  %v1526 = vmul.f32 %v1462, %v1138
  %v1527 = vmul.f32 %v1463, %v1189
  %v1528 = vmul.f32 %v1464, %v1191
  %v1529 = vmul.f32 %v1465, %v1242
  %v1530 = vmul.f32 %v1466, %v1244
  %v1531 = vmul.f32 %v1467, %v1295
  %v1532 = vmul.f32 %v1468, %v1297
  %v1533 = vmul.f32 %v1469, %v930
  %v1534 = vmul.f32 %v1470, %v932
  %v1535 = vmul.f32 %v1471, %v983
  %v1536 = vmul.f32 %v1472, %v985
  %v1537 = vmul.f32 %v1473, %v1036
  %v1538 = vmul.f32 %v1474, %v1038
  %v1539 = vmul.f32 %v1475, %v1089
  %v1540 = vmul.f32 %v1476, %v1091
  %v1541 = vmul.f32 %v1477, %v1142
  %v1542 = vmul.f32 %v1478, %v1144
  %v1543 = vmul.f32 %v1479, %v1195
  %v1544 = vmul.f32 %v1480, %v1197
  %v1545 = vmul.f32 %v1481, %v1248
  %v1546 = vmul.f32 %v1482, %v1250
  %v1547 = vmul.f32 %v1483, %v1301
  %v1548 = vmul.f32 %v1484, %v1303
  %v1549 = vmul.f32 %v1485, %v934
  %v1550 = vmul.f32 %v1486, %v936
  %v1551 = vmul.f32 %v1487, %v987
  %v1552 = vmul.f32 %v1488, %v989
  %v1553 = vmul.f32 %v1489, %v1040
  %v1554 = vmul.f32 %v1490, %v1042
  %v1555 = vmul.f32 %v1491, %v1093
  %v1556 = vmul.f32 %v1492, %v1095
  %v1557 = vmul.f32 %v1493, %v1146
  %v1558 = vmul.f32 %v1494, %v1148
  %v1559 = vmul.f32 %v1495, %v1199
  %v1560 = vmul.f32 %v1496, %v1201
  %v1561 = vmul.f32 %v1497, %v1252
  %v1562 = vmul.f32 %v1498, %v1254
  %v1563 = vmul.f32 %v1499, %v1305
  %v1564 = vmul.f32 %v1500, %v1307
  %v1565 = vadd.f32 %v920, %v1501
  %v1566 = vadd.f32 %v922, %v1502
  %v1567 = vadd.f32 %v973, %v1503
  %v1568 = vadd.f32 %v975, %v1504
  %v1569 = vadd.f32 %v1026, %v1505
  %v1570 = vadd.f32 %v1028, %v1506
  %v1571 = vadd.f32 %v1079, %v1507
  %v1572 = vadd.f32 %v1081, %v1508
  %v1573 = vadd.f32 %v1132, %v1509
  %v1574 = vadd.f32 %v1134, %v1510
  %v1575 = vadd.f32 %v1185, %v1511
  %v1576 = vadd.f32 %v1187, %v1512
  %v1577 = vadd.f32 %v1238, %v1513
  %v1578 = vadd.f32 %v1240, %v1514
  %v1579 = vadd.f32 %v1291, %v1515
  %v1580 = vadd.f32 %v1293, %v1516
  %v1581 = vadd.f32 %v924, %v1517
  %v1582 = vadd.f32 %v926, %v1518
  %v1583 = vadd.f32 %v977, %v1519
  %v1584 = vadd.f32 %v979, %v1520
  %v1585 = vadd.f32 %v1030, %v1521
  %v1586 = vadd.f32 %v1032, %v1522
  %v1587 = vadd.f32 %v1083, %v1523
  %v1588 = vadd.f32 %v1085, %v1524
  %v1589 = vadd.f32 %v1136, %v1525
  %v1590 = vadd.f32 %v1138, %v1526
  %v1591 = vadd.f32 %v1189, %v1527
  %v1592 = vadd.f32 %v1191, %v1528
  %v1593 = vadd.f32 %v1242, %v1529
  %v1594 = vadd.f32 %v1244, %v1530
  %v1595 = vadd.f32 %v1295, %v1531
  %v1596 = vadd.f32 %v1297, %v1532
  %v1597 = vadd.f32 %v930, %v1533
  %v1598 = vadd.f32 %v932, %v1534
  %v1599 = vadd.f32 %v983, %v1535
  %v1600 = vadd.f32 %v985, %v1536
  %v1601 = vadd.f32 %v1036, %v1537
  %v1602 = vadd.f32 %v1038, %v1538
  %v1603 = vadd.f32 %v1089, %v1539
  %v1604 = vadd.f32 %v1091, %v1540
  %v1605 = vadd.f32 %v1142, %v1541
  %v1606 = vadd.f32 %v1144, %v1542
  %v1607 = vadd.f32 %v1195, %v1543
  %v1608 = vadd.f32 %v1197, %v1544
  %v1609 = vadd.f32 %v1248, %v1545
  %v1610 = vadd.f32 %v1250, %v1546
  %v1611 = vadd.f32 %v1301, %v1547
  %v1612 = vadd.f32 %v1303, %v1548
  %v1613 = vadd.f32 %v934, %v1549
  %v1614 = vadd.f32 %v936, %v1550
  %v1615 = vadd.f32 %v987, %v1551
  %v1616 = vadd.f32 %v989, %v1552
  %v1617 = vadd.f32 %v1040, %v1553
  %v1618 = vadd.f32 %v1042, %v1554
  %v1619 = vadd.f32 %v1093, %v1555
  %v1620 = vadd.f32 %v1095, %v1556
  %v1621 = vadd.f32 %v1146, %v1557
  %v1622 = vadd.f32 %v1148, %v1558
  %v1623 = vadd.f32 %v1199, %v1559
  %v1624 = vadd.f32 %v1201, %v1560
  %v1625 = vadd.f32 %v1252, %v1561
  %v1626 = vadd.f32 %v1254, %v1562
  %v1627 = vadd.f32 %v1305, %v1563
  %v1628 = vadd.f32 %v1307, %v1564
  %v1629 = vmul.f32 %v1565, 0.7978846
  %v1630 = vmul.f32 %v1566, 0.7978846
  %v1631 = vmul.f32 %v1567, 0.7978846
  %v1632 = vmul.f32 %v1568, 0.7978846
  %v1633 = vmul.f32 %v1569, 0.7978846
  %v1634 = vmul.f32 %v1570, 0.7978846
  %v1635 = vmul.f32 %v1571, 0.7978846
  %v1636 = vmul.f32 %v1572, 0.7978846
  %v1637 = vmul.f32 %v1573, 0.7978846
  %v1638 = vmul.f32 %v1574, 0.7978846
  %v1639 = vmul.f32 %v1575, 0.7978846
  %v1640 = vmul.f32 %v1576, 0.7978846
  %v1641 = vmul.f32 %v1577, 0.7978846
  %v1642 = vmul.f32 %v1578, 0.7978846
  %v1643 = vmul.f32 %v1579, 0.7978846
  %v1644 = vmul.f32 %v1580, 0.7978846
  %v1645 = vmul.f32 %v1581, 0.7978846
  %v1646 = vmul.f32 %v1582, 0.7978846
  %v1647 = vmul.f32 %v1583, 0.7978846
  %v1648 = vmul.f32 %v1584, 0.7978846
  %v1649 = vmul.f32 %v1585, 0.7978846
  %v1650 = vmul.f32 %v1586, 0.7978846
  %v1651 = vmul.f32 %v1587, 0.7978846
  %v1652 = vmul.f32 %v1588, 0.7978846
  %v1653 = vmul.f32 %v1589, 0.7978846
  %v1654 = vmul.f32 %v1590, 0.7978846
  %v1655 = vmul.f32 %v1591, 0.7978846
  %v1656 = vmul.f32 %v1592, 0.7978846
  %v1657 = vmul.f32 %v1593, 0.7978846
  %v1658 = vmul.f32 %v1594, 0.7978846
  %v1659 = vmul.f32 %v1595, 0.7978846
  %v1660 = vmul.f32 %v1596, 0.7978846
  %v1661 = vmul.f32 %v1597, 0.7978846
  %v1662 = vmul.f32 %v1598, 0.7978846
  %v1663 = vmul.f32 %v1599, 0.7978846
  %v1664 = vmul.f32 %v1600, 0.7978846
  %v1665 = vmul.f32 %v1601, 0.7978846
  %v1666 = vmul.f32 %v1602, 0.7978846
  %v1667 = vmul.f32 %v1603, 0.7978846
  %v1668 = vmul.f32 %v1604, 0.7978846
  %v1669 = vmul.f32 %v1605, 0.7978846
  %v1670 = vmul.f32 %v1606, 0.7978846
  %v1671 = vmul.f32 %v1607, 0.7978846
  %v1672 = vmul.f32 %v1608, 0.7978846
  %v1673 = vmul.f32 %v1609, 0.7978846
  %v1674 = vmul.f32 %v1610, 0.7978846
  %v1675 = vmul.f32 %v1611, 0.7978846
  %v1676 = vmul.f32 %v1612, 0.7978846
  %v1677 = vmul.f32 %v1613, 0.7978846
  %v1678 = vmul.f32 %v1614, 0.7978846
  %v1679 = vmul.f32 %v1615, 0.7978846
  %v1680 = vmul.f32 %v1616, 0.7978846
  %v1681 = vmul.f32 %v1617, 0.7978846
  %v1682 = vmul.f32 %v1618, 0.7978846
  %v1683 = vmul.f32 %v1619, 0.7978846
  %v1684 = vmul.f32 %v1620, 0.7978846
  %v1685 = vmul.f32 %v1621, 0.7978846
  %v1686 = vmul.f32 %v1622, 0.7978846
  %v1687 = vmul.f32 %v1623, 0.7978846
  %v1688 = vmul.f32 %v1624, 0.7978846
  %v1689 = vmul.f32 %v1625, 0.7978846
  %v1690 = vmul.f32 %v1626, 0.7978846
  %v1691 = vmul.f32 %v1627, 0.7978846
  %v1692 = vmul.f32 %v1628, 0.7978846
  %v1693 = vtanh.pop %v1629
  %v1694 = vtanh.pop %v1630
  %v1695 = vtanh.pop %v1631
  %v1696 = vtanh.pop %v1632
  %v1697 = vtanh.pop %v1633
  %v1698 = vtanh.pop %v1634
  %v1699 = vtanh.pop %v1635
  %v1700 = vtanh.pop %v1636
  %v1701 = vtanh.pop %v1637
  %v1702 = vtanh.pop %v1638
  %v1703 = vtanh.pop %v1639
  %v1704 = vtanh.pop %v1640
  %v1705 = vtanh.pop %v1641
  %v1706 = vtanh.pop %v1642
  %v1707 = vtanh.pop %v1643
  %v1708 = vtanh.pop %v1644
  %v1709 = vtanh.pop %v1645
  %v1710 = vtanh.pop %v1646
  %v1711 = vtanh.pop %v1647
  %v1712 = vtanh.pop %v1648
  %v1713 = vtanh.pop %v1649
  %v1714 = vtanh.pop %v1650
  %v1715 = vtanh.pop %v1651
  %v1716 = vtanh.pop %v1652
  %v1717 = vtanh.pop %v1653
  %v1718 = vtanh.pop %v1654
  %v1719 = vtanh.pop %v1655
  %v1720 = vtanh.pop %v1656
  %v1721 = vtanh.pop %v1657
  %v1722 = vtanh.pop %v1658
  %v1723 = vtanh.pop %v1659
  %v1724 = vtanh.pop %v1660
  %v1725 = vtanh.pop %v1661
  %v1726 = vtanh.pop %v1662
  %v1727 = vtanh.pop %v1663
  %v1728 = vtanh.pop %v1664
  %v1729 = vtanh.pop %v1665
  %v1730 = vtanh.pop %v1666
  %v1731 = vtanh.pop %v1667
  %v1732 = vtanh.pop %v1668
  %v1733 = vtanh.pop %v1669
  %v1734 = vtanh.pop %v1670
  %v1735 = vtanh.pop %v1671
  %v1736 = vtanh.pop %v1672
  %v1737 = vtanh.pop %v1673
  %v1738 = vtanh.pop %v1674
  %v1739 = vtanh.pop %v1675
  %v1740 = vtanh.pop %v1676
  %v1741 = vtanh.pop %v1677
  %v1742 = vtanh.pop %v1678
  %v1743 = vtanh.pop %v1679
  %v1744 = vtanh.pop %v1680
  %v1745 = vtanh.pop %v1681
  %v1746 = vtanh.pop %v1682
  %v1747 = vtanh.pop %v1683
  %v1748 = vtanh.pop %v1684
  %v1749 = vtanh.pop %v1685
  %v1750 = vtanh.pop %v1686
  %v1751 = vtanh.pop %v1687
  %v1752 = vtanh.pop %v1688
  %v1753 = vtanh.pop %v1689
  %v1754 = vtanh.pop %v1690
  %v1755 = vtanh.pop %v1691
  %v1756 = vtanh.pop %v1692
  %v1757 = vadd.f32 %v1693, 1.0
  %v1758 = vadd.f32 %v1694, 1.0
  %v1759 = vadd.f32 %v1695, 1.0
  %v1760 = vadd.f32 %v1696, 1.0
  %v1761 = vadd.f32 %v1697, 1.0
  %v1762 = vadd.f32 %v1698, 1.0
  %v1763 = vadd.f32 %v1699, 1.0
  %v1764 = vadd.f32 %v1700, 1.0
  %v1765 = vadd.f32 %v1701, 1.0
  %v1766 = vadd.f32 %v1702, 1.0
  %v1767 = vadd.f32 %v1703, 1.0
  %v1768 = vadd.f32 %v1704, 1.0
  %v1769 = vadd.f32 %v1705, 1.0
  %v1770 = vadd.f32 %v1706, 1.0
  %v1771 = vadd.f32 %v1707, 1.0
  %v1772 = vadd.f32 %v1708, 1.0
  %v1773 = vadd.f32 %v1709, 1.0
  %v1774 = vadd.f32 %v1710, 1.0
  %v1775 = vadd.f32 %v1711, 1.0
  %v1776 = vadd.f32 %v1712, 1.0
  %v1777 = vadd.f32 %v1713, 1.0
  %v1778 = vadd.f32 %v1714, 1.0
  %v1779 = vadd.f32 %v1715, 1.0
  %v1780 = vadd.f32 %v1716, 1.0
  %v1781 = vadd.f32 %v1717, 1.0
  %v1782 = vadd.f32 %v1718, 1.0
  %v1783 = vadd.f32 %v1719, 1.0
  %v1784 = vadd.f32 %v1720, 1.0
  %v1785 = vadd.f32 %v1721, 1.0
  %v1786 = vadd.f32 %v1722, 1.0
  %v1787 = vadd.f32 %v1723, 1.0
  %v1788 = vadd.f32 %v1724, 1.0
  %v1789 = vadd.f32 %v1725, 1.0
  %v1790 = vadd.f32 %v1726, 1.0
  %v1791 = vadd.f32 %v1727, 1.0
  %v1792 = vadd.f32 %v1728, 1.0
  %v1793 = vadd.f32 %v1729, 1.0
  %v1794 = vadd.f32 %v1730, 1.0
  %v1795 = vadd.f32 %v1731, 1.0
  %v1796 = vadd.f32 %v1732, 1.0
  %v1797 = vadd.f32 %v1733, 1.0
  %v1798 = vadd.f32 %v1734, 1.0
  %v1799 = vadd.f32 %v1735, 1.0
  %v1800 = vadd.f32 %v1736, 1.0
  %v1801 = vadd.f32 %v1737, 1.0
  %v1802 = vadd.f32 %v1738, 1.0
  %v1803 = vadd.f32 %v1739, 1.0
  %v1804 = vadd.f32 %v1740, 1.0
  %v1805 = vadd.f32 %v1741, 1.0
  %v1806 = vadd.f32 %v1742, 1.0
  %v1807 = vadd.f32 %v1743, 1.0
  %v1808 = vadd.f32 %v1744, 1.0
  %v1809 = vadd.f32 %v1745, 1.0
  %v1810 = vadd.f32 %v1746, 1.0
  %v1811 = vadd.f32 %v1747, 1.0
  %v1812 = vadd.f32 %v1748, 1.0
  %v1813 = vadd.f32 %v1749, 1.0
  %v1814 = vadd.f32 %v1750, 1.0
  %v1815 = vadd.f32 %v1751, 1.0
  %v1816 = vadd.f32 %v1752, 1.0
  %v1817 = vadd.f32 %v1753, 1.0
  %v1818 = vadd.f32 %v1754, 1.0
  %v1819 = vadd.f32 %v1755, 1.0
  %v1820 = vadd.f32 %v1756, 1.0
  %v1821 = vmul.f32 %v1309, %v1757
  %v1822 = vmul.f32 %v1310, %v1758
  %v1823 = vmul.f32 %v1311, %v1759
  %v1824 = vmul.f32 %v1312, %v1760
  %v1825 = vmul.f32 %v1313, %v1761
  %v1826 = vmul.f32 %v1314, %v1762
  %v1827 = vmul.f32 %v1315, %v1763
  %v1828 = vmul.f32 %v1316, %v1764
  %v1829 = vmul.f32 %v1317, %v1765
  %v1830 = vmul.f32 %v1318, %v1766
  %v1831 = vmul.f32 %v1319, %v1767
  %v1832 = vmul.f32 %v1320, %v1768
  %v1833 = vmul.f32 %v1321, %v1769
  %v1834 = vmul.f32 %v1322, %v1770
  %v1835 = vmul.f32 %v1323, %v1771
  %v1836 = vmul.f32 %v1324, %v1772
  %v1837 = vmul.f32 %v1325, %v1773
  %v1838 = vmul.f32 %v1326, %v1774
  %v1839 = vmul.f32 %v1327, %v1775
  %v1840 = vmul.f32 %v1328, %v1776
  %v1841 = vmul.f32 %v1329, %v1777
  %v1842 = vmul.f32 %v1330, %v1778
  %v1843 = vmul.f32 %v1331, %v1779
  %v1844 = vmul.f32 %v1332, %v1780
  %v1845 = vmul.f32 %v1333, %v1781
  %v1846 = vmul.f32 %v1334, %v1782
  %v1847 = vmul.f32 %v1335, %v1783
  %v1848 = vmul.f32 %v1336, %v1784
  %v1849 = vmul.f32 %v1337, %v1785
  %v1850 = vmul.f32 %v1338, %v1786
  %v1851 = vmul.f32 %v1339, %v1787
  %v1852 = vmul.f32 %v1340, %v1788
  %v1853 = vmul.f32 %v1341, %v1789
  %v1854 = vmul.f32 %v1342, %v1790
  %v1855 = vmul.f32 %v1343, %v1791
  %v1856 = vmul.f32 %v1344, %v1792
  %v1857 = vmul.f32 %v1345, %v1793
  %v1858 = vmul.f32 %v1346, %v1794
  %v1859 = vmul.f32 %v1347, %v1795
  %v1860 = vmul.f32 %v1348, %v1796
  %v1861 = vmul.f32 %v1349, %v1797
  %v1862 = vmul.f32 %v1350, %v1798
  %v1863 = vmul.f32 %v1351, %v1799
  %v1864 = vmul.f32 %v1352, %v1800
  %v1865 = vmul.f32 %v1353, %v1801
  %v1866 = vmul.f32 %v1354, %v1802
  %v1867 = vmul.f32 %v1355, %v1803
  %v1868 = vmul.f32 %v1356, %v1804
  %v1869 = vmul.f32 %v1357, %v1805
  %v1870 = vmul.f32 %v1358, %v1806
  %v1871 = vmul.f32 %v1359, %v1807
  %v1872 = vmul.f32 %v1360, %v1808
  %v1873 = vmul.f32 %v1361, %v1809
  %v1874 = vmul.f32 %v1362, %v1810
  %v1875 = vmul.f32 %v1363, %v1811
  %v1876 = vmul.f32 %v1364, %v1812
  %v1877 = vmul.f32 %v1365, %v1813
  %v1878 = vmul.f32 %v1366, %v1814
  %v1879 = vmul.f32 %v1367, %v1815
  %v1880 = vmul.f32 %v1368, %v1816
  %v1881 = vmul.f32 %v1369, %v1817
  %v1882 = vmul.f32 %v1370, %v1818
  %v1883 = vmul.f32 %v1371, %v1819
  %v1884 = vmul.f32 %v1372, %v1820
  %v1885 = vpack.c.bf16 %v1837, %v1821
  %v1886 = vpack.c.bf16 %v1838, %v1822
  %v1887 = vpack.c.bf16 %v1839, %v1823
  %v1888 = vpack.c.bf16 %v1840, %v1824
  %v1889 = vpack.c.bf16 %v1841, %v1825
  %v1890 = vpack.c.bf16 %v1842, %v1826
  %v1891 = vpack.c.bf16 %v1843, %v1827
  %v1892 = vpack.c.bf16 %v1844, %v1828
  %v1893 = vpack.c.bf16 %v1845, %v1829
  %v1894 = vpack.c.bf16 %v1846, %v1830
  %v1895 = vpack.c.bf16 %v1847, %v1831
  %v1896 = vpack.c.bf16 %v1848, %v1832
  %v1897 = vpack.c.bf16 %v1849, %v1833
  %v1898 = vpack.c.bf16 %v1850, %v1834
  %v1899 = vpack.c.bf16 %v1851, %v1835
  %v1900 = vpack.c.bf16 %v1852, %v1836
  %v1901 = vpack.c.bf16 %v1869, %v1853
  %v1902 = vpack.c.bf16 %v1870, %v1854
  %v1903 = vpack.c.bf16 %v1871, %v1855
  %v1904 = vpack.c.bf16 %v1872, %v1856
  %v1905 = vpack.c.bf16 %v1873, %v1857
  %v1906 = vpack.c.bf16 %v1874, %v1858
  %v1907 = vpack.c.bf16 %v1875, %v1859
  %v1908 = vpack.c.bf16 %v1876, %v1860
  %v1909 = vpack.c.bf16 %v1877, %v1861
  %v1910 = vpack.c.bf16 %v1878, %v1862
  %v1911 = vpack.c.bf16 %v1879, %v1863
  %v1912 = vpack.c.bf16 %v1880, %v1864
  %v1913 = vpack.c.bf16 %v1881, %v1865
  %v1914 = vpack.c.bf16 %v1882, %v1866
  %v1915 = vpack.c.bf16 %v1883, %v1867
  %v1916 = vpack.c.bf16 %v1884, %v1868
  %v1917 = vld [vmem:[%s3] sm:$0xf]
  %v1918 = vld [vmem:[%s3 + $0x4] sm:$0xf]
  %v1919 = vld [vmem:[%s3 + $0x8] sm:$0xf]
  %v1920 = vld [vmem:[%s3 + $0xc] sm:$0xf]
  %v1921 = vld [vmem:[%s3 + $0x10] sm:$0xf]
  %v1922 = vld [vmem:[%s3 + $0x14] sm:$0xf]
  %v1923 = vld [vmem:[%s3 + $0x18] sm:$0xf]
  %v1924 = vld [vmem:[%s3 + $0x1c] sm:$0xf]
  %v1925 = vld [vmem:[%s3 + $0x20] sm:$0xf]
  %v1926 = vld [vmem:[%s3 + $0x24] sm:$0xf]
  %v1927 = vld [vmem:[%s3 + $0x28] sm:$0xf]
  %v1928 = vld [vmem:[%s3 + $0x2c] sm:$0xf]
  %v1929 = vld [vmem:[%s3 + $0x30] sm:$0xf]
  %v1930 = vld [vmem:[%s3 + $0x34] sm:$0xf]
  %v1931 = vld [vmem:[%s3 + $0x38] sm:$0xf]
  %v1932 = vld [vmem:[%s3 + $0x3c] sm:$0xf]
  %v1933 = vld [vmem:[%s3 + $0x40] sm:$0xf]
  %v1934 = vld [vmem:[%s3 + $0x44] sm:$0xf]
  %v1935 = vld [vmem:[%s3 + $0x48] sm:$0xf]
  %v1936 = vld [vmem:[%s3 + $0x4c] sm:$0xf]
  %v1937 = vld [vmem:[%s3 + $0x50] sm:$0xf]
  %v1938 = vld [vmem:[%s3 + $0x54] sm:$0xf]
  %v1939 = vld [vmem:[%s3 + $0x58] sm:$0xf]
  %v1940 = vld [vmem:[%s3 + $0x5c] sm:$0xf]
  %v1941 = vld [vmem:[%s3 + $0x60] sm:$0xf]
  %v1942 = vld [vmem:[%s3 + $0x64] sm:$0xf]
  %v1943 = vld [vmem:[%s3 + $0x68] sm:$0xf]
  %v1944 = vld [vmem:[%s3 + $0x6c] sm:$0xf]
  %v1945 = vld [vmem:[%s3 + $0x70] sm:$0xf]
  %v1946 = vld [vmem:[%s3 + $0x74] sm:$0xf]
  %v1947 = vld [vmem:[%s3 + $0x78] sm:$0xf]
  %v1948 = vld [vmem:[%s3 + $0x7c] sm:$0xf]
  %v1949 = vld [vmem:[%s3 + $0x80] sm:$0xf]
  %v1950 = vld [vmem:[%s3 + $0x84] sm:$0xf]
  %v1951 = vld [vmem:[%s3 + $0x88] sm:$0xf]
  %v1952 = vld [vmem:[%s3 + $0x8c] sm:$0xf]
  %v1953 = vld [vmem:[%s3 + $0x90] sm:$0xf]
  %v1954 = vld [vmem:[%s3 + $0x94] sm:$0xf]
  %v1955 = vld [vmem:[%s3 + $0x98] sm:$0xf]
  %v1956 = vld [vmem:[%s3 + $0x9c] sm:$0xf]
  %v1957 = vld [vmem:[%s3 + $0xa0] sm:$0xf]
  %v1958 = vld [vmem:[%s3 + $0xa4] sm:$0xf]
  %v1959 = vld [vmem:[%s3 + $0xa8] sm:$0xf]
  %v1960 = vld [vmem:[%s3 + $0xac] sm:$0xf]
  %v1961 = vld [vmem:[%s3 + $0xb0] sm:$0xf]
  %v1962 = vld [vmem:[%s3 + $0xb4] sm:$0xf]
  %v1963 = vld [vmem:[%s3 + $0xb8] sm:$0xf]
  %v1964 = vld [vmem:[%s3 + $0xbc] sm:$0xf]
  %v1965 = vld [vmem:[%s3 + $0xc0] sm:$0xf]
  %v1966 = vld [vmem:[%s3 + $0xc4] sm:$0xf]
  %v1967 = vld [vmem:[%s3 + $0xc8] sm:$0xf]
  %v1968 = vld [vmem:[%s3 + $0xcc] sm:$0xf]
  %v1969 = vld [vmem:[%s3 + $0xd0] sm:$0xf]
  %v1970 = vld [vmem:[%s3 + $0xd4] sm:$0xf]
  %v1971 = vld [vmem:[%s3 + $0xd8] sm:$0xf]
  %v1972 = vld [vmem:[%s3 + $0xdc] sm:$0xf]
  %v1973 = vld [vmem:[%s3 + $0xe0] sm:$0xf]
  %v1974 = vld [vmem:[%s3 + $0xe4] sm:$0xf]
  %v1975 = vld [vmem:[%s3 + $0xe8] sm:$0xf]
  %v1976 = vld [vmem:[%s3 + $0xec] sm:$0xf]
  %v1977 = vld [vmem:[%s3 + $0xf0] sm:$0xf]
  %v1978 = vld [vmem:[%s3 + $0xf4] sm:$0xf]
  %v1979 = vld [vmem:[%s3 + $0xf8] sm:$0xf]
  %v1980 = vld [vmem:[%s3 + $0xfc] sm:$0xf]
  %v1981 = vld [vmem:[%s3 + $0x100] sm:$0xf]
  %v1982 = vld [vmem:[%s3 + $0x104] sm:$0xf]
  %v1983 = vld [vmem:[%s3 + $0x108] sm:$0xf]
  %v1984 = vld [vmem:[%s3 + $0x10c] sm:$0xf]
  %v1985 = vld [vmem:[%s3 + $0x110] sm:$0xf]
  %v1986 = vld [vmem:[%s3 + $0x114] sm:$0xf]
  %v1987 = vld [vmem:[%s3 + $0x118] sm:$0xf]
  %v1988 = vld [vmem:[%s3 + $0x11c] sm:$0xf]
  %v1989 = vld [vmem:[%s3 + $0x120] sm:$0xf]
  %v1990 = vld [vmem:[%s3 + $0x124] sm:$0xf]
  %v1991 = vld [vmem:[%s3 + $0x128] sm:$0xf]
  %v1992 = vld [vmem:[%s3 + $0x12c] sm:$0xf]
  %v1993 = vld [vmem:[%s3 + $0x130] sm:$0xf]
  %v1994 = vld [vmem:[%s3 + $0x134] sm:$0xf]
  %v1995 = vld [vmem:[%s3 + $0x138] sm:$0xf]
  %v1996 = vld [vmem:[%s3 + $0x13c] sm:$0xf]
  %v1997 = vld [vmem:[%s3 + $0x140] sm:$0xf]
  %v1998 = vld [vmem:[%s3 + $0x144] sm:$0xf]
  %v1999 = vld [vmem:[%s3 + $0x148] sm:$0xf]
  %v2000 = vld [vmem:[%s3 + $0x14c] sm:$0xf]
  %v2001 = vld [vmem:[%s3 + $0x150] sm:$0xf]
  %v2002 = vld [vmem:[%s3 + $0x154] sm:$0xf]
  %v2003 = vld [vmem:[%s3 + $0x158] sm:$0xf]
  %v2004 = vld [vmem:[%s3 + $0x15c] sm:$0xf]
  %v2005 = vld [vmem:[%s3 + $0x160] sm:$0xf]
  %v2006 = vld [vmem:[%s3 + $0x164] sm:$0xf]
  %v2007 = vld [vmem:[%s3 + $0x168] sm:$0xf]
  %v2008 = vld [vmem:[%s3 + $0x16c] sm:$0xf]
  %v2009 = vld [vmem:[%s3 + $0x170] sm:$0xf]
  %v2010 = vld [vmem:[%s3 + $0x174] sm:$0xf]
  %v2011 = vld [vmem:[%s3 + $0x178] sm:$0xf]
  %v2012 = vld [vmem:[%s3 + $0x17c] sm:$0xf]
  %v2013 = vld [vmem:[%s3 + $0x180] sm:$0xf]
  %v2014 = vld [vmem:[%s3 + $0x184] sm:$0xf]
  %v2015 = vld [vmem:[%s3 + $0x188] sm:$0xf]
  %v2016 = vld [vmem:[%s3 + $0x18c] sm:$0xf]
  %v2017 = vld [vmem:[%s3 + $0x190] sm:$0xf]
  %v2018 = vld [vmem:[%s3 + $0x194] sm:$0xf]
  %v2019 = vld [vmem:[%s3 + $0x198] sm:$0xf]
  %v2020 = vld [vmem:[%s3 + $0x19c] sm:$0xf]
  %v2021 = vld [vmem:[%s3 + $0x1a0] sm:$0xf]
  %v2022 = vld [vmem:[%s3 + $0x1a4] sm:$0xf]
  %v2023 = vld [vmem:[%s3 + $0x1a8] sm:$0xf]
  %v2024 = vld [vmem:[%s3 + $0x1ac] sm:$0xf]
  %v2025 = vld [vmem:[%s3 + $0x1b0] sm:$0xf]
  %v2026 = vld [vmem:[%s3 + $0x1b4] sm:$0xf]
  %v2027 = vld [vmem:[%s3 + $0x1b8] sm:$0xf]
  %v2028 = vld [vmem:[%s3 + $0x1bc] sm:$0xf]
  %v2029 = vld [vmem:[%s3 + $0x1c0] sm:$0xf]
  %v2030 = vld [vmem:[%s3 + $0x1c4] sm:$0xf]
  %v2031 = vld [vmem:[%s3 + $0x1c8] sm:$0xf]
  %v2032 = vld [vmem:[%s3 + $0x1cc] sm:$0xf]
  %v2033 = vld [vmem:[%s3 + $0x1d0] sm:$0xf]
  %v2034 = vld [vmem:[%s3 + $0x1d4] sm:$0xf]
  %v2035 = vld [vmem:[%s3 + $0x1d8] sm:$0xf]
  %v2036 = vld [vmem:[%s3 + $0x1dc] sm:$0xf]
  %v2037 = vld [vmem:[%s3 + $0x1e0] sm:$0xf]
  %v2038 = vld [vmem:[%s3 + $0x1e4] sm:$0xf]
  %v2039 = vld [vmem:[%s3 + $0x1e8] sm:$0xf]
  %v2040 = vld [vmem:[%s3 + $0x1ec] sm:$0xf]
  %v2041 = vld [vmem:[%s3 + $0x1f0] sm:$0xf]
  %v2042 = vld [vmem:[%s3 + $0x1f4] sm:$0xf]
  %v2043 = vld [vmem:[%s3 + $0x1f8] sm:$0xf]
  %v2044 = vld [vmem:[%s3 + $0x1fc] sm:$0xf]
  %v2045 = vld [vmem:[%s3 + $0x200] sm:$0xf]
  %v2046 = vld [vmem:[%s3 + $0x204] sm:$0xf]
  %v2047 = vld [vmem:[%s3 + $0x208] sm:$0xf]
  %v2048 = vld [vmem:[%s3 + $0x20c] sm:$0xf]
  %v2049 = vld [vmem:[%s3 + $0x210] sm:$0xf]
  %v2050 = vld [vmem:[%s3 + $0x214] sm:$0xf]
  %v2051 = vld [vmem:[%s3 + $0x218] sm:$0xf]
  %v2052 = vld [vmem:[%s3 + $0x21c] sm:$0xf]
  %v2053 = vld [vmem:[%s3 + $0x220] sm:$0xf]
  %v2054 = vld [vmem:[%s3 + $0x224] sm:$0xf]
  %v2055 = vld [vmem:[%s3 + $0x228] sm:$0xf]
  %v2056 = vld [vmem:[%s3 + $0x22c] sm:$0xf]
  %v2057 = vld [vmem:[%s3 + $0x230] sm:$0xf]
  %v2058 = vld [vmem:[%s3 + $0x234] sm:$0xf]
  %v2059 = vld [vmem:[%s3 + $0x238] sm:$0xf]
  %v2060 = vld [vmem:[%s3 + $0x23c] sm:$0xf]
  %v2061 = vld [vmem:[%s3 + $0x240] sm:$0xf]
  %v2062 = vld [vmem:[%s3 + $0x244] sm:$0xf]
  %v2063 = vld [vmem:[%s3 + $0x248] sm:$0xf]
  %v2064 = vld [vmem:[%s3 + $0x24c] sm:$0xf]
  %v2065 = vld [vmem:[%s3 + $0x250] sm:$0xf]
  %v2066 = vld [vmem:[%s3 + $0x254] sm:$0xf]
  %v2067 = vld [vmem:[%s3 + $0x258] sm:$0xf]
  %v2068 = vld [vmem:[%s3 + $0x25c] sm:$0xf]
  %v2069 = vld [vmem:[%s3 + $0x260] sm:$0xf]
  %v2070 = vld [vmem:[%s3 + $0x264] sm:$0xf]
  %v2071 = vld [vmem:[%s3 + $0x268] sm:$0xf]
  %v2072 = vld [vmem:[%s3 + $0x26c] sm:$0xf]
  %v2073 = vld [vmem:[%s3 + $0x270] sm:$0xf]
  %v2074 = vld [vmem:[%s3 + $0x274] sm:$0xf]
  %v2075 = vld [vmem:[%s3 + $0x278] sm:$0xf]
  %v2076 = vld [vmem:[%s3 + $0x27c] sm:$0xf]
  %v2077 = vld [vmem:[%s3 + $0x280] sm:$0xf]
  %v2078 = vld [vmem:[%s3 + $0x284] sm:$0xf]
  %v2079 = vld [vmem:[%s3 + $0x288] sm:$0xf]
  %v2080 = vld [vmem:[%s3 + $0x28c] sm:$0xf]
  %v2081 = vld [vmem:[%s3 + $0x290] sm:$0xf]
  %v2082 = vld [vmem:[%s3 + $0x294] sm:$0xf]
  %v2083 = vld [vmem:[%s3 + $0x298] sm:$0xf]
  %v2084 = vld [vmem:[%s3 + $0x29c] sm:$0xf]
  %v2085 = vld [vmem:[%s3 + $0x2a0] sm:$0xf]
  %v2086 = vld [vmem:[%s3 + $0x2a4] sm:$0xf]
  %v2087 = vld [vmem:[%s3 + $0x2a8] sm:$0xf]
  %v2088 = vld [vmem:[%s3 + $0x2ac] sm:$0xf]
  %v2089 = vld [vmem:[%s3 + $0x2b0] sm:$0xf]
  %v2090 = vld [vmem:[%s3 + $0x2b4] sm:$0xf]
  %v2091 = vld [vmem:[%s3 + $0x2b8] sm:$0xf]
  %v2092 = vld [vmem:[%s3 + $0x2bc] sm:$0xf]
  %v2093 = vld [vmem:[%s3 + $0x2c0] sm:$0xf]
  %v2094 = vld [vmem:[%s3 + $0x2c4] sm:$0xf]
  %v2095 = vld [vmem:[%s3 + $0x2c8] sm:$0xf]
  %v2096 = vld [vmem:[%s3 + $0x2cc] sm:$0xf]
  %v2097 = vld [vmem:[%s3 + $0x2d0] sm:$0xf]
  %v2098 = vld [vmem:[%s3 + $0x2d4] sm:$0xf]
  %v2099 = vld [vmem:[%s3 + $0x2d8] sm:$0xf]
  %v2100 = vld [vmem:[%s3 + $0x2dc] sm:$0xf]
  %v2101 = vld [vmem:[%s3 + $0x2e0] sm:$0xf]
  %v2102 = vld [vmem:[%s3 + $0x2e4] sm:$0xf]
  %v2103 = vld [vmem:[%s3 + $0x2e8] sm:$0xf]
  %v2104 = vld [vmem:[%s3 + $0x2ec] sm:$0xf]
  %v2105 = vld [vmem:[%s3 + $0x2f0] sm:$0xf]
  %v2106 = vld [vmem:[%s3 + $0x2f4] sm:$0xf]
  %v2107 = vld [vmem:[%s3 + $0x2f8] sm:$0xf]
  %v2108 = vld [vmem:[%s3 + $0x2fc] sm:$0xf]
  %v2109 = vld [vmem:[%s3 + $0x300] sm:$0xf]
  %v2110 = vld [vmem:[%s3 + $0x304] sm:$0xf]
  %v2111 = vld [vmem:[%s3 + $0x308] sm:$0xf]
  %v2112 = vld [vmem:[%s3 + $0x30c] sm:$0xf]
  %v2113 = vld [vmem:[%s3 + $0x310] sm:$0xf]
  %v2114 = vld [vmem:[%s3 + $0x314] sm:$0xf]
  %v2115 = vld [vmem:[%s3 + $0x318] sm:$0xf]
  %v2116 = vld [vmem:[%s3 + $0x31c] sm:$0xf]
  %v2117 = vld [vmem:[%s3 + $0x320] sm:$0xf]
  %v2118 = vld [vmem:[%s3 + $0x324] sm:$0xf]
  %v2119 = vld [vmem:[%s3 + $0x328] sm:$0xf]
  %v2120 = vld [vmem:[%s3 + $0x32c] sm:$0xf]
  %v2121 = vld [vmem:[%s3 + $0x330] sm:$0xf]
  %v2122 = vld [vmem:[%s3 + $0x334] sm:$0xf]
  %v2123 = vld [vmem:[%s3 + $0x338] sm:$0xf]
  %v2124 = vld [vmem:[%s3 + $0x33c] sm:$0xf]
  %v2125 = vld [vmem:[%s3 + $0x340] sm:$0xf]
  %v2126 = vld [vmem:[%s3 + $0x344] sm:$0xf]
  %v2127 = vld [vmem:[%s3 + $0x348] sm:$0xf]
  %v2128 = vld [vmem:[%s3 + $0x34c] sm:$0xf]
  %v2129 = vld [vmem:[%s3 + $0x350] sm:$0xf]
  %v2130 = vld [vmem:[%s3 + $0x354] sm:$0xf]
  %v2131 = vld [vmem:[%s3 + $0x358] sm:$0xf]
  %v2132 = vld [vmem:[%s3 + $0x35c] sm:$0xf]
  %v2133 = vld [vmem:[%s3 + $0x360] sm:$0xf]
  %v2134 = vld [vmem:[%s3 + $0x364] sm:$0xf]
  %v2135 = vld [vmem:[%s3 + $0x368] sm:$0xf]
  %v2136 = vld [vmem:[%s3 + $0x36c] sm:$0xf]
  %v2137 = vld [vmem:[%s3 + $0x370] sm:$0xf]
  %v2138 = vld [vmem:[%s3 + $0x374] sm:$0xf]
  %v2139 = vld [vmem:[%s3 + $0x378] sm:$0xf]
  %v2140 = vld [vmem:[%s3 + $0x37c] sm:$0xf]
  %v2141 = vld [vmem:[%s3 + $0x380] sm:$0xf]
  %v2142 = vld [vmem:[%s3 + $0x384] sm:$0xf]
  %v2143 = vld [vmem:[%s3 + $0x388] sm:$0xf]
  %v2144 = vld [vmem:[%s3 + $0x38c] sm:$0xf]
  %v2145 = vld [vmem:[%s3 + $0x390] sm:$0xf]
  %v2146 = vld [vmem:[%s3 + $0x394] sm:$0xf]
  %v2147 = vld [vmem:[%s3 + $0x398] sm:$0xf]
  %v2148 = vld [vmem:[%s3 + $0x39c] sm:$0xf]
  %v2149 = vld [vmem:[%s3 + $0x3a0] sm:$0xf]
  %v2150 = vld [vmem:[%s3 + $0x3a4] sm:$0xf]
  %v2151 = vld [vmem:[%s3 + $0x3a8] sm:$0xf]
  %v2152 = vld [vmem:[%s3 + $0x3ac] sm:$0xf]
  %v2153 = vld [vmem:[%s3 + $0x3b0] sm:$0xf]
  %v2154 = vld [vmem:[%s3 + $0x3b4] sm:$0xf]
  %v2155 = vld [vmem:[%s3 + $0x3b8] sm:$0xf]
  %v2156 = vld [vmem:[%s3 + $0x3bc] sm:$0xf]
  %v2157 = vld [vmem:[%s3 + $0x3c0] sm:$0xf]
  %v2158 = vld [vmem:[%s3 + $0x3c4] sm:$0xf]
  %v2159 = vld [vmem:[%s3 + $0x3c8] sm:$0xf]
  %v2160 = vld [vmem:[%s3 + $0x3cc] sm:$0xf]
  %v2161 = vld [vmem:[%s3 + $0x3d0] sm:$0xf]
  %v2162 = vld [vmem:[%s3 + $0x3d4] sm:$0xf]
  %v2163 = vld [vmem:[%s3 + $0x3d8] sm:$0xf]
  %v2164 = vld [vmem:[%s3 + $0x3dc] sm:$0xf]
  %v2165 = vld [vmem:[%s3 + $0x3e0] sm:$0xf]
  %v2166 = vld [vmem:[%s3 + $0x3e4] sm:$0xf]
  %v2167 = vld [vmem:[%s3 + $0x3e8] sm:$0xf]
  %v2168 = vld [vmem:[%s3 + $0x3ec] sm:$0xf]
  %v2169 = vld [vmem:[%s3 + $0x3f0] sm:$0xf]
  %v2170 = vld [vmem:[%s3 + $0x3f4] sm:$0xf]
  %v2171 = vld [vmem:[%s3 + $0x3f8] sm:$0xf]
  %v2172 = vld [vmem:[%s3 + $0x3fc] sm:$0xf]
  %v2429 = vunpack.c.l.b16 %v1917
  %v2430 = vunpack.c.l.b16 %v1918
  %v2431 = vunpack.c.l.b16 %v1919
  %v2432 = vunpack.c.l.b16 %v1920
  %v2433 = vunpack.c.l.b16 %v1921
  %v2434 = vunpack.c.l.b16 %v1922
  %v2435 = vunpack.c.l.b16 %v1923
  %v2436 = vunpack.c.l.b16 %v1924
  %v2437 = vunpack.c.l.b16 %v1925
  %v2438 = vunpack.c.l.b16 %v1926
  %v2439 = vunpack.c.l.b16 %v1927
  %v2440 = vunpack.c.l.b16 %v1928
  %v2441 = vunpack.c.l.b16 %v1929
  %v2442 = vunpack.c.l.b16 %v1930
  %v2443 = vunpack.c.l.b16 %v1931
  %v2444 = vunpack.c.l.b16 %v1932
  %v2445 = vunpack.c.l.b16 %v1933
  %v2446 = vunpack.c.l.b16 %v1934
  %v2447 = vunpack.c.l.b16 %v1935
  %v2448 = vunpack.c.l.b16 %v1936
  %v2449 = vunpack.c.l.b16 %v1937
  %v2450 = vunpack.c.l.b16 %v1938
  %v2451 = vunpack.c.l.b16 %v1939
  %v2452 = vunpack.c.l.b16 %v1940
  %v2453 = vunpack.c.l.b16 %v1941
  %v2454 = vunpack.c.l.b16 %v1942
  %v2455 = vunpack.c.l.b16 %v1943
  %v2456 = vunpack.c.l.b16 %v1944
  %v2457 = vunpack.c.l.b16 %v1945
  %v2458 = vunpack.c.l.b16 %v1946
  %v2459 = vunpack.c.l.b16 %v1947
  %v2460 = vunpack.c.l.b16 %v1948
  %v2461 = vunpack.c.l.b16 %v1949
  %v2462 = vunpack.c.l.b16 %v1950
  %v2463 = vunpack.c.l.b16 %v1951
  %v2464 = vunpack.c.l.b16 %v1952
  %v2465 = vunpack.c.l.b16 %v1953
  %v2466 = vunpack.c.l.b16 %v1954
  %v2467 = vunpack.c.l.b16 %v1955
  %v2468 = vunpack.c.l.b16 %v1956
  %v2469 = vunpack.c.l.b16 %v1957
  %v2470 = vunpack.c.l.b16 %v1958
  %v2471 = vunpack.c.l.b16 %v1959
  %v2472 = vunpack.c.l.b16 %v1960
  %v2473 = vunpack.c.l.b16 %v1961
  %v2474 = vunpack.c.l.b16 %v1962
  %v2475 = vunpack.c.l.b16 %v1963
  %v2476 = vunpack.c.l.b16 %v1964
  %v2477 = vunpack.c.l.b16 %v1965
  %v2478 = vunpack.c.l.b16 %v1966
  %v2479 = vunpack.c.l.b16 %v1967
  %v2480 = vunpack.c.l.b16 %v1968
  %v2481 = vunpack.c.l.b16 %v1969
  %v2482 = vunpack.c.l.b16 %v1970
  %v2483 = vunpack.c.l.b16 %v1971
  %v2484 = vunpack.c.l.b16 %v1972
  %v2485 = vunpack.c.l.b16 %v1973
  %v2486 = vunpack.c.l.b16 %v1974
  %v2487 = vunpack.c.l.b16 %v1975
  %v2488 = vunpack.c.l.b16 %v1976
  %v2489 = vunpack.c.l.b16 %v1977
  %v2490 = vunpack.c.l.b16 %v1978
  %v2491 = vunpack.c.l.b16 %v1979
  %v2492 = vunpack.c.l.b16 %v1980
  %v2493 = vunpack.c.l.b16 %v1981
  %v2494 = vunpack.c.l.b16 %v1982
  %v2495 = vunpack.c.l.b16 %v1983
  %v2496 = vunpack.c.l.b16 %v1984
  %v2497 = vunpack.c.l.b16 %v1985
  %v2498 = vunpack.c.l.b16 %v1986
  %v2499 = vunpack.c.l.b16 %v1987
  %v2500 = vunpack.c.l.b16 %v1988
  %v2501 = vunpack.c.l.b16 %v1989
  %v2502 = vunpack.c.l.b16 %v1990
  %v2503 = vunpack.c.l.b16 %v1991
  %v2504 = vunpack.c.l.b16 %v1992
  %v2505 = vunpack.c.l.b16 %v1993
  %v2506 = vunpack.c.l.b16 %v1994
  %v2507 = vunpack.c.l.b16 %v1995
  %v2508 = vunpack.c.l.b16 %v1996
  %v2509 = vunpack.c.l.b16 %v1997
  %v2510 = vunpack.c.l.b16 %v1998
  %v2511 = vunpack.c.l.b16 %v1999
  %v2512 = vunpack.c.l.b16 %v2000
  %v2513 = vunpack.c.l.b16 %v2001
  %v2514 = vunpack.c.l.b16 %v2002
  %v2515 = vunpack.c.l.b16 %v2003
  %v2516 = vunpack.c.l.b16 %v2004
  %v2517 = vunpack.c.l.b16 %v2005
  %v2518 = vunpack.c.l.b16 %v2006
  %v2519 = vunpack.c.l.b16 %v2007
  %v2520 = vunpack.c.l.b16 %v2008
  %v2521 = vunpack.c.l.b16 %v2009
  %v2522 = vunpack.c.l.b16 %v2010
  %v2523 = vunpack.c.l.b16 %v2011
  %v2524 = vunpack.c.l.b16 %v2012
  %v2525 = vunpack.c.l.b16 %v2013
  %v2526 = vunpack.c.l.b16 %v2014
  %v2527 = vunpack.c.l.b16 %v2015
  %v2528 = vunpack.c.l.b16 %v2016
  %v2529 = vunpack.c.l.b16 %v2017
  %v2530 = vunpack.c.l.b16 %v2018
  %v2531 = vunpack.c.l.b16 %v2019
  %v2532 = vunpack.c.l.b16 %v2020
  %v2533 = vunpack.c.l.b16 %v2021
  %v2534 = vunpack.c.l.b16 %v2022
  %v2535 = vunpack.c.l.b16 %v2023
  %v2536 = vunpack.c.l.b16 %v2024
  %v2537 = vunpack.c.l.b16 %v2025
  %v2538 = vunpack.c.l.b16 %v2026
  %v2539 = vunpack.c.l.b16 %v2027
  %v2540 = vunpack.c.l.b16 %v2028
  %v2541 = vunpack.c.l.b16 %v2029
  %v2542 = vunpack.c.l.b16 %v2030
  %v2543 = vunpack.c.l.b16 %v2031
  %v2544 = vunpack.c.l.b16 %v2032
  %v2545 = vunpack.c.l.b16 %v2033
  %v2546 = vunpack.c.l.b16 %v2034
  %v2547 = vunpack.c.l.b16 %v2035
  %v2548 = vunpack.c.l.b16 %v2036
  %v2549 = vunpack.c.l.b16 %v2037
  %v2550 = vunpack.c.l.b16 %v2038
  %v2551 = vunpack.c.l.b16 %v2039
  %v2552 = vunpack.c.l.b16 %v2040
  %v2553 = vunpack.c.l.b16 %v2041
  %v2554 = vunpack.c.l.b16 %v2042
  %v2555 = vunpack.c.l.b16 %v2043
  %v2556 = vunpack.c.l.b16 %v2044
  %v2557 = vunpack.c.l.b16 %v2045
  %v2558 = vunpack.c.l.b16 %v2046
  %v2559 = vunpack.c.l.b16 %v2047
  %v2560 = vunpack.c.l.b16 %v2048
  %v2561 = vunpack.c.l.b16 %v2049
  %v2562 = vunpack.c.l.b16 %v2050
  %v2563 = vunpack.c.l.b16 %v2051
  %v2564 = vunpack.c.l.b16 %v2052
  %v2565 = vunpack.c.l.b16 %v2053
  %v2566 = vunpack.c.l.b16 %v2054
  %v2567 = vunpack.c.l.b16 %v2055
  %v2568 = vunpack.c.l.b16 %v2056
  %v2569 = vunpack.c.l.b16 %v2057
  %v2570 = vunpack.c.l.b16 %v2058
  %v2571 = vunpack.c.l.b16 %v2059
  %v2572 = vunpack.c.l.b16 %v2060
  %v2573 = vunpack.c.l.b16 %v2061
  %v2574 = vunpack.c.l.b16 %v2062
  %v2575 = vunpack.c.l.b16 %v2063
  %v2576 = vunpack.c.l.b16 %v2064
  %v2577 = vunpack.c.l.b16 %v2065
  %v2578 = vunpack.c.l.b16 %v2066
  %v2579 = vunpack.c.l.b16 %v2067
  %v2580 = vunpack.c.l.b16 %v2068
  %v2581 = vunpack.c.l.b16 %v2069
  %v2582 = vunpack.c.l.b16 %v2070
  %v2583 = vunpack.c.l.b16 %v2071
  %v2584 = vunpack.c.l.b16 %v2072
  %v2585 = vunpack.c.l.b16 %v2073
  %v2586 = vunpack.c.l.b16 %v2074
  %v2587 = vunpack.c.l.b16 %v2075
  %v2588 = vunpack.c.l.b16 %v2076
  %v2589 = vunpack.c.l.b16 %v2077
  %v2590 = vunpack.c.l.b16 %v2078
  %v2591 = vunpack.c.l.b16 %v2079
  %v2592 = vunpack.c.l.b16 %v2080
  %v2593 = vunpack.c.l.b16 %v2081
  %v2594 = vunpack.c.l.b16 %v2082
  %v2595 = vunpack.c.l.b16 %v2083
  %v2596 = vunpack.c.l.b16 %v2084
  %v2597 = vunpack.c.l.b16 %v2085
  %v2598 = vunpack.c.l.b16 %v2086
  %v2599 = vunpack.c.l.b16 %v2087
  %v2600 = vunpack.c.l.b16 %v2088
  %v2601 = vunpack.c.l.b16 %v2089
  %v2602 = vunpack.c.l.b16 %v2090
  %v2603 = vunpack.c.l.b16 %v2091
  %v2604 = vunpack.c.l.b16 %v2092
  %v2605 = vunpack.c.l.b16 %v2093
  %v2606 = vunpack.c.l.b16 %v2094
  %v2607 = vunpack.c.l.b16 %v2095
  %v2608 = vunpack.c.l.b16 %v2096
  %v2609 = vunpack.c.l.b16 %v2097
  %v2610 = vunpack.c.l.b16 %v2098
  %v2611 = vunpack.c.l.b16 %v2099
  %v2612 = vunpack.c.l.b16 %v2100
  %v2613 = vunpack.c.l.b16 %v2101
  %v2614 = vunpack.c.l.b16 %v2102
  %v2615 = vunpack.c.l.b16 %v2103
  %v2616 = vunpack.c.l.b16 %v2104
  %v2617 = vunpack.c.l.b16 %v2105
  %v2618 = vunpack.c.l.b16 %v2106
  %v2619 = vunpack.c.l.b16 %v2107
  %v2620 = vunpack.c.l.b16 %v2108
  %v2621 = vunpack.c.l.b16 %v2109
  %v2622 = vunpack.c.l.b16 %v2110
  %v2623 = vunpack.c.l.b16 %v2111
  %v2624 = vunpack.c.l.b16 %v2112
  %v2625 = vunpack.c.l.b16 %v2113
  %v2626 = vunpack.c.l.b16 %v2114
  %v2627 = vunpack.c.l.b16 %v2115
  %v2628 = vunpack.c.l.b16 %v2116
  %v2629 = vunpack.c.l.b16 %v2117
  %v2630 = vunpack.c.l.b16 %v2118
  %v2631 = vunpack.c.l.b16 %v2119
  %v2632 = vunpack.c.l.b16 %v2120
  %v2633 = vunpack.c.l.b16 %v2121
  %v2634 = vunpack.c.l.b16 %v2122
  %v2635 = vunpack.c.l.b16 %v2123
  %v2636 = vunpack.c.l.b16 %v2124
  %v2637 = vunpack.c.l.b16 %v2125
  %v2638 = vunpack.c.l.b16 %v2126
  %v2639 = vunpack.c.l.b16 %v2127
  %v2640 = vunpack.c.l.b16 %v2128
  %v2641 = vunpack.c.l.b16 %v2129
  %v2642 = vunpack.c.l.b16 %v2130
  %v2643 = vunpack.c.l.b16 %v2131
  %v2644 = vunpack.c.l.b16 %v2132
  %v2645 = vunpack.c.l.b16 %v2133
  %v2646 = vunpack.c.l.b16 %v2134
  %v2647 = vunpack.c.l.b16 %v2135
  %v2648 = vunpack.c.l.b16 %v2136
  %v2649 = vunpack.c.l.b16 %v2137
  %v2650 = vunpack.c.l.b16 %v2138
  %v2651 = vunpack.c.l.b16 %v2139
  %v2652 = vunpack.c.l.b16 %v2140
  %v2653 = vunpack.c.l.b16 %v2141
  %v2654 = vunpack.c.l.b16 %v2142
  %v2655 = vunpack.c.l.b16 %v2143
  %v2656 = vunpack.c.l.b16 %v2144
  %v2657 = vunpack.c.l.b16 %v2145
  %v2658 = vunpack.c.l.b16 %v2146
  %v2659 = vunpack.c.l.b16 %v2147
  %v2660 = vunpack.c.l.b16 %v2148
  %v2661 = vunpack.c.l.b16 %v2149
  %v2662 = vunpack.c.l.b16 %v2150
  %v2663 = vunpack.c.l.b16 %v2151
  %v2664 = vunpack.c.l.b16 %v2152
  %v2665 = vunpack.c.l.b16 %v2153
  %v2666 = vunpack.c.l.b16 %v2154
  %v2667 = vunpack.c.l.b16 %v2155
  %v2668 = vunpack.c.l.b16 %v2156
  %v2669 = vunpack.c.l.b16 %v2157
  %v2670 = vunpack.c.l.b16 %v2158
  %v2671 = vunpack.c.l.b16 %v2159
  %v2672 = vunpack.c.l.b16 %v2160
  %v2673 = vunpack.c.l.b16 %v2161
  %v2674 = vunpack.c.l.b16 %v2162
  %v2675 = vunpack.c.l.b16 %v2163
  %v2676 = vunpack.c.l.b16 %v2164
  %v2677 = vunpack.c.l.b16 %v2165
  %v2678 = vunpack.c.l.b16 %v2166
  %v2679 = vunpack.c.l.b16 %v2167
  %v2680 = vunpack.c.l.b16 %v2168
  %v2681 = vunpack.c.l.b16 %v2169
  %v2682 = vunpack.c.l.b16 %v2170
  %v2683 = vunpack.c.l.b16 %v2171
  %v2684 = vunpack.c.l.b16 %v2172
  %v2685 = vpack.c.b16 %v2430, %v2429
  %v2686 = vpack.c.b16 %v2432, %v2431
  %v2687 = vpack.c.b16 %v2434, %v2433
  %v2688 = vpack.c.b16 %v2436, %v2435
  %v2689 = vpack.c.b16 %v2438, %v2437
  %v2690 = vpack.c.b16 %v2440, %v2439
  %v2691 = vpack.c.b16 %v2442, %v2441
  %v2692 = vpack.c.b16 %v2444, %v2443
  %v2693 = vpack.c.b16 %v2446, %v2445
  %v2694 = vpack.c.b16 %v2448, %v2447
  %v2695 = vpack.c.b16 %v2450, %v2449
  %v2696 = vpack.c.b16 %v2452, %v2451
  %v2697 = vpack.c.b16 %v2454, %v2453
  %v2698 = vpack.c.b16 %v2456, %v2455
  %v2699 = vpack.c.b16 %v2458, %v2457
  %v2700 = vpack.c.b16 %v2460, %v2459
  %v2701 = vpack.c.b16 %v2462, %v2461
  %v2702 = vpack.c.b16 %v2464, %v2463
  %v2703 = vpack.c.b16 %v2466, %v2465
  %v2704 = vpack.c.b16 %v2468, %v2467
  %v2705 = vpack.c.b16 %v2470, %v2469
  %v2706 = vpack.c.b16 %v2472, %v2471
  %v2707 = vpack.c.b16 %v2474, %v2473
  %v2708 = vpack.c.b16 %v2476, %v2475
  %v2709 = vpack.c.b16 %v2478, %v2477
  %v2710 = vpack.c.b16 %v2480, %v2479
  %v2711 = vpack.c.b16 %v2482, %v2481
  %v2712 = vpack.c.b16 %v2484, %v2483
  %v2713 = vpack.c.b16 %v2486, %v2485
  %v2714 = vpack.c.b16 %v2488, %v2487
  %v2715 = vpack.c.b16 %v2490, %v2489
  %v2716 = vpack.c.b16 %v2492, %v2491
  %v2717 = vpack.c.b16 %v2494, %v2493
  %v2718 = vpack.c.b16 %v2496, %v2495
  %v2719 = vpack.c.b16 %v2498, %v2497
  %v2720 = vpack.c.b16 %v2500, %v2499
  %v2721 = vpack.c.b16 %v2502, %v2501
  %v2722 = vpack.c.b16 %v2504, %v2503
  %v2723 = vpack.c.b16 %v2506, %v2505
  %v2724 = vpack.c.b16 %v2508, %v2507
  %v2725 = vpack.c.b16 %v2510, %v2509
  %v2726 = vpack.c.b16 %v2512, %v2511
  %v2727 = vpack.c.b16 %v2514, %v2513
  %v2728 = vpack.c.b16 %v2516, %v2515
  %v2729 = vpack.c.b16 %v2518, %v2517
  %v2730 = vpack.c.b16 %v2520, %v2519
  %v2731 = vpack.c.b16 %v2522, %v2521
  %v2732 = vpack.c.b16 %v2524, %v2523
  %v2733 = vpack.c.b16 %v2526, %v2525
  %v2734 = vpack.c.b16 %v2528, %v2527
  %v2735 = vpack.c.b16 %v2530, %v2529
  %v2736 = vpack.c.b16 %v2532, %v2531
  %v2737 = vpack.c.b16 %v2534, %v2533
  %v2738 = vpack.c.b16 %v2536, %v2535
  %v2739 = vpack.c.b16 %v2538, %v2537
  %v2740 = vpack.c.b16 %v2540, %v2539
  %v2741 = vpack.c.b16 %v2542, %v2541
  %v2742 = vpack.c.b16 %v2544, %v2543
  %v2743 = vpack.c.b16 %v2546, %v2545
  %v2744 = vpack.c.b16 %v2548, %v2547
  %v2745 = vpack.c.b16 %v2550, %v2549
  %v2746 = vpack.c.b16 %v2552, %v2551
  %v2747 = vpack.c.b16 %v2554, %v2553
  %v2748 = vpack.c.b16 %v2556, %v2555
  %v2749 = vpack.c.b16 %v2558, %v2557
  %v2750 = vpack.c.b16 %v2560, %v2559
  %v2751 = vpack.c.b16 %v2562, %v2561
  %v2752 = vpack.c.b16 %v2564, %v2563
  %v2753 = vpack.c.b16 %v2566, %v2565
  %v2754 = vpack.c.b16 %v2568, %v2567
  %v2755 = vpack.c.b16 %v2570, %v2569
  %v2756 = vpack.c.b16 %v2572, %v2571
  %v2757 = vpack.c.b16 %v2574, %v2573
  %v2758 = vpack.c.b16 %v2576, %v2575
  %v2759 = vpack.c.b16 %v2578, %v2577
  %v2760 = vpack.c.b16 %v2580, %v2579
  %v2761 = vpack.c.b16 %v2582, %v2581
  %v2762 = vpack.c.b16 %v2584, %v2583
  %v2763 = vpack.c.b16 %v2586, %v2585
  %v2764 = vpack.c.b16 %v2588, %v2587
  %v2765 = vpack.c.b16 %v2590, %v2589
  %v2766 = vpack.c.b16 %v2592, %v2591
  %v2767 = vpack.c.b16 %v2594, %v2593
  %v2768 = vpack.c.b16 %v2596, %v2595
  %v2769 = vpack.c.b16 %v2598, %v2597
  %v2770 = vpack.c.b16 %v2600, %v2599
  %v2771 = vpack.c.b16 %v2602, %v2601
  %v2772 = vpack.c.b16 %v2604, %v2603
  %v2773 = vpack.c.b16 %v2606, %v2605
  %v2774 = vpack.c.b16 %v2608, %v2607
  %v2775 = vpack.c.b16 %v2610, %v2609
  %v2776 = vpack.c.b16 %v2612, %v2611
  %v2777 = vpack.c.b16 %v2614, %v2613
  %v2778 = vpack.c.b16 %v2616, %v2615
  %v2779 = vpack.c.b16 %v2618, %v2617
  %v2780 = vpack.c.b16 %v2620, %v2619
  %v2781 = vpack.c.b16 %v2622, %v2621
  %v2782 = vpack.c.b16 %v2624, %v2623
  %v2783 = vpack.c.b16 %v2626, %v2625
  %v2784 = vpack.c.b16 %v2628, %v2627
  %v2785 = vpack.c.b16 %v2630, %v2629
  %v2786 = vpack.c.b16 %v2632, %v2631
  %v2787 = vpack.c.b16 %v2634, %v2633
  %v2788 = vpack.c.b16 %v2636, %v2635
  %v2789 = vpack.c.b16 %v2638, %v2637
  %v2790 = vpack.c.b16 %v2640, %v2639
  %v2791 = vpack.c.b16 %v2642, %v2641
  %v2792 = vpack.c.b16 %v2644, %v2643
  %v2793 = vpack.c.b16 %v2646, %v2645
  %v2794 = vpack.c.b16 %v2648, %v2647
  %v2795 = vpack.c.b16 %v2650, %v2649
  %v2796 = vpack.c.b16 %v2652, %v2651
  %v2797 = vpack.c.b16 %v2654, %v2653
  %v2798 = vpack.c.b16 %v2656, %v2655
  %v2799 = vpack.c.b16 %v2658, %v2657
  %v2800 = vpack.c.b16 %v2660, %v2659
  %v2801 = vpack.c.b16 %v2662, %v2661
  %v2802 = vpack.c.b16 %v2664, %v2663
  %v2803 = vpack.c.b16 %v2666, %v2665
  %v2804 = vpack.c.b16 %v2668, %v2667
  %v2805 = vpack.c.b16 %v2670, %v2669
  %v2806 = vpack.c.b16 %v2672, %v2671
  %v2807 = vpack.c.b16 %v2674, %v2673
  %v2808 = vpack.c.b16 %v2676, %v2675
  %v2809 = vpack.c.b16 %v2678, %v2677
  %v2810 = vpack.c.b16 %v2680, %v2679
  %v2811 = vpack.c.b16 %v2682, %v2681
  %v2812 = vpack.c.b16 %v2684, %v2683
  %2941 = vmatprep.subr.bf16.mxu0 0
  %2942 = vmatpush1.bf16.msra.mxu0 %v2685
  %2943 = vmatprep.subr.bf16.mxu0 0
  %2944 = vmatpush1.bf16.msra.mxu0 %v2686
  %2945 = vmatprep.subr.bf16.mxu0 0
  %2946 = vmatpush1.bf16.msra.mxu0 %v2687
  %2947 = vmatprep.subr.bf16.mxu0 0
  %2948 = vmatpush1.bf16.msra.mxu0 %v2688
  %2949 = vmatprep.subr.bf16.mxu0 0
  %2950 = vmatpush1.bf16.msra.mxu0 %v2689
  %2951 = vmatprep.subr.bf16.mxu0 0
  %2952 = vmatpush1.bf16.msra.mxu0 %v2690
  %2953 = vmatprep.subr.bf16.mxu0 0
  %2954 = vmatpush1.bf16.msra.mxu0 %v2691
  %2955 = vmatprep.subr.bf16.mxu0 0
  %2956 = vmatpush1.bf16.msra.mxu0 %v2692
  %2957 = vmatprep.subr.bf16.mxu0 0
  %2958 = vmatpush1.bf16.msra.mxu0 %v2693
  %2959 = vmatprep.subr.bf16.mxu0 0
  %2960 = vmatpush1.bf16.msra.mxu0 %v2694
  %2961 = vmatprep.subr.bf16.mxu0 0
  %2962 = vmatpush1.bf16.msra.mxu0 %v2695
  %2963 = vmatprep.subr.bf16.mxu0 0
  %2964 = vmatpush1.bf16.msra.mxu0 %v2696
  %2965 = vmatprep.subr.bf16.mxu0 0
  %2966 = vmatpush1.bf16.msra.mxu0 %v2697
  %2967 = vmatprep.subr.bf16.mxu0 0
  %2968 = vmatpush1.bf16.msra.mxu0 %v2698
  %2969 = vmatprep.subr.bf16.mxu0 0
  %2970 = vmatpush1.bf16.msra.mxu0 %v2699
  %2971 = vmatprep.subr.bf16.mxu0 0
  %2972 = vmatpush1.bf16.msra.mxu0 %v2700
  %2973 = vmatprep.mubr.bf16.mxu0 %v1886
  %2974 = vmatmul.mubr.bf16.gmra.mrb[0].mxu0 %v1885
  %v2975 = vpop.f32.mrb[0].mxu0
  %v2976 = vadd.f32 0.0, %v2975
  %v2977 = vpop.f32.mrb[0].mxu0
  %v2978 = vpop.f32.mrb[0].mxu0
  %v2979 = vadd.f32 0.0, %v2978
  %v2980 = vpop.f32.mrb[0].mxu0
  %2981 = vmatprep.mubr.bf16.mxu0 %v1902
  %2982 = vmatmul.mubr.bf16.gmra.mrb[0].mxu0 %v1901
  %v2983 = vpop.f32.mrb[0].mxu0
  %v2984 = vadd.f32 0.0, %v2983
  %v2985 = vpop.f32.mrb[0].mxu0
  %v2986 = vpop.f32.mrb[0].mxu0
  %v2987 = vadd.f32 0.0, %v2986
  %v2988 = vpop.f32.mrb[0].mxu0
  %2989 = vdwg.mxu0
  %2990 = vmatprep.subr.bf16.mxu0 0
  %2991 = vmatpush1.bf16.msra.mxu0 %v2701
  %2992 = vmatprep.subr.bf16.mxu0 0
  %2993 = vmatpush1.bf16.msra.mxu0 %v2702
  %2994 = vmatprep.subr.bf16.mxu0 0
  %2995 = vmatpush1.bf16.msra.mxu0 %v2703
  %2996 = vmatprep.subr.bf16.mxu0 0
  %2997 = vmatpush1.bf16.msra.mxu0 %v2704
  %2998 = vmatprep.subr.bf16.mxu0 0
  %2999 = vmatpush1.bf16.msra.mxu0 %v2705
  %3000 = vmatprep.subr.bf16.mxu0 0
  %3001 = vmatpush1.bf16.msra.mxu0 %v2706
  %3002 = vmatprep.subr.bf16.mxu0 0
  %3003 = vmatpush1.bf16.msra.mxu0 %v2707
  %3004 = vmatprep.subr.bf16.mxu0 0
  %3005 = vmatpush1.bf16.msra.mxu0 %v2708
  %3006 = vmatprep.subr.bf16.mxu0 0
  %3007 = vmatpush1.bf16.msra.mxu0 %v2709
  %3008 = vmatprep.subr.bf16.mxu0 0
  %3009 = vmatpush1.bf16.msra.mxu0 %v2710
  %3010 = vmatprep.subr.bf16.mxu0 0
  %3011 = vmatpush1.bf16.msra.mxu0 %v2711
  %3012 = vmatprep.subr.bf16.mxu0 0
  %3013 = vmatpush1.bf16.msra.mxu0 %v2712
  %3014 = vmatprep.subr.bf16.mxu0 0
  %3015 = vmatpush1.bf16.msra.mxu0 %v2713
  %3016 = vmatprep.subr.bf16.mxu0 0
  %3017 = vmatpush1.bf16.msra.mxu0 %v2714
  %3018 = vmatprep.subr.bf16.mxu0 0
  %3019 = vmatpush1.bf16.msra.mxu0 %v2715
  %3020 = vmatprep.subr.bf16.mxu0 0
  %3021 = vmatpush1.bf16.msra.mxu0 %v2716
  %3022 = vmatprep.mubr.bf16.mxu0 %v1888
  %3023 = vmatmul.mubr.bf16.gmra.mrb[0].mxu0 %v1887
  %v3024 = vpop.f32.mrb[0].mxu0
  %v3025 = vadd.f32 %v2976, %v3024
  %v3026 = vpop.f32.mrb[0].mxu0
  %v3027 = vpop.f32.mrb[0].mxu0
  %v3028 = vadd.f32 %v2979, %v3027
  %v3029 = vpop.f32.mrb[0].mxu0
  %3030 = vmatprep.mubr.bf16.mxu0 %v1904
  %3031 = vmatmul.mubr.bf16.gmra.mrb[0].mxu0 %v1903
  %v3032 = vpop.f32.mrb[0].mxu0
  %v3033 = vadd.f32 %v2984, %v3032
  %v3034 = vpop.f32.mrb[0].mxu0
  %v3035 = vpop.f32.mrb[0].mxu0
  %v3036 = vadd.f32 %v2987, %v3035
  %v3037 = vpop.f32.mrb[0].mxu0
  %3038 = vdwg.mxu0
  %3039 = vmatprep.subr.bf16.mxu0 0
  %3040 = vmatpush1.bf16.msra.mxu0 %v2717
  %3041 = vmatprep.subr.bf16.mxu0 0
  %3042 = vmatpush1.bf16.msra.mxu0 %v2718
  %3043 = vmatprep.subr.bf16.mxu0 0
  %3044 = vmatpush1.bf16.msra.mxu0 %v2719
  %3045 = vmatprep.subr.bf16.mxu0 0
  %3046 = vmatpush1.bf16.msra.mxu0 %v2720
  %3047 = vmatprep.subr.bf16.mxu0 0
  %3048 = vmatpush1.bf16.msra.mxu0 %v2721
  %3049 = vmatprep.subr.bf16.mxu0 0
  %3050 = vmatpush1.bf16.msra.mxu0 %v2722
  %3051 = vmatprep.subr.bf16.mxu0 0
  %3052 = vmatpush1.bf16.msra.mxu0 %v2723
  %3053 = vmatprep.subr.bf16.mxu0 0
  %3054 = vmatpush1.bf16.msra.mxu0 %v2724
  %3055 = vmatprep.subr.bf16.mxu0 0
  %3056 = vmatpush1.bf16.msra.mxu0 %v2725
  %3057 = vmatprep.subr.bf16.mxu0 0
  %3058 = vmatpush1.bf16.msra.mxu0 %v2726
  %3059 = vmatprep.subr.bf16.mxu0 0
  %3060 = vmatpush1.bf16.msra.mxu0 %v2727
  %3061 = vmatprep.subr.bf16.mxu0 0
  %3062 = vmatpush1.bf16.msra.mxu0 %v2728
  %3063 = vmatprep.subr.bf16.mxu0 0
  %3064 = vmatpush1.bf16.msra.mxu0 %v2729
  %3065 = vmatprep.subr.bf16.mxu0 0
  %3066 = vmatpush1.bf16.msra.mxu0 %v2730
  %3067 = vmatprep.subr.bf16.mxu0 0
  %3068 = vmatpush1.bf16.msra.mxu0 %v2731
  %3069 = vmatprep.subr.bf16.mxu0 0
  %3070 = vmatpush1.bf16.msra.mxu0 %v2732
  %3071 = vmatprep.mubr.bf16.mxu0 %v1890
  %3072 = vmatmul.mubr.bf16.gmra.mrb[0].mxu0 %v1889
  %v3073 = vpop.f32.mrb[0].mxu0
  %v3074 = vadd.f32 %v3025, %v3073
  %v3075 = vpop.f32.mrb[0].mxu0
  %v3076 = vpop.f32.mrb[0].mxu0
  %v3077 = vadd.f32 %v3028, %v3076
  %v3078 = vpop.f32.mrb[0].mxu0
  %3079 = vmatprep.mubr.bf16.mxu0 %v1906
  %3080 = vmatmul.mubr.bf16.gmra.mrb[0].mxu0 %v1905
  %v3081 = vpop.f32.mrb[0].mxu0
  %v3082 = vadd.f32 %v3033, %v3081
  %v3083 = vpop.f32.mrb[0].mxu0
  %v3084 = vpop.f32.mrb[0].mxu0
  %v3085 = vadd.f32 %v3036, %v3084
  %v3086 = vpop.f32.mrb[0].mxu0
  %3087 = vdwg.mxu0
  %3088 = vmatprep.subr.bf16.mxu0 0
  %3089 = vmatpush1.bf16.msra.mxu0 %v2733
  %3090 = vmatprep.subr.bf16.mxu0 0
  %3091 = vmatpush1.bf16.msra.mxu0 %v2734
  %3092 = vmatprep.subr.bf16.mxu0 0
  %3093 = vmatpush1.bf16.msra.mxu0 %v2735
  %3094 = vmatprep.subr.bf16.mxu0 0
  %3095 = vmatpush1.bf16.msra.mxu0 %v2736
  %3096 = vmatprep.subr.bf16.mxu0 0
  %3097 = vmatpush1.bf16.msra.mxu0 %v2737
  %3098 = vmatprep.subr.bf16.mxu0 0
  %3099 = vmatpush1.bf16.msra.mxu0 %v2738
  %3100 = vmatprep.subr.bf16.mxu0 0
  %3101 = vmatpush1.bf16.msra.mxu0 %v2739
  %3102 = vmatprep.subr.bf16.mxu0 0
  %3103 = vmatpush1.bf16.msra.mxu0 %v2740
  %3104 = vmatprep.subr.bf16.mxu0 0
  %3105 = vmatpush1.bf16.msra.mxu0 %v2741
  %3106 = vmatprep.subr.bf16.mxu0 0
  %3107 = vmatpush1.bf16.msra.mxu0 %v2742
  %3108 = vmatprep.subr.bf16.mxu0 0
  %3109 = vmatpush1.bf16.msra.mxu0 %v2743
  %3110 = vmatprep.subr.bf16.mxu0 0
  %3111 = vmatpush1.bf16.msra.mxu0 %v2744
  %3112 = vmatprep.subr.bf16.mxu0 0
  %3113 = vmatpush1.bf16.msra.mxu0 %v2745
  %3114 = vmatprep.subr.bf16.mxu0 0
  %3115 = vmatpush1.bf16.msra.mxu0 %v2746
  %3116 = vmatprep.subr.bf16.mxu0 0
  %3117 = vmatpush1.bf16.msra.mxu0 %v2747
  %3118 = vmatprep.subr.bf16.mxu0 0
  %3119 = vmatpush1.bf16.msra.mxu0 %v2748
  %3120 = vmatprep.mubr.bf16.mxu0 %v1892
  %3121 = vmatmul.mubr.bf16.gmra.mrb[0].mxu0 %v1891
  %v3122 = vpop.f32.mrb[0].mxu0
  %v3123 = vadd.f32 %v3074, %v3122
  %v3124 = vpop.f32.mrb[0].mxu0
  %v3125 = vpop.f32.mrb[0].mxu0
  %v3126 = vadd.f32 %v3077, %v3125
  %v3127 = vpop.f32.mrb[0].mxu0
  %3128 = vmatprep.mubr.bf16.mxu0 %v1908
  %3129 = vmatmul.mubr.bf16.gmra.mrb[0].mxu0 %v1907
  %v3130 = vpop.f32.mrb[0].mxu0
  %v3131 = vadd.f32 %v3082, %v3130
  %v3132 = vpop.f32.mrb[0].mxu0
  %v3133 = vpop.f32.mrb[0].mxu0
  %v3134 = vadd.f32 %v3085, %v3133
  %v3135 = vpop.f32.mrb[0].mxu0
  %3136 = vdwg.mxu0
  %3137 = vmatprep.subr.bf16.mxu0 0
  %3138 = vmatpush1.bf16.msra.mxu0 %v2749
  %3139 = vmatprep.subr.bf16.mxu0 0
  %3140 = vmatpush1.bf16.msra.mxu0 %v2750
  %3141 = vmatprep.subr.bf16.mxu0 0
  %3142 = vmatpush1.bf16.msra.mxu0 %v2751
  %3143 = vmatprep.subr.bf16.mxu0 0
  %3144 = vmatpush1.bf16.msra.mxu0 %v2752
  %3145 = vmatprep.subr.bf16.mxu0 0
  %3146 = vmatpush1.bf16.msra.mxu0 %v2753
  %3147 = vmatprep.subr.bf16.mxu0 0
  %3148 = vmatpush1.bf16.msra.mxu0 %v2754
  %3149 = vmatprep.subr.bf16.mxu0 0
  %3150 = vmatpush1.bf16.msra.mxu0 %v2755
  %3151 = vmatprep.subr.bf16.mxu0 0
  %3152 = vmatpush1.bf16.msra.mxu0 %v2756
  %3153 = vmatprep.subr.bf16.mxu0 0
  %3154 = vmatpush1.bf16.msra.mxu0 %v2757
  %3155 = vmatprep.subr.bf16.mxu0 0
  %3156 = vmatpush1.bf16.msra.mxu0 %v2758
  %3157 = vmatprep.subr.bf16.mxu0 0
  %3158 = vmatpush1.bf16.msra.mxu0 %v2759
  %3159 = vmatprep.subr.bf16.mxu0 0
  %3160 = vmatpush1.bf16.msra.mxu0 %v2760
  %3161 = vmatprep.subr.bf16.mxu0 0
  %3162 = vmatpush1.bf16.msra.mxu0 %v2761
  %3163 = vmatprep.subr.bf16.mxu0 0
  %3164 = vmatpush1.bf16.msra.mxu0 %v2762
  %3165 = vmatprep.subr.bf16.mxu0 0
  %3166 = vmatpush1.bf16.msra.mxu0 %v2763
  %3167 = vmatprep.subr.bf16.mxu0 0
  %3168 = vmatpush1.bf16.msra.mxu0 %v2764
  %3169 = vmatprep.mubr.bf16.mxu0 %v1894
  %3170 = vmatmul.mubr.bf16.gmra.mrb[0].mxu0 %v1893
  %v3171 = vpop.f32.mrb[0].mxu0
  %v3172 = vadd.f32 %v3123, %v3171
  %v3173 = vpop.f32.mrb[0].mxu0
  %v3174 = vpop.f32.mrb[0].mxu0
  %v3175 = vadd.f32 %v3126, %v3174
  %v3176 = vpop.f32.mrb[0].mxu0
  %3177 = vmatprep.mubr.bf16.mxu0 %v1910
  %3178 = vmatmul.mubr.bf16.gmra.mrb[0].mxu0 %v1909
  %v3179 = vpop.f32.mrb[0].mxu0
  %v3180 = vadd.f32 %v3131, %v3179
  %v3181 = vpop.f32.mrb[0].mxu0
  %v3182 = vpop.f32.mrb[0].mxu0
  %v3183 = vadd.f32 %v3134, %v3182
  %v3184 = vpop.f32.mrb[0].mxu0
  %3185 = vdwg.mxu0
  %3186 = vmatprep.subr.bf16.mxu0 0
  %3187 = vmatpush1.bf16.msra.mxu0 %v2765
  %3188 = vmatprep.subr.bf16.mxu0 0
  %3189 = vmatpush1.bf16.msra.mxu0 %v2766
  %3190 = vmatprep.subr.bf16.mxu0 0
  %3191 = vmatpush1.bf16.msra.mxu0 %v2767
  %3192 = vmatprep.subr.bf16.mxu0 0
  %3193 = vmatpush1.bf16.msra.mxu0 %v2768
  %3194 = vmatprep.subr.bf16.mxu0 0
  %3195 = vmatpush1.bf16.msra.mxu0 %v2769
  %3196 = vmatprep.subr.bf16.mxu0 0
  %3197 = vmatpush1.bf16.msra.mxu0 %v2770
  %3198 = vmatprep.subr.bf16.mxu0 0
  %3199 = vmatpush1.bf16.msra.mxu0 %v2771
  %3200 = vmatprep.subr.bf16.mxu0 0
  %3201 = vmatpush1.bf16.msra.mxu0 %v2772
  %3202 = vmatprep.subr.bf16.mxu0 0
  %3203 = vmatpush1.bf16.msra.mxu0 %v2773
  %3204 = vmatprep.subr.bf16.mxu0 0
  %3205 = vmatpush1.bf16.msra.mxu0 %v2774
  %3206 = vmatprep.subr.bf16.mxu0 0
  %3207 = vmatpush1.bf16.msra.mxu0 %v2775
  %3208 = vmatprep.subr.bf16.mxu0 0
  %3209 = vmatpush1.bf16.msra.mxu0 %v2776
  %3210 = vmatprep.subr.bf16.mxu0 0
  %3211 = vmatpush1.bf16.msra.mxu0 %v2777
  %3212 = vmatprep.subr.bf16.mxu0 0
  %3213 = vmatpush1.bf16.msra.mxu0 %v2778
  %3214 = vmatprep.subr.bf16.mxu0 0
  %3215 = vmatpush1.bf16.msra.mxu0 %v2779
  %3216 = vmatprep.subr.bf16.mxu0 0
  %3217 = vmatpush1.bf16.msra.mxu0 %v2780
  %3218 = vmatprep.mubr.bf16.mxu0 %v1896
  %3219 = vmatmul.mubr.bf16.gmra.mrb[0].mxu0 %v1895
  %v3220 = vpop.f32.mrb[0].mxu0
  %v3221 = vadd.f32 %v3172, %v3220
  %v3222 = vpop.f32.mrb[0].mxu0
  %v3223 = vpop.f32.mrb[0].mxu0
  %v3224 = vadd.f32 %v3175, %v3223
  %v3225 = vpop.f32.mrb[0].mxu0
  %3226 = vmatprep.mubr.bf16.mxu0 %v1912
  %3227 = vmatmul.mubr.bf16.gmra.mrb[0].mxu0 %v1911
  %v3228 = vpop.f32.mrb[0].mxu0
  %v3229 = vadd.f32 %v3180, %v3228
  %v3230 = vpop.f32.mrb[0].mxu0
  %v3231 = vpop.f32.mrb[0].mxu0
  %v3232 = vadd.f32 %v3183, %v3231
  %v3233 = vpop.f32.mrb[0].mxu0
  %3234 = vdwg.mxu0
  %3235 = vmatprep.subr.bf16.mxu0 0
  %3236 = vmatpush1.bf16.msra.mxu0 %v2781
  %3237 = vmatprep.subr.bf16.mxu0 0
  %3238 = vmatpush1.bf16.msra.mxu0 %v2782
  %3239 = vmatprep.subr.bf16.mxu0 0
  %3240 = vmatpush1.bf16.msra.mxu0 %v2783
  %3241 = vmatprep.subr.bf16.mxu0 0
  %3242 = vmatpush1.bf16.msra.mxu0 %v2784
  %3243 = vmatprep.subr.bf16.mxu0 0
  %3244 = vmatpush1.bf16.msra.mxu0 %v2785
  %3245 = vmatprep.subr.bf16.mxu0 0
  %3246 = vmatpush1.bf16.msra.mxu0 %v2786
  %3247 = vmatprep.subr.bf16.mxu0 0
  %3248 = vmatpush1.bf16.msra.mxu0 %v2787
  %3249 = vmatprep.subr.bf16.mxu0 0
  %3250 = vmatpush1.bf16.msra.mxu0 %v2788
  %3251 = vmatprep.subr.bf16.mxu0 0
  %3252 = vmatpush1.bf16.msra.mxu0 %v2789
  %3253 = vmatprep.subr.bf16.mxu0 0
  %3254 = vmatpush1.bf16.msra.mxu0 %v2790
  %3255 = vmatprep.subr.bf16.mxu0 0
  %3256 = vmatpush1.bf16.msra.mxu0 %v2791
  %3257 = vmatprep.subr.bf16.mxu0 0
  %3258 = vmatpush1.bf16.msra.mxu0 %v2792
  %3259 = vmatprep.subr.bf16.mxu0 0
  %3260 = vmatpush1.bf16.msra.mxu0 %v2793
  %3261 = vmatprep.subr.bf16.mxu0 0
  %3262 = vmatpush1.bf16.msra.mxu0 %v2794
  %3263 = vmatprep.subr.bf16.mxu0 0
  %3264 = vmatpush1.bf16.msra.mxu0 %v2795
  %3265 = vmatprep.subr.bf16.mxu0 0
  %3266 = vmatpush1.bf16.msra.mxu0 %v2796
  %3267 = vmatprep.mubr.bf16.mxu0 %v1898
  %3268 = vmatmul.mubr.bf16.gmra.mrb[0].mxu0 %v1897
  %v3269 = vpop.f32.mrb[0].mxu0
  %v3270 = vadd.f32 %v3221, %v3269
  %v3271 = vpop.f32.mrb[0].mxu0
  %v3272 = vpop.f32.mrb[0].mxu0
  %v3273 = vadd.f32 %v3224, %v3272
  %v3274 = vpop.f32.mrb[0].mxu0
  %3275 = vmatprep.mubr.bf16.mxu0 %v1914
  %3276 = vmatmul.mubr.bf16.gmra.mrb[0].mxu0 %v1913
  %v3277 = vpop.f32.mrb[0].mxu0
  %v3278 = vadd.f32 %v3229, %v3277
  %v3279 = vpop.f32.mrb[0].mxu0
  %v3280 = vpop.f32.mrb[0].mxu0
  %v3281 = vadd.f32 %v3232, %v3280
  %v3282 = vpop.f32.mrb[0].mxu0
  %3283 = vdwg.mxu0
  %3284 = vmatprep.subr.bf16.mxu0 0
  %3285 = vmatpush1.bf16.msra.mxu0 %v2797
  %3286 = vmatprep.subr.bf16.mxu0 0
  %3287 = vmatpush1.bf16.msra.mxu0 %v2798
  %3288 = vmatprep.subr.bf16.mxu0 0
  %3289 = vmatpush1.bf16.msra.mxu0 %v2799
  %3290 = vmatprep.subr.bf16.mxu0 0
  %3291 = vmatpush1.bf16.msra.mxu0 %v2800
  %3292 = vmatprep.subr.bf16.mxu0 0
  %3293 = vmatpush1.bf16.msra.mxu0 %v2801
  %3294 = vmatprep.subr.bf16.mxu0 0
  %3295 = vmatpush1.bf16.msra.mxu0 %v2802
  %3296 = vmatprep.subr.bf16.mxu0 0
  %3297 = vmatpush1.bf16.msra.mxu0 %v2803
  %3298 = vmatprep.subr.bf16.mxu0 0
  %3299 = vmatpush1.bf16.msra.mxu0 %v2804
  %3300 = vmatprep.subr.bf16.mxu0 0
  %3301 = vmatpush1.bf16.msra.mxu0 %v2805
  %3302 = vmatprep.subr.bf16.mxu0 0
  %3303 = vmatpush1.bf16.msra.mxu0 %v2806
  %3304 = vmatprep.subr.bf16.mxu0 0
  %3305 = vmatpush1.bf16.msra.mxu0 %v2807
  %3306 = vmatprep.subr.bf16.mxu0 0
  %3307 = vmatpush1.bf16.msra.mxu0 %v2808
  %3308 = vmatprep.subr.bf16.mxu0 0
  %3309 = vmatpush1.bf16.msra.mxu0 %v2809
  %3310 = vmatprep.subr.bf16.mxu0 0
  %3311 = vmatpush1.bf16.msra.mxu0 %v2810
  %3312 = vmatprep.subr.bf16.mxu0 0
  %3313 = vmatpush1.bf16.msra.mxu0 %v2811
  %3314 = vmatprep.subr.bf16.mxu0 0
  %3315 = vmatpush1.bf16.msra.mxu0 %v2812
  %3316 = vmatprep.mubr.bf16.mxu0 %v1900
  %3317 = vmatmul.mubr.bf16.gmra.mrb[0].mxu0 %v1899
  %v3318 = vpop.f32.mrb[0].mxu0
  %v3319 = vadd.f32 %v3270, %v3318
  %v3320 = vpop.f32.mrb[0].mxu0
  %v3321 = vpop.f32.mrb[0].mxu0
  %v3322 = vadd.f32 %v3273, %v3321
  %v3323 = vpop.f32.mrb[0].mxu0
  %3324 = vmatprep.mubr.bf16.mxu0 %v1916
  %3325 = vmatmul.mubr.bf16.gmra.mrb[0].mxu0 %v1915
  %v3326 = vpop.f32.mrb[0].mxu0
  %v3327 = vadd.f32 %v3278, %v3326
  %v3328 = vpop.f32.mrb[0].mxu0
  %v3329 = vpop.f32.mrb[0].mxu0
  %v3330 = vadd.f32 %v3281, %v3329
  %v3331 = vpop.f32.mrb[0].mxu0
  %3332 = vdwg.mxu0
  %v3333 = vadd.f32 %v27, %v3319
  %v3334 = vadd.f32 %v28, %v3322
  %v3335 = vadd.f32 %v29, %v3327
  %v3336 = vadd.f32 %v30, %v3330
  %v3337 = vld [vmem:[%s4] sm:$0x1]
  %v3339 = vlaneseq
  %v3340 = vshrl.u32 %v3339, 7
  %v3341 = vsub.s32 0, %v3340
  %v3342 = vrot.slane %v3337, %v3341
  %v3344 = vadd.f32 %v3333, %v3342
  %v3345 = vadd.f32 %v3334, %v3342
  %v3346 = vadd.f32 %v3335, %v3342
  %v3347 = vadd.f32 %v3336, %v3342
  %v3348 = vld [vmem:[%s5] sm:$0x1]
  %v3349 = vld [vmem:[%s6] sm:$0x1]
  %3350 = vadd.xlane.f32.xlu0 %v3344
  %v3351 = vpop.xlane.xlu0 %3350
  %3352 = vadd.xlane.f32.xlu0 %v3345
  %v3353 = vpop.xlane.xlu0 %3352
  %3354 = vadd.xlane.f32.xlu0 %v3346
  %v3355 = vpop.xlane.xlu0 %3354
  %3356 = vadd.xlane.f32.xlu0 %v3347
  %v3357 = vpop.xlane.xlu0 %3356
  %v3358 = vrcp.pop 128.0
  %v3359 = vmul.f32 %v3351, %v3358
  %v3360 = vmul.f32 %v3353, %v3358
  %v3361 = vmul.f32 %v3355, %v3358
  %v3362 = vmul.f32 %v3357, %v3358
  %v3363 = vsub.f32 %v3344, %v3359
  %v3364 = vsub.f32 %v3345, %v3360
  %v3365 = vsub.f32 %v3346, %v3361
  %v3366 = vsub.f32 %v3347, %v3362
  %v3367 = vmul.f32 %v3363, %v3363
  %v3368 = vmul.f32 %v3364, %v3364
  %v3369 = vmul.f32 %v3365, %v3365
  %v3370 = vmul.f32 %v3366, %v3366
  %3371 = vadd.xlane.f32.xlu0 %v3367
  %v3372 = vpop.xlane.xlu0 %3371
  %3373 = vadd.xlane.f32.xlu0 %v3368
  %v3374 = vpop.xlane.xlu0 %3373
  %3375 = vadd.xlane.f32.xlu0 %v3369
  %v3376 = vpop.xlane.xlu0 %3375
  %3377 = vadd.xlane.f32.xlu0 %v3370
  %v3378 = vpop.xlane.xlu0 %3377
  %v3379 = vmul.f32 %v3372, %v3358
  %v3380 = vmul.f32 %v3374, %v3358
  %v3381 = vmul.f32 %v3376, %v3358
  %v3382 = vmul.f32 %v3378, %v3358
  %v3383 = vadd.f32 %v3379, 1e-05
  %v3384 = vadd.f32 %v3380, 1e-05
  %v3385 = vadd.f32 %v3381, 1e-05
  %v3386 = vadd.f32 %v3382, 1e-05
  %v3387 = vrsqrt.pop %v3383
  %v3388 = vrsqrt.pop %v3384
  %v3389 = vrsqrt.pop %v3385
  %v3390 = vrsqrt.pop %v3386
  %v3391 = vmul.f32 %v3363, %v3387
  %v3392 = vmul.f32 %v3364, %v3388
  %v3393 = vmul.f32 %v3365, %v3389
  %v3394 = vmul.f32 %v3366, %v3390
  %v3396 = vlaneseq
  %v3397 = vshrl.u32 %v3396, 7
  %v3398 = vsub.s32 0, %v3397
  %v3399 = vrot.slane %v3348, %v3398
  %v3401 = vmul.f32 %v3391, %v3399
  %v3402 = vmul.f32 %v3392, %v3399
  %v3403 = vmul.f32 %v3393, %v3399
  %v3404 = vmul.f32 %v3394, %v3399
  %v3406 = vlaneseq
  %v3407 = vshrl.u32 %v3406, 7
  %v3408 = vsub.s32 0, %v3407
  %v3409 = vrot.slane %v3349, %v3408
  %v3411 = vadd.f32 %v3401, %v3409
  %v3412 = vadd.f32 %v3402, %v3409
  %v3413 = vadd.f32 %v3403, %v3409
  %v3414 = vadd.f32 %v3404, %v3409
  %3415 = vst [vmem:[%s7] sm:$0xff] %v3411
  %3416 = vst [vmem:[%s7 + $0x8] sm:$0xff] %v3412
  %3417 = vst [vmem:[%s7 + $0x10] sm:$0xff] %v3413
  %3418 = vst [vmem:[%s7 + $0x18] sm:$0xff] %v3414
  // Predicated region
  $region30: #{pallas_forward.16} parent=0 // pred_check
    _
  $region31: #{pallas_forward.16} parent=0 // pred_check_branch
    %3420 = sbr.rel (0) target = $region33
  $region32: #{pallas_forward.16} parent=0 // pred_region
    _
  $region33: #{pallas_forward.16} parent=0 // pred_fallthru
    _
  // Predicated region
  $region34: #{pallas_forward.16} parent=0 // pred_check
    _
  $region35: #{pallas_forward.16} parent=0 // pred_check_branch
    %3422 = sbr.rel (0) target = $region37
  $region36: #{pallas_forward.16} parent=0 // pred_region
    _
  $region37: #{pallas_forward.16} parent=0 // pred_fallthru
    _

</llo_original>
